<compile_context>
chip_gen: v7x
topology: tpu7x:2x2x1
jax: 0.10.0
libtpu: 0.0.40
codegen_flags: <defaults>
</compile_context>

<pallas_src>
import functools

import jax
import jax.numpy as jnp
from jax.experimental import pallas as pl
from jax.experimental.pallas import tpu as pltpu


def _round_up(x, m):
    return ((x + m - 1) // m) * m


def _log_sigmoid(x):
    # numerically-stable log(sigmoid(x)) = min(x, 0) - log(1 + exp(-|x|))
    return jnp.minimum(x, 0.0) - jnp.log(1.0 + jnp.exp(-jnp.abs(x)))


def _sgns_kernel(center_idx_ref, target_idx_ref, neg_idx_ref,   # SMEM (scalar prefetch)
                 emb_v_hbm, emb_u_hbm,                          # HBM (pl.ANY)
                 out_ref,                                       # (1, 8, 128) VMEM
                 cbuf, tbuf, nbuf, sem,                         # scratch
                 *, tb, k_neg, batch):
    i = pl.program_id(0)
    base = i * tb

    # --- manual row-gather DMAs: emb_v[c[b]] -> cbuf[r], emb_u[t[b]] -> tbuf[r],
    #     emb_u[n[b,k]] -> nbuf[k, r]
    def start_row(r):
        b = base + r
        pltpu.make_async_copy(
            emb_v_hbm.at[pl.ds(center_idx_ref[b], 1), :],
            cbuf.at[pl.ds(r, 1), :], sem.at[0]).start()
        pltpu.make_async_copy(
            emb_u_hbm.at[pl.ds(target_idx_ref[b], 1), :],
            tbuf.at[pl.ds(r, 1), :], sem.at[1]).start()
        for k in range(k_neg):
            pltpu.make_async_copy(
                emb_u_hbm.at[pl.ds(neg_idx_ref[b * k_neg + k], 1), :],
                nbuf.at[k, pl.ds(r, 1), :], sem.at[2]).start()

    def wait_row(r):
        # waits only need matching transfer sizes; all row copies are (1, Dp)
        pltpu.make_async_copy(
            emb_v_hbm.at[pl.ds(0, 1), :], cbuf.at[pl.ds(r, 1), :], sem.at[0]).wait()
        pltpu.make_async_copy(
            emb_u_hbm.at[pl.ds(0, 1), :], tbuf.at[pl.ds(r, 1), :], sem.at[1]).wait()
        for k in range(k_neg):
            pltpu.make_async_copy(
                emb_u_hbm.at[pl.ds(0, 1), :], nbuf.at[k, pl.ds(r, 1), :],
                sem.at[2]).wait()

    # Bounded-lookahead gather pipeline: keeps a constant number of DMAs in
    # flight regardless of tile size while hiding HBM latency.
    lookahead = min(8, tb)
    for r in range(lookahead):          # static prime
        start_row(r)

    @pl.loop(0, tb)
    def _(r):
        @pl.when(r + lookahead < tb)
        def _():
            start_row(r + lookahead)
        wait_row(r)

    # --- compute (all data now resident in VMEM, lane-dense D) ---
    c = cbuf[...].astype(jnp.float32)                              # (tb, Dp)
    t = tbuf[...].astype(jnp.float32)                              # (tb, Dp)
    pos_score = jnp.sum(t * c, axis=-1, keepdims=True)             # (tb, 1)

    # VPU add-accumulate over K slabs (avoids a 5-of-8 sublane reduce).
    neg_sum = nbuf[0].astype(jnp.float32)                          # (tb, Dp)
    for k in range(1, k_neg):
        neg_sum = neg_sum + nbuf[k].astype(jnp.float32)
    neg_score = -jnp.sum(neg_sum * c, axis=-1, keepdims=True)      # (tb, 1)

    loss = _log_sigmoid(pos_score) + _log_sigmoid(neg_score)       # (tb, 1)

    # Mask batch-padding rows of the (possibly ragged) last tile.
    row = jax.lax.broadcasted_iota(jnp.int32, (tb, 1), 0)
    valid = (base + row) < batch
    loss = jnp.where(valid, loss, 0.0)

    tile_sum = jnp.sum(loss, axis=0, keepdims=True)                # (1, 1)
    # Lane/sublane-dense partial-sum writeback (unmasked full-tile store).
    out_ref[...] = jnp.broadcast_to(tile_sum.reshape(1, 1, 1), (1, 8, 128))


def skipgram_neg_sampling_loss(emb_v, emb_u, center, target, neg, *, tb_max=512):
    """emb_v, emb_u: (V, D) float; center, target: (B,) or (B,1) int; neg: (B, K) int."""
    V, D = emb_v.shape
    c_idx = center.reshape(-1).astype(jnp.int32)
    t_idx = target.reshape(-1).astype(jnp.int32)
    n_idx = neg.astype(jnp.int32)
    B = c_idx.shape[0]
    K = n_idx.shape[1]

    # Lane-dense embedding dim: pad D up to a multiple of 128 (zero columns do
    # not change dot products). No-op when D is already a multiple of 128.
    Dp = _round_up(D, 128)
    if Dp != D:
        emb_v = jnp.pad(emb_v, ((0, 0), (0, Dp - D)))
        emb_u = jnp.pad(emb_u, ((0, 0), (0, Dp - D)))

    # Batch tile: as large as a fixed VMEM-scratch budget allows (fits v7x's
    # smaller scoped VMEM too), capped, and never larger than the 8-rounded B.
    bytes_per_row = (2 + K) * Dp * 4
    budget = 4 * 1024 * 1024
    TB = int(max(8, min(tb_max, (budget // bytes_per_row) // 8 * 8)))
    TB = min(TB, _round_up(B, 8))
    B_pad = _round_up(B, TB)
    num_tiles = B_pad // TB

    # Pad index arrays (padded rows gather row 0; masked out inside the kernel).
    c_idx = jnp.pad(c_idx, (0, B_pad - B))
    t_idx = jnp.pad(t_idx, (0, B_pad - B))
    n_idx = jnp.pad(n_idx, ((0, B_pad - B), (0, 0))).reshape(-1)

    kernel = functools.partial(_sgns_kernel, tb=TB, k_neg=K, batch=B)

    partials = pl.pallas_call(
        kernel,
        out_shape=jax.ShapeDtypeStruct((num_tiles, 8, 128), jnp.float32),
        grid_spec=pltpu.PrefetchScalarGridSpec(
            num_scalar_prefetch=3,               # center / target / neg indices -> SMEM
            grid=(num_tiles,),
            in_specs=[
                pl.BlockSpec(memory_space=pl.ANY),   # emb_v stays in HBM
                pl.BlockSpec(memory_space=pl.ANY),   # emb_u stays in HBM
            ],
            out_specs=pl.BlockSpec((1, 8, 128), lambda i, *_: (i, 0, 0)),
            scratch_shapes=[
                pltpu.VMEM((TB, Dp), emb_v.dtype),       # gathered center rows
                pltpu.VMEM((TB, Dp), emb_u.dtype),       # gathered target rows
                pltpu.VMEM((K, TB, Dp), emb_u.dtype),    # gathered negative rows
                pltpu.SemaphoreType.DMA((3,)),
            ]),
        compiler_params=pltpu.CompilerParams(
            dimension_semantics=("parallel",)),          # independent per-tile partials
    )(c_idx, t_idx, n_idx, emb_v, emb_u)

    # Tiny final reduction over per-tile partial sums in plain JAX.
    return -(jnp.sum(partials[:, 0, 0]) / B)


def _reference_loss(emb_v, emb_u, center, target, neg):
    center_emb = jnp.take(emb_v, center.reshape(-1), axis=0)      # (B, D)
    target_emb = jnp.take(emb_u, target.reshape(-1), axis=0)      # (B, D)
    neg_emb = -jnp.take(emb_u, neg, axis=0)                       # (B, K, D)
    pos_score = jnp.sum(target_emb * center_emb, axis=-1)         # (B,)
    neg_score = jnp.sum(jnp.einsum("bkd,bd->bk", neg_emb, center_emb), axis=-1)
    loss = jax.nn.log_sigmoid(pos_score) + jax.nn.log_sigmoid(neg_score)
    return -jnp.mean(loss)


if __name__ == "__main__":
    # --- config 1: small shapes consistent with the module ---
    V, D, B, K = 64, 32, 8, 5   # vocab_size, word_dim, batch, num_negatives

    key = jax.random.PRNGKey(0)
    k1, k2, k3, k4, k5 = jax.random.split(key, 5)

    # xavier_uniform_ with gain=1 on a (V, D) weight: bound = sqrt(6 / (V + D))
    bound = (6.0 / (V + D)) ** 0.5
    emb_v = jax.random.uniform(k1, (V, D), jnp.float32, -bound, bound)
    emb_u = jax.random.uniform(k2, (V, D), jnp.float32, -bound, bound)

    center = jax.random.randint(k3, (B, 1), 0, V, dtype=jnp.int32)
    target = jax.random.randint(k4, (B, 1), 0, V, dtype=jnp.int32)
    neg = jax.random.randint(k5, (B, K), 0, V, dtype=jnp.int32)

    loss = skipgram_neg_sampling_loss(emb_v, emb_u, center, target, neg)
    jax.block_until_ready(loss)
    ref = _reference_loss(emb_v, emb_u, center, target, neg)
    assert jnp.allclose(loss, ref, atol=1e-4), (loss, ref)

    # --- config 2: multiple batch tiles + a ragged (masked) last tile ---
    V2, D2, B2, K2 = 128, 32, 40, 5
    j1, j2, j3, j4, j5 = jax.random.split(jax.random.PRNGKey(1), 5)
    b2 = (6.0 / (V2 + D2)) ** 0.5
    emb_v2 = jax.random.uniform(j1, (V2, D2), jnp.float32, -b2, b2)
    emb_u2 = jax.random.uniform(j2, (V2, D2), jnp.float32, -b2, b2)
    center2 = jax.random.randint(j3, (B2, 1), 0, V2, dtype=jnp.int32)
    target2 = jax.random.randint(j4, (B2, 1), 0, V2, dtype=jnp.int32)
    neg2 = jax.random.randint(j5, (B2, K2), 0, V2, dtype=jnp.int32)

    loss2 = skipgram_neg_sampling_loss(emb_v2, emb_u2, center2, target2, neg2,
                                       tb_max=16)
    jax.block_until_ready(loss2)
    ref2 = _reference_loss(emb_v2, emb_u2, center2, target2, neg2)
    assert jnp.allclose(loss2, ref2, atol=1e-4), (loss2, ref2)

    print("KERNEL_OK")
</pallas_src>

<mosaic_0001>
module attributes {stable_mosaic.version = 11 : i64} {
  func.func @_sgns_kernel(%arg0: i32, %arg1: memref<8xi32, #tpu.memory_space<smem>>, %arg2: memref<8xi32, #tpu.memory_space<smem>>, %arg3: memref<40xi32, #tpu.memory_space<smem>>, %arg4: memref<64x128xf32, #tpu.memory_space<any>>, %arg5: memref<64x128xf32, #tpu.memory_space<any>>, %arg6: memref<1x8x128xf32, #tpu.memory_space<vmem>>, %arg7: memref<8x128xf32, #tpu.memory_space<vmem>>, %arg8: memref<8x128xf32, #tpu.memory_space<vmem>>, %arg9: memref<5x8x128xf32, #tpu.memory_space<vmem>>, %arg10: memref<3x!tpu.dma_semaphore, #tpu.memory_space<semaphore_mem>>) attributes {dimension_semantics = [#tpu.dimension_semantics<parallel>], iteration_bounds = array<i64: 1>, scalar_prefetch = 3 : i64, scratch_operands = 4 : i64, tpu.core_type = #tpu.core_type<tc>, window_params = [{}, {}, {transform_indices = @transform_2, window_bounds = array<i64: 1, 8, 128>}]} {
    %c8_i32 = arith.constant 8 : i32
    %0 = arith.muli %arg0, %c8_i32 : i32
    %c0_i32 = arith.constant 0 : i32
    %1 = arith.addi %0, %c0_i32 : i32
    %2 = arith.index_cast %1 : i32 to index
    %3 = memref.load %arg1[%2] : memref<8xi32, #tpu.memory_space<smem>>
    %c0_i32_0 = arith.constant 0 : i32
    %c0_i32_1 = arith.constant 0 : i32
    %4 = tpu.memref_slice %arg4[%3, %c0_i32_1] : memref<64x128xf32, #tpu.memory_space<any>> -> memref<1x128xf32, #tpu.memory_space<any>>
    %c0_i32_2 = arith.constant 0 : i32
    %c0_i32_3 = arith.constant 0 : i32
    %5 = tpu.memref_slice %arg7[%c0_i32_2, %c0_i32_3] : memref<8x128xf32, #tpu.memory_space<vmem>> -> memref<1x128xf32, #tpu.memory_space<vmem>>
    %6 = tpu.memref_slice %arg10[%c0_i32_0] : memref<3x!tpu.dma_semaphore, #tpu.memory_space<semaphore_mem>> -> memref<1x!tpu.dma_semaphore, #tpu.memory_space<semaphore_mem>>
    %7 = tpu.memref_squeeze %6 : memref<1x!tpu.dma_semaphore, #tpu.memory_space<semaphore_mem>> -> memref<!tpu.dma_semaphore, #tpu.memory_space<semaphore_mem>>
    tpu.enqueue_dma source(%4 : memref<1x128xf32, #tpu.memory_space<any>>) target(%5 : memref<1x128xf32, #tpu.memory_space<vmem>>) target_semaphore(%7 : memref<!tpu.dma_semaphore, #tpu.memory_space<semaphore_mem>>)
    %8 = arith.index_cast %1 : i32 to index
    %9 = memref.load %arg2[%8] : memref<8xi32, #tpu.memory_space<smem>>
    %c1_i32 = arith.constant 1 : i32
    %c0_i32_4 = arith.constant 0 : i32
    %10 = tpu.memref_slice %arg5[%9, %c0_i32_4] : memref<64x128xf32, #tpu.memory_space<any>> -> memref<1x128xf32, #tpu.memory_space<any>>
    %c0_i32_5 = arith.constant 0 : i32
    %c0_i32_6 = arith.constant 0 : i32
    %11 = tpu.memref_slice %arg8[%c0_i32_5, %c0_i32_6] : memref<8x128xf32, #tpu.memory_space<vmem>> -> memref<1x128xf32, #tpu.memory_space<vmem>>
    %12 = tpu.memref_slice %arg10[%c1_i32] : memref<3x!tpu.dma_semaphore, #tpu.memory_space<semaphore_mem>> -> memref<1x!tpu.dma_semaphore, #tpu.memory_space<semaphore_mem>>
    %13 = tpu.memref_squeeze %12 : memref<1x!tpu.dma_semaphore, #tpu.memory_space<semaphore_mem>> -> memref<!tpu.dma_semaphore, #tpu.memory_space<semaphore_mem>>
    tpu.enqueue_dma source(%10 : memref<1x128xf32, #tpu.memory_space<any>>) target(%11 : memref<1x128xf32, #tpu.memory_space<vmem>>) target_semaphore(%13 : memref<!tpu.dma_semaphore, #tpu.memory_space<semaphore_mem>>)
    %c5_i32 = arith.constant 5 : i32
    %14 = arith.muli %1, %c5_i32 : i32
    %c0_i32_7 = arith.constant 0 : i32
    %15 = arith.addi %14, %c0_i32_7 : i32
    %16 = arith.index_cast %15 : i32 to index
    %17 = memref.load %arg3[%16] : memref<40xi32, #tpu.memory_space<smem>>
    %c0_i32_8 = arith.constant 0 : i32
    %c2_i32 = arith.constant 2 : i32
    %c0_i32_9 = arith.constant 0 : i32
    %18 = tpu.memref_slice %arg5[%17, %c0_i32_9] : memref<64x128xf32, #tpu.memory_space<any>> -> memref<1x128xf32, #tpu.memory_space<any>>
    %c0_i32_10 = arith.constant 0 : i32
    %c0_i32_11 = arith.constant 0 : i32
    %19 = tpu.memref_slice %arg9[%c0_i32_8, %c0_i32_10, %c0_i32_11] : memref<5x8x128xf32, #tpu.memory_space<vmem>> -> memref<1x1x128xf32, #tpu.memory_space<vmem>>
    %20 = tpu.memref_squeeze %19 : memref<1x1x128xf32, #tpu.memory_space<vmem>> -> memref<1x128xf32, #tpu.memory_space<vmem>>
    %21 = tpu.memref_slice %arg10[%c2_i32] : memref<3x!tpu.dma_semaphore, #tpu.memory_space<semaphore_mem>> -> memref<1x!tpu.dma_semaphore, #tpu.memory_space<semaphore_mem>>
    %22 = tpu.memref_squeeze %21 : memref<1x!tpu.dma_semaphore, #tpu.memory_space<semaphore_mem>> -> memref<!tpu.dma_semaphore, #tpu.memory_space<semaphore_mem>>
    tpu.enqueue_dma source(%18 : memref<1x128xf32, #tpu.memory_space<any>>) target(%20 : memref<1x128xf32, #tpu.memory_space<vmem>>) target_semaphore(%22 : memref<!tpu.dma_semaphore, #tpu.memory_space<semaphore_mem>>)
    %c5_i32_12 = arith.constant 5 : i32
    %23 = arith.muli %1, %c5_i32_12 : i32
    %c1_i32_13 = arith.constant 1 : i32
    %24 = arith.addi %23, %c1_i32_13 : i32
    %25 = arith.index_cast %24 : i32 to index
    %26 = memref.load %arg3[%25] : memref<40xi32, #tpu.memory_space<smem>>
    %c1_i32_14 = arith.constant 1 : i32
    %c2_i32_15 = arith.constant 2 : i32
    %c0_i32_16 = arith.constant 0 : i32
    %27 = tpu.memref_slice %arg5[%26, %c0_i32_16] : memref<64x128xf32, #tpu.memory_space<any>> -> memref<1x128xf32, #tpu.memory_space<any>>
    %c0_i32_17 = arith.constant 0 : i32
    %c0_i32_18 = arith.constant 0 : i32
    %28 = tpu.memref_slice %arg9[%c1_i32_14, %c0_i32_17, %c0_i32_18] : memref<5x8x128xf32, #tpu.memory_space<vmem>> -> memref<1x1x128xf32, #tpu.memory_space<vmem>>
    %29 = tpu.memref_squeeze %28 : memref<1x1x128xf32, #tpu.memory_space<vmem>> -> memref<1x128xf32, #tpu.memory_space<vmem>>
    %30 = tpu.memref_slice %arg10[%c2_i32_15] : memref<3x!tpu.dma_semaphore, #tpu.memory_space<semaphore_mem>> -> memref<1x!tpu.dma_semaphore, #tpu.memory_space<semaphore_mem>>
    %31 = tpu.memref_squeeze %30 : memref<1x!tpu.dma_semaphore, #tpu.memory_space<semaphore_mem>> -> memref<!tpu.dma_semaphore, #tpu.memory_space<semaphore_mem>>
    tpu.enqueue_dma source(%27 : memref<1x128xf32, #tpu.memory_space<any>>) target(%29 : memref<1x128xf32, #tpu.memory_space<vmem>>) target_semaphore(%31 : memref<!tpu.dma_semaphore, #tpu.memory_space<semaphore_mem>>)
    %c5_i32_19 = arith.constant 5 : i32
    %32 = arith.muli %1, %c5_i32_19 : i32
    %c2_i32_20 = arith.constant 2 : i32
    %33 = arith.addi %32, %c2_i32_20 : i32
    %34 = arith.index_cast %33 : i32 to index
    %35 = memref.load %arg3[%34] : memref<40xi32, #tpu.memory_space<smem>>
    %c2_i32_21 = arith.constant 2 : i32
    %c2_i32_22 = arith.constant 2 : i32
    %c0_i32_23 = arith.constant 0 : i32
    %36 = tpu.memref_slice %arg5[%35, %c0_i32_23] : memref<64x128xf32, #tpu.memory_space<any>> -> memref<1x128xf32, #tpu.memory_space<any>>
    %c0_i32_24 = arith.constant 0 : i32
    %c0_i32_25 = arith.constant 0 : i32
    %37 = tpu.memref_slice %arg9[%c2_i32_21, %c0_i32_24, %c0_i32_25] : memref<5x8x128xf32, #tpu.memory_space<vmem>> -> memref<1x1x128xf32, #tpu.memory_space<vmem>>
    %38 = tpu.memref_squeeze %37 : memref<1x1x128xf32, #tpu.memory_space<vmem>> -> memref<1x128xf32, #tpu.memory_space<vmem>>
    %39 = tpu.memref_slice %arg10[%c2_i32_22] : memref<3x!tpu.dma_semaphore, #tpu.memory_space<semaphore_mem>> -> memref<1x!tpu.dma_semaphore, #tpu.memory_space<semaphore_mem>>
    %40 = tpu.memref_squeeze %39 : memref<1x!tpu.dma_semaphore, #tpu.memory_space<semaphore_mem>> -> memref<!tpu.dma_semaphore, #tpu.memory_space<semaphore_mem>>
    tpu.enqueue_dma source(%36 : memref<1x128xf32, #tpu.memory_space<any>>) target(%38 : memref<1x128xf32, #tpu.memory_space<vmem>>) target_semaphore(%40 : memref<!tpu.dma_semaphore, #tpu.memory_space<semaphore_mem>>)
    %c5_i32_26 = arith.constant 5 : i32
    %41 = arith.muli %1, %c5_i32_26 : i32
    %c3_i32 = arith.constant 3 : i32
    %42 = arith.addi %41, %c3_i32 : i32
    %43 = arith.index_cast %42 : i32 to index
    %44 = memref.load %arg3[%43] : memref<40xi32, #tpu.memory_space<smem>>
    %c3_i32_27 = arith.constant 3 : i32
    %c2_i32_28 = arith.constant 2 : i32
    %c0_i32_29 = arith.constant 0 : i32
    %45 = tpu.memref_slice %arg5[%44, %c0_i32_29] : memref<64x128xf32, #tpu.memory_space<any>> -> memref<1x128xf32, #tpu.memory_space<any>>
    %c0_i32_30 = arith.constant 0 : i32
    %c0_i32_31 = arith.constant 0 : i32
    %46 = tpu.memref_slice %arg9[%c3_i32_27, %c0_i32_30, %c0_i32_31] : memref<5x8x128xf32, #tpu.memory_space<vmem>> -> memref<1x1x128xf32, #tpu.memory_space<vmem>>
    %47 = tpu.memref_squeeze %46 : memref<1x1x128xf32, #tpu.memory_space<vmem>> -> memref<1x128xf32, #tpu.memory_space<vmem>>
    %48 = tpu.memref_slice %arg10[%c2_i32_28] : memref<3x!tpu.dma_semaphore, #tpu.memory_space<semaphore_mem>> -> memref<1x!tpu.dma_semaphore, #tpu.memory_space<semaphore_mem>>
    %49 = tpu.memref_squeeze %48 : memref<1x!tpu.dma_semaphore, #tpu.memory_space<semaphore_mem>> -> memref<!tpu.dma_semaphore, #tpu.memory_space<semaphore_mem>>
    tpu.enqueue_dma source(%45 : memref<1x128xf32, #tpu.memory_space<any>>) target(%47 : memref<1x128xf32, #tpu.memory_space<vmem>>) target_semaphore(%49 : memref<!tpu.dma_semaphore, #tpu.memory_space<semaphore_mem>>)
    %c5_i32_32 = arith.constant 5 : i32
    %50 = arith.muli %1, %c5_i32_32 : i32
    %c4_i32 = arith.constant 4 : i32
    %51 = arith.addi %50, %c4_i32 : i32
    %52 = arith.index_cast %51 : i32 to index
    %53 = memref.load %arg3[%52] : memref<40xi32, #tpu.memory_space<smem>>
    %c4_i32_33 = arith.constant 4 : i32
    %c2_i32_34 = arith.constant 2 : i32
    %c0_i32_35 = arith.constant 0 : i32
    %54 = tpu.memref_slice %arg5[%53, %c0_i32_35] : memref<64x128xf32, #tpu.memory_space<any>> -> memref<1x128xf32, #tpu.memory_space<any>>
    %c0_i32_36 = arith.constant 0 : i32
    %c0_i32_37 = arith.constant 0 : i32
    %55 = tpu.memref_slice %arg9[%c4_i32_33, %c0_i32_36, %c0_i32_37] : memref<5x8x128xf32, #tpu.memory_space<vmem>> -> memref<1x1x128xf32, #tpu.memory_space<vmem>>
    %56 = tpu.memref_squeeze %55 : memref<1x1x128xf32, #tpu.memory_space<vmem>> -> memref<1x128xf32, #tpu.memory_space<vmem>>
    %57 = tpu.memref_slice %arg10[%c2_i32_34] : memref<3x!tpu.dma_semaphore, #tpu.memory_space<semaphore_mem>> -> memref<1x!tpu.dma_semaphore, #tpu.memory_space<semaphore_mem>>
    %58 = tpu.memref_squeeze %57 : memref<1x!tpu.dma_semaphore, #tpu.memory_space<semaphore_mem>> -> memref<!tpu.dma_semaphore, #tpu.memory_space<semaphore_mem>>
    tpu.enqueue_dma source(%54 : memref<1x128xf32, #tpu.memory_space<any>>) target(%56 : memref<1x128xf32, #tpu.memory_space<vmem>>) target_semaphore(%58 : memref<!tpu.dma_semaphore, #tpu.memory_space<semaphore_mem>>)
    %c1_i32_38 = arith.constant 1 : i32
    %59 = arith.addi %0, %c1_i32_38 : i32
    %60 = arith.index_cast %59 : i32 to index
    %61 = memref.load %arg1[%60] : memref<8xi32, #tpu.memory_space<smem>>
    %c0_i32_39 = arith.constant 0 : i32
    %c0_i32_40 = arith.constant 0 : i32
    %62 = tpu.memref_slice %arg4[%61, %c0_i32_40] : memref<64x128xf32, #tpu.memory_space<any>> -> memref<1x128xf32, #tpu.memory_space<any>>
    %c1_i32_41 = arith.constant 1 : i32
    %c0_i32_42 = arith.constant 0 : i32
    %63 = tpu.memref_slice %arg7[%c1_i32_41, %c0_i32_42] : memref<8x128xf32, #tpu.memory_space<vmem>> -> memref<1x128xf32, #tpu.memory_space<vmem>>
    %64 = tpu.memref_slice %arg10[%c0_i32_39] : memref<3x!tpu.dma_semaphore, #tpu.memory_space<semaphore_mem>> -> memref<1x!tpu.dma_semaphore, #tpu.memory_space<semaphore_mem>>
    %65 = tpu.memref_squeeze %64 : memref<1x!tpu.dma_semaphore, #tpu.memory_space<semaphore_mem>> -> memref<!tpu.dma_semaphore, #tpu.memory_space<semaphore_mem>>
    tpu.enqueue_dma source(%62 : memref<1x128xf32, #tpu.memory_space<any>>) target(%63 : memref<1x128xf32, #tpu.memory_space<vmem>>) target_semaphore(%65 : memref<!tpu.dma_semaphore, #tpu.memory_space<semaphore_mem>>)
    %66 = arith.index_cast %59 : i32 to index
    %67 = memref.load %arg2[%66] : memref<8xi32, #tpu.memory_space<smem>>
    %c1_i32_43 = arith.constant 1 : i32
    %c0_i32_44 = arith.constant 0 : i32
    %68 = tpu.memref_slice %arg5[%67, %c0_i32_44] : memref<64x128xf32, #tpu.memory_space<any>> -> memref<1x128xf32, #tpu.memory_space<any>>
    %c1_i32_45 = arith.constant 1 : i32
    %c0_i32_46 = arith.constant 0 : i32
    %69 = tpu.memref_slice %arg8[%c1_i32_45, %c0_i32_46] : memref<8x128xf32, #tpu.memory_space<vmem>> -> memref<1x128xf32, #tpu.memory_space<vmem>>
    %70 = tpu.memref_slice %arg10[%c1_i32_43] : memref<3x!tpu.dma_semaphore, #tpu.memory_space<semaphore_mem>> -> memref<1x!tpu.dma_semaphore, #tpu.memory_space<semaphore_mem>>
    %71 = tpu.memref_squeeze %70 : memref<1x!tpu.dma_semaphore, #tpu.memory_space<semaphore_mem>> -> memref<!tpu.dma_semaphore, #tpu.memory_space<semaphore_mem>>
    tpu.enqueue_dma source(%68 : memref<1x128xf32, #tpu.memory_space<any>>) target(%69 : memref<1x128xf32, #tpu.memory_space<vmem>>) target_semaphore(%71 : memref<!tpu.dma_semaphore, #tpu.memory_space<semaphore_mem>>)
    %c5_i32_47 = arith.constant 5 : i32
    %72 = arith.muli %59, %c5_i32_47 : i32
    %c0_i32_48 = arith.constant 0 : i32
    %73 = arith.addi %72, %c0_i32_48 : i32
    %74 = arith.index_cast %73 : i32 to index
    %75 = memref.load %arg3[%74] : memref<40xi32, #tpu.memory_space<smem>>
    %c0_i32_49 = arith.constant 0 : i32
    %c2_i32_50 = arith.constant 2 : i32
    %c0_i32_51 = arith.constant 0 : i32
    %76 = tpu.memref_slice %arg5[%75, %c0_i32_51] : memref<64x128xf32, #tpu.memory_space<any>> -> memref<1x128xf32, #tpu.memory_space<any>>
    %c1_i32_52 = arith.constant 1 : i32
    %c0_i32_53 = arith.constant 0 : i32
    %77 = tpu.memref_slice %arg9[%c0_i32_49, %c1_i32_52, %c0_i32_53] : memref<5x8x128xf32, #tpu.memory_space<vmem>> -> memref<1x1x128xf32, #tpu.memory_space<vmem>>
    %78 = tpu.memref_squeeze %77 : memref<1x1x128xf32, #tpu.memory_space<vmem>> -> memref<1x128xf32, #tpu.memory_space<vmem>>
    %79 = tpu.memref_slice %arg10[%c2_i32_50] : memref<3x!tpu.dma_semaphore, #tpu.memory_space<semaphore_mem>> -> memref<1x!tpu.dma_semaphore, #tpu.memory_space<semaphore_mem>>
    %80 = tpu.memref_squeeze %79 : memref<1x!tpu.dma_semaphore, #tpu.memory_space<semaphore_mem>> -> memref<!tpu.dma_semaphore, #tpu.memory_space<semaphore_mem>>
    tpu.enqueue_dma source(%76 : memref<1x128xf32, #tpu.memory_space<any>>) target(%78 : memref<1x128xf32, #tpu.memory_space<vmem>>) target_semaphore(%80 : memref<!tpu.dma_semaphore, #tpu.memory_space<semaphore_mem>>)
    %c5_i32_54 = arith.constant 5 : i32
    %81 = arith.muli %59, %c5_i32_54 : i32
    %c1_i32_55 = arith.constant 1 : i32
    %82 = arith.addi %81, %c1_i32_55 : i32
    %83 = arith.index_cast %82 : i32 to index
    %84 = memref.load %arg3[%83] : memref<40xi32, #tpu.memory_space<smem>>
    %c1_i32_56 = arith.constant 1 : i32
    %c2_i32_57 = arith.constant 2 : i32
    %c0_i32_58 = arith.constant 0 : i32
    %85 = tpu.memref_slice %arg5[%84, %c0_i32_58] : memref<64x128xf32, #tpu.memory_space<any>> -> memref<1x128xf32, #tpu.memory_space<any>>
    %c1_i32_59 = arith.constant 1 : i32
    %c0_i32_60 = arith.constant 0 : i32
    %86 = tpu.memref_slice %arg9[%c1_i32_56, %c1_i32_59, %c0_i32_60] : memref<5x8x128xf32, #tpu.memory_space<vmem>> -> memref<1x1x128xf32, #tpu.memory_space<vmem>>
    %87 = tpu.memref_squeeze %86 : memref<1x1x128xf32, #tpu.memory_space<vmem>> -> memref<1x128xf32, #tpu.memory_space<vmem>>
    %88 = tpu.memref_slice %arg10[%c2_i32_57] : memref<3x!tpu.dma_semaphore, #tpu.memory_space<semaphore_mem>> -> memref<1x!tpu.dma_semaphore, #tpu.memory_space<semaphore_mem>>
    %89 = tpu.memref_squeeze %88 : memref<1x!tpu.dma_semaphore, #tpu.memory_space<semaphore_mem>> -> memref<!tpu.dma_semaphore, #tpu.memory_space<semaphore_mem>>
    tpu.enqueue_dma source(%85 : memref<1x128xf32, #tpu.memory_space<any>>) target(%87 : memref<1x128xf32, #tpu.memory_space<vmem>>) target_semaphore(%89 : memref<!tpu.dma_semaphore, #tpu.memory_space<semaphore_mem>>)
    %c5_i32_61 = arith.constant 5 : i32
    %90 = arith.muli %59, %c5_i32_61 : i32
    %c2_i32_62 = arith.constant 2 : i32
    %91 = arith.addi %90, %c2_i32_62 : i32
    %92 = arith.index_cast %91 : i32 to index
    %93 = memref.load %arg3[%92] : memref<40xi32, #tpu.memory_space<smem>>
    %c2_i32_63 = arith.constant 2 : i32
    %c2_i32_64 = arith.constant 2 : i32
    %c0_i32_65 = arith.constant 0 : i32
    %94 = tpu.memref_slice %arg5[%93, %c0_i32_65] : memref<64x128xf32, #tpu.memory_space<any>> -> memref<1x128xf32, #tpu.memory_space<any>>
    %c1_i32_66 = arith.constant 1 : i32
    %c0_i32_67 = arith.constant 0 : i32
    %95 = tpu.memref_slice %arg9[%c2_i32_63, %c1_i32_66, %c0_i32_67] : memref<5x8x128xf32, #tpu.memory_space<vmem>> -> memref<1x1x128xf32, #tpu.memory_space<vmem>>
    %96 = tpu.memref_squeeze %95 : memref<1x1x128xf32, #tpu.memory_space<vmem>> -> memref<1x128xf32, #tpu.memory_space<vmem>>
    %97 = tpu.memref_slice %arg10[%c2_i32_64] : memref<3x!tpu.dma_semaphore, #tpu.memory_space<semaphore_mem>> -> memref<1x!tpu.dma_semaphore, #tpu.memory_space<semaphore_mem>>
    %98 = tpu.memref_squeeze %97 : memref<1x!tpu.dma_semaphore, #tpu.memory_space<semaphore_mem>> -> memref<!tpu.dma_semaphore, #tpu.memory_space<semaphore_mem>>
    tpu.enqueue_dma source(%94 : memref<1x128xf32, #tpu.memory_space<any>>) target(%96 : memref<1x128xf32, #tpu.memory_space<vmem>>) target_semaphore(%98 : memref<!tpu.dma_semaphore, #tpu.memory_space<semaphore_mem>>)
    %c5_i32_68 = arith.constant 5 : i32
    %99 = arith.muli %59, %c5_i32_68 : i32
    %c3_i32_69 = arith.constant 3 : i32
    %100 = arith.addi %99, %c3_i32_69 : i32
    %101 = arith.index_cast %100 : i32 to index
    %102 = memref.load %arg3[%101] : memref<40xi32, #tpu.memory_space<smem>>
    %c3_i32_70 = arith.constant 3 : i32
    %c2_i32_71 = arith.constant 2 : i32
    %c0_i32_72 = arith.constant 0 : i32
    %103 = tpu.memref_slice %arg5[%102, %c0_i32_72] : memref<64x128xf32, #tpu.memory_space<any>> -> memref<1x128xf32, #tpu.memory_space<any>>
    %c1_i32_73 = arith.constant 1 : i32
    %c0_i32_74 = arith.constant 0 : i32
    %104 = tpu.memref_slice %arg9[%c3_i32_70, %c1_i32_73, %c0_i32_74] : memref<5x8x128xf32, #tpu.memory_space<vmem>> -> memref<1x1x128xf32, #tpu.memory_space<vmem>>
    %105 = tpu.memref_squeeze %104 : memref<1x1x128xf32, #tpu.memory_space<vmem>> -> memref<1x128xf32, #tpu.memory_space<vmem>>
    %106 = tpu.memref_slice %arg10[%c2_i32_71] : memref<3x!tpu.dma_semaphore, #tpu.memory_space<semaphore_mem>> -> memref<1x!tpu.dma_semaphore, #tpu.memory_space<semaphore_mem>>
    %107 = tpu.memref_squeeze %106 : memref<1x!tpu.dma_semaphore, #tpu.memory_space<semaphore_mem>> -> memref<!tpu.dma_semaphore, #tpu.memory_space<semaphore_mem>>
    tpu.enqueue_dma source(%103 : memref<1x128xf32, #tpu.memory_space<any>>) target(%105 : memref<1x128xf32, #tpu.memory_space<vmem>>) target_semaphore(%107 : memref<!tpu.dma_semaphore, #tpu.memory_space<semaphore_mem>>)
    %c5_i32_75 = arith.constant 5 : i32
    %108 = arith.muli %59, %c5_i32_75 : i32
    %c4_i32_76 = arith.constant 4 : i32
    %109 = arith.addi %108, %c4_i32_76 : i32
    %110 = arith.index_cast %109 : i32 to index
    %111 = memref.load %arg3[%110] : memref<40xi32, #tpu.memory_space<smem>>
    %c4_i32_77 = arith.constant 4 : i32
    %c2_i32_78 = arith.constant 2 : i32
    %c0_i32_79 = arith.constant 0 : i32
    %112 = tpu.memref_slice %arg5[%111, %c0_i32_79] : memref<64x128xf32, #tpu.memory_space<any>> -> memref<1x128xf32, #tpu.memory_space<any>>
    %c1_i32_80 = arith.constant 1 : i32
    %c0_i32_81 = arith.constant 0 : i32
    %113 = tpu.memref_slice %arg9[%c4_i32_77, %c1_i32_80, %c0_i32_81] : memref<5x8x128xf32, #tpu.memory_space<vmem>> -> memref<1x1x128xf32, #tpu.memory_space<vmem>>
    %114 = tpu.memref_squeeze %113 : memref<1x1x128xf32, #tpu.memory_space<vmem>> -> memref<1x128xf32, #tpu.memory_space<vmem>>
    %115 = tpu.memref_slice %arg10[%c2_i32_78] : memref<3x!tpu.dma_semaphore, #tpu.memory_space<semaphore_mem>> -> memref<1x!tpu.dma_semaphore, #tpu.memory_space<semaphore_mem>>
    %116 = tpu.memref_squeeze %115 : memref<1x!tpu.dma_semaphore, #tpu.memory_space<semaphore_mem>> -> memref<!tpu.dma_semaphore, #tpu.memory_space<semaphore_mem>>
    tpu.enqueue_dma source(%112 : memref<1x128xf32, #tpu.memory_space<any>>) target(%114 : memref<1x128xf32, #tpu.memory_space<vmem>>) target_semaphore(%116 : memref<!tpu.dma_semaphore, #tpu.memory_space<semaphore_mem>>)
    %c2_i32_82 = arith.constant 2 : i32
    %117 = arith.addi %0, %c2_i32_82 : i32
    %118 = arith.index_cast %117 : i32 to index
    %119 = memref.load %arg1[%118] : memref<8xi32, #tpu.memory_space<smem>>
    %c0_i32_83 = arith.constant 0 : i32
    %c0_i32_84 = arith.constant 0 : i32
    %120 = tpu.memref_slice %arg4[%119, %c0_i32_84] : memref<64x128xf32, #tpu.memory_space<any>> -> memref<1x128xf32, #tpu.memory_space<any>>
    %c2_i32_85 = arith.constant 2 : i32
    %c0_i32_86 = arith.constant 0 : i32
    %121 = tpu.memref_slice %arg7[%c2_i32_85, %c0_i32_86] : memref<8x128xf32, #tpu.memory_space<vmem>> -> memref<1x128xf32, #tpu.memory_space<vmem>>
    %122 = tpu.memref_slice %arg10[%c0_i32_83] : memref<3x!tpu.dma_semaphore, #tpu.memory_space<semaphore_mem>> -> memref<1x!tpu.dma_semaphore, #tpu.memory_space<semaphore_mem>>
    %123 = tpu.memref_squeeze %122 : memref<1x!tpu.dma_semaphore, #tpu.memory_space<semaphore_mem>> -> memref<!tpu.dma_semaphore, #tpu.memory_space<semaphore_mem>>
    tpu.enqueue_dma source(%120 : memref<1x128xf32, #tpu.memory_space<any>>) target(%121 : memref<1x128xf32, #tpu.memory_space<vmem>>) target_semaphore(%123 : memref<!tpu.dma_semaphore, #tpu.memory_space<semaphore_mem>>)
    %124 = arith.index_cast %117 : i32 to index
    %125 = memref.load %arg2[%124] : memref<8xi32, #tpu.memory_space<smem>>
    %c1_i32_87 = arith.constant 1 : i32
    %c0_i32_88 = arith.constant 0 : i32
    %126 = tpu.memref_slice %arg5[%125, %c0_i32_88] : memref<64x128xf32, #tpu.memory_space<any>> -> memref<1x128xf32, #tpu.memory_space<any>>
    %c2_i32_89 = arith.constant 2 : i32
    %c0_i32_90 = arith.constant 0 : i32
    %127 = tpu.memref_slice %arg8[%c2_i32_89, %c0_i32_90] : memref<8x128xf32, #tpu.memory_space<vmem>> -> memref<1x128xf32, #tpu.memory_space<vmem>>
    %128 = tpu.memref_slice %arg10[%c1_i32_87] : memref<3x!tpu.dma_semaphore, #tpu.memory_space<semaphore_mem>> -> memref<1x!tpu.dma_semaphore, #tpu.memory_space<semaphore_mem>>
    %129 = tpu.memref_squeeze %128 : memref<1x!tpu.dma_semaphore, #tpu.memory_space<semaphore_mem>> -> memref<!tpu.dma_semaphore, #tpu.memory_space<semaphore_mem>>
    tpu.enqueue_dma source(%126 : memref<1x128xf32, #tpu.memory_space<any>>) target(%127 : memref<1x128xf32, #tpu.memory_space<vmem>>) target_semaphore(%129 : memref<!tpu.dma_semaphore, #tpu.memory_space<semaphore_mem>>)
    %c5_i32_91 = arith.constant 5 : i32
    %130 = arith.muli %117, %c5_i32_91 : i32
    %c0_i32_92 = arith.constant 0 : i32
    %131 = arith.addi %130, %c0_i32_92 : i32
    %132 = arith.index_cast %131 : i32 to index
    %133 = memref.load %arg3[%132] : memref<40xi32, #tpu.memory_space<smem>>
    %c0_i32_93 = arith.constant 0 : i32
    %c2_i32_94 = arith.constant 2 : i32
    %c0_i32_95 = arith.constant 0 : i32
    %134 = tpu.memref_slice %arg5[%133, %c0_i32_95] : memref<64x128xf32, #tpu.memory_space<any>> -> memref<1x128xf32, #tpu.memory_space<any>>
    %c2_i32_96 = arith.constant 2 : i32
    %c0_i32_97 = arith.constant 0 : i32
    %135 = tpu.memref_slice %arg9[%c0_i32_93, %c2_i32_96, %c0_i32_97] : memref<5x8x128xf32, #tpu.memory_space<vmem>> -> memref<1x1x128xf32, #tpu.memory_space<vmem>>
    %136 = tpu.memref_squeeze %135 : memref<1x1x128xf32, #tpu.memory_space<vmem>> -> memref<1x128xf32, #tpu.memory_space<vmem>>
    %137 = tpu.memref_slice %arg10[%c2_i32_94] : memref<3x!tpu.dma_semaphore, #tpu.memory_space<semaphore_mem>> -> memref<1x!tpu.dma_semaphore, #tpu.memory_space<semaphore_mem>>
    %138 = tpu.memref_squeeze %137 : memref<1x!tpu.dma_semaphore, #tpu.memory_space<semaphore_mem>> -> memref<!tpu.dma_semaphore, #tpu.memory_space<semaphore_mem>>
    tpu.enqueue_dma source(%134 : memref<1x128xf32, #tpu.memory_space<any>>) target(%136 : memref<1x128xf32, #tpu.memory_space<vmem>>) target_semaphore(%138 : memref<!tpu.dma_semaphore, #tpu.memory_space<semaphore_mem>>)
    %c5_i32_98 = arith.constant 5 : i32
    %139 = arith.muli %117, %c5_i32_98 : i32
    %c1_i32_99 = arith.constant 1 : i32
    %140 = arith.addi %139, %c1_i32_99 : i32
    %141 = arith.index_cast %140 : i32 to index
    %142 = memref.load %arg3[%141] : memref<40xi32, #tpu.memory_space<smem>>
    %c1_i32_100 = arith.constant 1 : i32
    %c2_i32_101 = arith.constant 2 : i32
    %c0_i32_102 = arith.constant 0 : i32
    %143 = tpu.memref_slice %arg5[%142, %c0_i32_102] : memref<64x128xf32, #tpu.memory_space<any>> -> memref<1x128xf32, #tpu.memory_space<any>>
    %c2_i32_103 = arith.constant 2 : i32
    %c0_i32_104 = arith.constant 0 : i32
    %144 = tpu.memref_slice %arg9[%c1_i32_100, %c2_i32_103, %c0_i32_104] : memref<5x8x128xf32, #tpu.memory_space<vmem>> -> memref<1x1x128xf32, #tpu.memory_space<vmem>>
    %145 = tpu.memref_squeeze %144 : memref<1x1x128xf32, #tpu.memory_space<vmem>> -> memref<1x128xf32, #tpu.memory_space<vmem>>
    %146 = tpu.memref_slice %arg10[%c2_i32_101] : memref<3x!tpu.dma_semaphore, #tpu.memory_space<semaphore_mem>> -> memref<1x!tpu.dma_semaphore, #tpu.memory_space<semaphore_mem>>
    %147 = tpu.memref_squeeze %146 : memref<1x!tpu.dma_semaphore, #tpu.memory_space<semaphore_mem>> -> memref<!tpu.dma_semaphore, #tpu.memory_space<semaphore_mem>>
    tpu.enqueue_dma source(%143 : memref<1x128xf32, #tpu.memory_space<any>>) target(%145 : memref<1x128xf32, #tpu.memory_space<vmem>>) target_semaphore(%147 : memref<!tpu.dma_semaphore, #tpu.memory_space<semaphore_mem>>)
    %c5_i32_105 = arith.constant 5 : i32
    %148 = arith.muli %117, %c5_i32_105 : i32
    %c2_i32_106 = arith.constant 2 : i32
    %149 = arith.addi %148, %c2_i32_106 : i32
    %150 = arith.index_cast %149 : i32 to index
    %151 = memref.load %arg3[%150] : memref<40xi32, #tpu.memory_space<smem>>
    %c2_i32_107 = arith.constant 2 : i32
    %c2_i32_108 = arith.constant 2 : i32
    %c0_i32_109 = arith.constant 0 : i32
    %152 = tpu.memref_slice %arg5[%151, %c0_i32_109] : memref<64x128xf32, #tpu.memory_space<any>> -> memref<1x128xf32, #tpu.memory_space<any>>
    %c2_i32_110 = arith.constant 2 : i32
    %c0_i32_111 = arith.constant 0 : i32
    %153 = tpu.memref_slice %arg9[%c2_i32_107, %c2_i32_110, %c0_i32_111] : memref<5x8x128xf32, #tpu.memory_space<vmem>> -> memref<1x1x128xf32, #tpu.memory_space<vmem>>
    %154 = tpu.memref_squeeze %153 : memref<1x1x128xf32, #tpu.memory_space<vmem>> -> memref<1x128xf32, #tpu.memory_space<vmem>>
    %155 = tpu.memref_slice %arg10[%c2_i32_108] : memref<3x!tpu.dma_semaphore, #tpu.memory_space<semaphore_mem>> -> memref<1x!tpu.dma_semaphore, #tpu.memory_space<semaphore_mem>>
    %156 = tpu.memref_squeeze %155 : memref<1x!tpu.dma_semaphore, #tpu.memory_space<semaphore_mem>> -> memref<!tpu.dma_semaphore, #tpu.memory_space<semaphore_mem>>
    tpu.enqueue_dma source(%152 : memref<1x128xf32, #tpu.memory_space<any>>) target(%154 : memref<1x128xf32, #tpu.memory_space<vmem>>) target_semaphore(%156 : memref<!tpu.dma_semaphore, #tpu.memory_space<semaphore_mem>>)
    %c5_i32_112 = arith.constant 5 : i32
    %157 = arith.muli %117, %c5_i32_112 : i32
    %c3_i32_113 = arith.constant 3 : i32
    %158 = arith.addi %157, %c3_i32_113 : i32
    %159 = arith.index_cast %158 : i32 to index
    %160 = memref.load %arg3[%159] : memref<40xi32, #tpu.memory_space<smem>>
    %c3_i32_114 = arith.constant 3 : i32
    %c2_i32_115 = arith.constant 2 : i32
    %c0_i32_116 = arith.constant 0 : i32
    %161 = tpu.memref_slice %arg5[%160, %c0_i32_116] : memref<64x128xf32, #tpu.memory_space<any>> -> memref<1x128xf32, #tpu.memory_space<any>>
    %c2_i32_117 = arith.constant 2 : i32
    %c0_i32_118 = arith.constant 0 : i32
    %162 = tpu.memref_slice %arg9[%c3_i32_114, %c2_i32_117, %c0_i32_118] : memref<5x8x128xf32, #tpu.memory_space<vmem>> -> memref<1x1x128xf32, #tpu.memory_space<vmem>>
    %163 = tpu.memref_squeeze %162 : memref<1x1x128xf32, #tpu.memory_space<vmem>> -> memref<1x128xf32, #tpu.memory_space<vmem>>
    %164 = tpu.memref_slice %arg10[%c2_i32_115] : memref<3x!tpu.dma_semaphore, #tpu.memory_space<semaphore_mem>> -> memref<1x!tpu.dma_semaphore, #tpu.memory_space<semaphore_mem>>
    %165 = tpu.memref_squeeze %164 : memref<1x!tpu.dma_semaphore, #tpu.memory_space<semaphore_mem>> -> memref<!tpu.dma_semaphore, #tpu.memory_space<semaphore_mem>>
    tpu.enqueue_dma source(%161 : memref<1x128xf32, #tpu.memory_space<any>>) target(%163 : memref<1x128xf32, #tpu.memory_space<vmem>>) target_semaphore(%165 : memref<!tpu.dma_semaphore, #tpu.memory_space<semaphore_mem>>)
    %c5_i32_119 = arith.constant 5 : i32
    %166 = arith.muli %117, %c5_i32_119 : i32
    %c4_i32_120 = arith.constant 4 : i32
    %167 = arith.addi %166, %c4_i32_120 : i32
    %168 = arith.index_cast %167 : i32 to index
    %169 = memref.load %arg3[%168] : memref<40xi32, #tpu.memory_space<smem>>
    %c4_i32_121 = arith.constant 4 : i32
    %c2_i32_122 = arith.constant 2 : i32
    %c0_i32_123 = arith.constant 0 : i32
    %170 = tpu.memref_slice %arg5[%169, %c0_i32_123] : memref<64x128xf32, #tpu.memory_space<any>> -> memref<1x128xf32, #tpu.memory_space<any>>
    %c2_i32_124 = arith.constant 2 : i32
    %c0_i32_125 = arith.constant 0 : i32
    %171 = tpu.memref_slice %arg9[%c4_i32_121, %c2_i32_124, %c0_i32_125] : memref<5x8x128xf32, #tpu.memory_space<vmem>> -> memref<1x1x128xf32, #tpu.memory_space<vmem>>
    %172 = tpu.memref_squeeze %171 : memref<1x1x128xf32, #tpu.memory_space<vmem>> -> memref<1x128xf32, #tpu.memory_space<vmem>>
    %173 = tpu.memref_slice %arg10[%c2_i32_122] : memref<3x!tpu.dma_semaphore, #tpu.memory_space<semaphore_mem>> -> memref<1x!tpu.dma_semaphore, #tpu.memory_space<semaphore_mem>>
    %174 = tpu.memref_squeeze %173 : memref<1x!tpu.dma_semaphore, #tpu.memory_space<semaphore_mem>> -> memref<!tpu.dma_semaphore, #tpu.memory_space<semaphore_mem>>
    tpu.enqueue_dma source(%170 : memref<1x128xf32, #tpu.memory_space<any>>) target(%172 : memref<1x128xf32, #tpu.memory_space<vmem>>) target_semaphore(%174 : memref<!tpu.dma_semaphore, #tpu.memory_space<semaphore_mem>>)
    %c3_i32_126 = arith.constant 3 : i32
    %175 = arith.addi %0, %c3_i32_126 : i32
    %176 = arith.index_cast %175 : i32 to index
    %177 = memref.load %arg1[%176] : memref<8xi32, #tpu.memory_space<smem>>
    %c0_i32_127 = arith.constant 0 : i32
    %c0_i32_128 = arith.constant 0 : i32
    %178 = tpu.memref_slice %arg4[%177, %c0_i32_128] : memref<64x128xf32, #tpu.memory_space<any>> -> memref<1x128xf32, #tpu.memory_space<any>>
    %c3_i32_129 = arith.constant 3 : i32
    %c0_i32_130 = arith.constant 0 : i32
    %179 = tpu.memref_slice %arg7[%c3_i32_129, %c0_i32_130] : memref<8x128xf32, #tpu.memory_space<vmem>> -> memref<1x128xf32, #tpu.memory_space<vmem>>
    %180 = tpu.memref_slice %arg10[%c0_i32_127] : memref<3x!tpu.dma_semaphore, #tpu.memory_space<semaphore_mem>> -> memref<1x!tpu.dma_semaphore, #tpu.memory_space<semaphore_mem>>
    %181 = tpu.memref_squeeze %180 : memref<1x!tpu.dma_semaphore, #tpu.memory_space<semaphore_mem>> -> memref<!tpu.dma_semaphore, #tpu.memory_space<semaphore_mem>>
    tpu.enqueue_dma source(%178 : memref<1x128xf32, #tpu.memory_space<any>>) target(%179 : memref<1x128xf32, #tpu.memory_space<vmem>>) target_semaphore(%181 : memref<!tpu.dma_semaphore, #tpu.memory_space<semaphore_mem>>)
    %182 = arith.index_cast %175 : i32 to index
    %183 = memref.load %arg2[%182] : memref<8xi32, #tpu.memory_space<smem>>
    %c1_i32_131 = arith.constant 1 : i32
    %c0_i32_132 = arith.constant 0 : i32
    %184 = tpu.memref_slice %arg5[%183, %c0_i32_132] : memref<64x128xf32, #tpu.memory_space<any>> -> memref<1x128xf32, #tpu.memory_space<any>>
    %c3_i32_133 = arith.constant 3 : i32
    %c0_i32_134 = arith.constant 0 : i32
    %185 = tpu.memref_slice %arg8[%c3_i32_133, %c0_i32_134] : memref<8x128xf32, #tpu.memory_space<vmem>> -> memref<1x128xf32, #tpu.memory_space<vmem>>
    %186 = tpu.memref_slice %arg10[%c1_i32_131] : memref<3x!tpu.dma_semaphore, #tpu.memory_space<semaphore_mem>> -> memref<1x!tpu.dma_semaphore, #tpu.memory_space<semaphore_mem>>
    %187 = tpu.memref_squeeze %186 : memref<1x!tpu.dma_semaphore, #tpu.memory_space<semaphore_mem>> -> memref<!tpu.dma_semaphore, #tpu.memory_space<semaphore_mem>>
    tpu.enqueue_dma source(%184 : memref<1x128xf32, #tpu.memory_space<any>>) target(%185 : memref<1x128xf32, #tpu.memory_space<vmem>>) target_semaphore(%187 : memref<!tpu.dma_semaphore, #tpu.memory_space<semaphore_mem>>)
    %c5_i32_135 = arith.constant 5 : i32
    %188 = arith.muli %175, %c5_i32_135 : i32
    %c0_i32_136 = arith.constant 0 : i32
    %189 = arith.addi %188, %c0_i32_136 : i32
    %190 = arith.index_cast %189 : i32 to index
    %191 = memref.load %arg3[%190] : memref<40xi32, #tpu.memory_space<smem>>
    %c0_i32_137 = arith.constant 0 : i32
    %c2_i32_138 = arith.constant 2 : i32
    %c0_i32_139 = arith.constant 0 : i32
    %192 = tpu.memref_slice %arg5[%191, %c0_i32_139] : memref<64x128xf32, #tpu.memory_space<any>> -> memref<1x128xf32, #tpu.memory_space<any>>
    %c3_i32_140 = arith.constant 3 : i32
    %c0_i32_141 = arith.constant 0 : i32
    %193 = tpu.memref_slice %arg9[%c0_i32_137, %c3_i32_140, %c0_i32_141] : memref<5x8x128xf32, #tpu.memory_space<vmem>> -> memref<1x1x128xf32, #tpu.memory_space<vmem>>
    %194 = tpu.memref_squeeze %193 : memref<1x1x128xf32, #tpu.memory_space<vmem>> -> memref<1x128xf32, #tpu.memory_space<vmem>>
    %195 = tpu.memref_slice %arg10[%c2_i32_138] : memref<3x!tpu.dma_semaphore, #tpu.memory_space<semaphore_mem>> -> memref<1x!tpu.dma_semaphore, #tpu.memory_space<semaphore_mem>>
    %196 = tpu.memref_squeeze %195 : memref<1x!tpu.dma_semaphore, #tpu.memory_space<semaphore_mem>> -> memref<!tpu.dma_semaphore, #tpu.memory_space<semaphore_mem>>
    tpu.enqueue_dma source(%192 : memref<1x128xf32, #tpu.memory_space<any>>) target(%194 : memref<1x128xf32, #tpu.memory_space<vmem>>) target_semaphore(%196 : memref<!tpu.dma_semaphore, #tpu.memory_space<semaphore_mem>>)
    %c5_i32_142 = arith.constant 5 : i32
    %197 = arith.muli %175, %c5_i32_142 : i32
    %c1_i32_143 = arith.constant 1 : i32
    %198 = arith.addi %197, %c1_i32_143 : i32
    %199 = arith.index_cast %198 : i32 to index
    %200 = memref.load %arg3[%199] : memref<40xi32, #tpu.memory_space<smem>>
    %c1_i32_144 = arith.constant 1 : i32
    %c2_i32_145 = arith.constant 2 : i32
    %c0_i32_146 = arith.constant 0 : i32
    %201 = tpu.memref_slice %arg5[%200, %c0_i32_146] : memref<64x128xf32, #tpu.memory_space<any>> -> memref<1x128xf32, #tpu.memory_space<any>>
    %c3_i32_147 = arith.constant 3 : i32
    %c0_i32_148 = arith.constant 0 : i32
    %202 = tpu.memref_slice %arg9[%c1_i32_144, %c3_i32_147, %c0_i32_148] : memref<5x8x128xf32, #tpu.memory_space<vmem>> -> memref<1x1x128xf32, #tpu.memory_space<vmem>>
    %203 = tpu.memref_squeeze %202 : memref<1x1x128xf32, #tpu.memory_space<vmem>> -> memref<1x128xf32, #tpu.memory_space<vmem>>
    %204 = tpu.memref_slice %arg10[%c2_i32_145] : memref<3x!tpu.dma_semaphore, #tpu.memory_space<semaphore_mem>> -> memref<1x!tpu.dma_semaphore, #tpu.memory_space<semaphore_mem>>
    %205 = tpu.memref_squeeze %204 : memref<1x!tpu.dma_semaphore, #tpu.memory_space<semaphore_mem>> -> memref<!tpu.dma_semaphore, #tpu.memory_space<semaphore_mem>>
    tpu.enqueue_dma source(%201 : memref<1x128xf32, #tpu.memory_space<any>>) target(%203 : memref<1x128xf32, #tpu.memory_space<vmem>>) target_semaphore(%205 : memref<!tpu.dma_semaphore, #tpu.memory_space<semaphore_mem>>)
    %c5_i32_149 = arith.constant 5 : i32
    %206 = arith.muli %175, %c5_i32_149 : i32
    %c2_i32_150 = arith.constant 2 : i32
    %207 = arith.addi %206, %c2_i32_150 : i32
    %208 = arith.index_cast %207 : i32 to index
    %209 = memref.load %arg3[%208] : memref<40xi32, #tpu.memory_space<smem>>
    %c2_i32_151 = arith.constant 2 : i32
    %c2_i32_152 = arith.constant 2 : i32
    %c0_i32_153 = arith.constant 0 : i32
    %210 = tpu.memref_slice %arg5[%209, %c0_i32_153] : memref<64x128xf32, #tpu.memory_space<any>> -> memref<1x128xf32, #tpu.memory_space<any>>
    %c3_i32_154 = arith.constant 3 : i32
    %c0_i32_155 = arith.constant 0 : i32
    %211 = tpu.memref_slice %arg9[%c2_i32_151, %c3_i32_154, %c0_i32_155] : memref<5x8x128xf32, #tpu.memory_space<vmem>> -> memref<1x1x128xf32, #tpu.memory_space<vmem>>
    %212 = tpu.memref_squeeze %211 : memref<1x1x128xf32, #tpu.memory_space<vmem>> -> memref<1x128xf32, #tpu.memory_space<vmem>>
    %213 = tpu.memref_slice %arg10[%c2_i32_152] : memref<3x!tpu.dma_semaphore, #tpu.memory_space<semaphore_mem>> -> memref<1x!tpu.dma_semaphore, #tpu.memory_space<semaphore_mem>>
    %214 = tpu.memref_squeeze %213 : memref<1x!tpu.dma_semaphore, #tpu.memory_space<semaphore_mem>> -> memref<!tpu.dma_semaphore, #tpu.memory_space<semaphore_mem>>
    tpu.enqueue_dma source(%210 : memref<1x128xf32, #tpu.memory_space<any>>) target(%212 : memref<1x128xf32, #tpu.memory_space<vmem>>) target_semaphore(%214 : memref<!tpu.dma_semaphore, #tpu.memory_space<semaphore_mem>>)
    %c5_i32_156 = arith.constant 5 : i32
    %215 = arith.muli %175, %c5_i32_156 : i32
    %c3_i32_157 = arith.constant 3 : i32
    %216 = arith.addi %215, %c3_i32_157 : i32
    %217 = arith.index_cast %216 : i32 to index
    %218 = memref.load %arg3[%217] : memref<40xi32, #tpu.memory_space<smem>>
    %c3_i32_158 = arith.constant 3 : i32
    %c2_i32_159 = arith.constant 2 : i32
    %c0_i32_160 = arith.constant 0 : i32
    %219 = tpu.memref_slice %arg5[%218, %c0_i32_160] : memref<64x128xf32, #tpu.memory_space<any>> -> memref<1x128xf32, #tpu.memory_space<any>>
    %c3_i32_161 = arith.constant 3 : i32
    %c0_i32_162 = arith.constant 0 : i32
    %220 = tpu.memref_slice %arg9[%c3_i32_158, %c3_i32_161, %c0_i32_162] : memref<5x8x128xf32, #tpu.memory_space<vmem>> -> memref<1x1x128xf32, #tpu.memory_space<vmem>>
    %221 = tpu.memref_squeeze %220 : memref<1x1x128xf32, #tpu.memory_space<vmem>> -> memref<1x128xf32, #tpu.memory_space<vmem>>
    %222 = tpu.memref_slice %arg10[%c2_i32_159] : memref<3x!tpu.dma_semaphore, #tpu.memory_space<semaphore_mem>> -> memref<1x!tpu.dma_semaphore, #tpu.memory_space<semaphore_mem>>
    %223 = tpu.memref_squeeze %222 : memref<1x!tpu.dma_semaphore, #tpu.memory_space<semaphore_mem>> -> memref<!tpu.dma_semaphore, #tpu.memory_space<semaphore_mem>>
    tpu.enqueue_dma source(%219 : memref<1x128xf32, #tpu.memory_space<any>>) target(%221 : memref<1x128xf32, #tpu.memory_space<vmem>>) target_semaphore(%223 : memref<!tpu.dma_semaphore, #tpu.memory_space<semaphore_mem>>)
    %c5_i32_163 = arith.constant 5 : i32
    %224 = arith.muli %175, %c5_i32_163 : i32
    %c4_i32_164 = arith.constant 4 : i32
    %225 = arith.addi %224, %c4_i32_164 : i32
    %226 = arith.index_cast %225 : i32 to index
    %227 = memref.load %arg3[%226] : memref<40xi32, #tpu.memory_space<smem>>
    %c4_i32_165 = arith.constant 4 : i32
    %c2_i32_166 = arith.constant 2 : i32
    %c0_i32_167 = arith.constant 0 : i32
    %228 = tpu.memref_slice %arg5[%227, %c0_i32_167] : memref<64x128xf32, #tpu.memory_space<any>> -> memref<1x128xf32, #tpu.memory_space<any>>
    %c3_i32_168 = arith.constant 3 : i32
    %c0_i32_169 = arith.constant 0 : i32
    %229 = tpu.memref_slice %arg9[%c4_i32_165, %c3_i32_168, %c0_i32_169] : memref<5x8x128xf32, #tpu.memory_space<vmem>> -> memref<1x1x128xf32, #tpu.memory_space<vmem>>
    %230 = tpu.memref_squeeze %229 : memref<1x1x128xf32, #tpu.memory_space<vmem>> -> memref<1x128xf32, #tpu.memory_space<vmem>>
    %231 = tpu.memref_slice %arg10[%c2_i32_166] : memref<3x!tpu.dma_semaphore, #tpu.memory_space<semaphore_mem>> -> memref<1x!tpu.dma_semaphore, #tpu.memory_space<semaphore_mem>>
    %232 = tpu.memref_squeeze %231 : memref<1x!tpu.dma_semaphore, #tpu.memory_space<semaphore_mem>> -> memref<!tpu.dma_semaphore, #tpu.memory_space<semaphore_mem>>
    tpu.enqueue_dma source(%228 : memref<1x128xf32, #tpu.memory_space<any>>) target(%230 : memref<1x128xf32, #tpu.memory_space<vmem>>) target_semaphore(%232 : memref<!tpu.dma_semaphore, #tpu.memory_space<semaphore_mem>>)
    %c4_i32_170 = arith.constant 4 : i32
    %233 = arith.addi %0, %c4_i32_170 : i32
    %234 = arith.index_cast %233 : i32 to index
    %235 = memref.load %arg1[%234] : memref<8xi32, #tpu.memory_space<smem>>
    %c0_i32_171 = arith.constant 0 : i32
    %c0_i32_172 = arith.constant 0 : i32
    %236 = tpu.memref_slice %arg4[%235, %c0_i32_172] : memref<64x128xf32, #tpu.memory_space<any>> -> memref<1x128xf32, #tpu.memory_space<any>>
    %c4_i32_173 = arith.constant 4 : i32
    %c0_i32_174 = arith.constant 0 : i32
    %237 = tpu.memref_slice %arg7[%c4_i32_173, %c0_i32_174] : memref<8x128xf32, #tpu.memory_space<vmem>> -> memref<1x128xf32, #tpu.memory_space<vmem>>
    %238 = tpu.memref_slice %arg10[%c0_i32_171] : memref<3x!tpu.dma_semaphore, #tpu.memory_space<semaphore_mem>> -> memref<1x!tpu.dma_semaphore, #tpu.memory_space<semaphore_mem>>
    %239 = tpu.memref_squeeze %238 : memref<1x!tpu.dma_semaphore, #tpu.memory_space<semaphore_mem>> -> memref<!tpu.dma_semaphore, #tpu.memory_space<semaphore_mem>>
    tpu.enqueue_dma source(%236 : memref<1x128xf32, #tpu.memory_space<any>>) target(%237 : memref<1x128xf32, #tpu.memory_space<vmem>>) target_semaphore(%239 : memref<!tpu.dma_semaphore, #tpu.memory_space<semaphore_mem>>)
    %240 = arith.index_cast %233 : i32 to index
    %241 = memref.load %arg2[%240] : memref<8xi32, #tpu.memory_space<smem>>
    %c1_i32_175 = arith.constant 1 : i32
    %c0_i32_176 = arith.constant 0 : i32
    %242 = tpu.memref_slice %arg5[%241, %c0_i32_176] : memref<64x128xf32, #tpu.memory_space<any>> -> memref<1x128xf32, #tpu.memory_space<any>>
    %c4_i32_177 = arith.constant 4 : i32
    %c0_i32_178 = arith.constant 0 : i32
    %243 = tpu.memref_slice %arg8[%c4_i32_177, %c0_i32_178] : memref<8x128xf32, #tpu.memory_space<vmem>> -> memref<1x128xf32, #tpu.memory_space<vmem>>
    %244 = tpu.memref_slice %arg10[%c1_i32_175] : memref<3x!tpu.dma_semaphore, #tpu.memory_space<semaphore_mem>> -> memref<1x!tpu.dma_semaphore, #tpu.memory_space<semaphore_mem>>
    %245 = tpu.memref_squeeze %244 : memref<1x!tpu.dma_semaphore, #tpu.memory_space<semaphore_mem>> -> memref<!tpu.dma_semaphore, #tpu.memory_space<semaphore_mem>>
    tpu.enqueue_dma source(%242 : memref<1x128xf32, #tpu.memory_space<any>>) target(%243 : memref<1x128xf32, #tpu.memory_space<vmem>>) target_semaphore(%245 : memref<!tpu.dma_semaphore, #tpu.memory_space<semaphore_mem>>)
    %c5_i32_179 = arith.constant 5 : i32
    %246 = arith.muli %233, %c5_i32_179 : i32
    %c0_i32_180 = arith.constant 0 : i32
    %247 = arith.addi %246, %c0_i32_180 : i32
    %248 = arith.index_cast %247 : i32 to index
    %249 = memref.load %arg3[%248] : memref<40xi32, #tpu.memory_space<smem>>
    %c0_i32_181 = arith.constant 0 : i32
    %c2_i32_182 = arith.constant 2 : i32
    %c0_i32_183 = arith.constant 0 : i32
    %250 = tpu.memref_slice %arg5[%249, %c0_i32_183] : memref<64x128xf32, #tpu.memory_space<any>> -> memref<1x128xf32, #tpu.memory_space<any>>
    %c4_i32_184 = arith.constant 4 : i32
    %c0_i32_185 = arith.constant 0 : i32
    %251 = tpu.memref_slice %arg9[%c0_i32_181, %c4_i32_184, %c0_i32_185] : memref<5x8x128xf32, #tpu.memory_space<vmem>> -> memref<1x1x128xf32, #tpu.memory_space<vmem>>
    %252 = tpu.memref_squeeze %251 : memref<1x1x128xf32, #tpu.memory_space<vmem>> -> memref<1x128xf32, #tpu.memory_space<vmem>>
    %253 = tpu.memref_slice %arg10[%c2_i32_182] : memref<3x!tpu.dma_semaphore, #tpu.memory_space<semaphore_mem>> -> memref<1x!tpu.dma_semaphore, #tpu.memory_space<semaphore_mem>>
    %254 = tpu.memref_squeeze %253 : memref<1x!tpu.dma_semaphore, #tpu.memory_space<semaphore_mem>> -> memref<!tpu.dma_semaphore, #tpu.memory_space<semaphore_mem>>
    tpu.enqueue_dma source(%250 : memref<1x128xf32, #tpu.memory_space<any>>) target(%252 : memref<1x128xf32, #tpu.memory_space<vmem>>) target_semaphore(%254 : memref<!tpu.dma_semaphore, #tpu.memory_space<semaphore_mem>>)
    %c5_i32_186 = arith.constant 5 : i32
    %255 = arith.muli %233, %c5_i32_186 : i32
    %c1_i32_187 = arith.constant 1 : i32
    %256 = arith.addi %255, %c1_i32_187 : i32
    %257 = arith.index_cast %256 : i32 to index
    %258 = memref.load %arg3[%257] : memref<40xi32, #tpu.memory_space<smem>>
    %c1_i32_188 = arith.constant 1 : i32
    %c2_i32_189 = arith.constant 2 : i32
    %c0_i32_190 = arith.constant 0 : i32
    %259 = tpu.memref_slice %arg5[%258, %c0_i32_190] : memref<64x128xf32, #tpu.memory_space<any>> -> memref<1x128xf32, #tpu.memory_space<any>>
    %c4_i32_191 = arith.constant 4 : i32
    %c0_i32_192 = arith.constant 0 : i32
    %260 = tpu.memref_slice %arg9[%c1_i32_188, %c4_i32_191, %c0_i32_192] : memref<5x8x128xf32, #tpu.memory_space<vmem>> -> memref<1x1x128xf32, #tpu.memory_space<vmem>>
    %261 = tpu.memref_squeeze %260 : memref<1x1x128xf32, #tpu.memory_space<vmem>> -> memref<1x128xf32, #tpu.memory_space<vmem>>
    %262 = tpu.memref_slice %arg10[%c2_i32_189] : memref<3x!tpu.dma_semaphore, #tpu.memory_space<semaphore_mem>> -> memref<1x!tpu.dma_semaphore, #tpu.memory_space<semaphore_mem>>
    %263 = tpu.memref_squeeze %262 : memref<1x!tpu.dma_semaphore, #tpu.memory_space<semaphore_mem>> -> memref<!tpu.dma_semaphore, #tpu.memory_space<semaphore_mem>>
    tpu.enqueue_dma source(%259 : memref<1x128xf32, #tpu.memory_space<any>>) target(%261 : memref<1x128xf32, #tpu.memory_space<vmem>>) target_semaphore(%263 : memref<!tpu.dma_semaphore, #tpu.memory_space<semaphore_mem>>)
    %c5_i32_193 = arith.constant 5 : i32
    %264 = arith.muli %233, %c5_i32_193 : i32
    %c2_i32_194 = arith.constant 2 : i32
    %265 = arith.addi %264, %c2_i32_194 : i32
    %266 = arith.index_cast %265 : i32 to index
    %267 = memref.load %arg3[%266] : memref<40xi32, #tpu.memory_space<smem>>
    %c2_i32_195 = arith.constant 2 : i32
    %c2_i32_196 = arith.constant 2 : i32
    %c0_i32_197 = arith.constant 0 : i32
    %268 = tpu.memref_slice %arg5[%267, %c0_i32_197] : memref<64x128xf32, #tpu.memory_space<any>> -> memref<1x128xf32, #tpu.memory_space<any>>
    %c4_i32_198 = arith.constant 4 : i32
    %c0_i32_199 = arith.constant 0 : i32
    %269 = tpu.memref_slice %arg9[%c2_i32_195, %c4_i32_198, %c0_i32_199] : memref<5x8x128xf32, #tpu.memory_space<vmem>> -> memref<1x1x128xf32, #tpu.memory_space<vmem>>
    %270 = tpu.memref_squeeze %269 : memref<1x1x128xf32, #tpu.memory_space<vmem>> -> memref<1x128xf32, #tpu.memory_space<vmem>>
    %271 = tpu.memref_slice %arg10[%c2_i32_196] : memref<3x!tpu.dma_semaphore, #tpu.memory_space<semaphore_mem>> -> memref<1x!tpu.dma_semaphore, #tpu.memory_space<semaphore_mem>>
    %272 = tpu.memref_squeeze %271 : memref<1x!tpu.dma_semaphore, #tpu.memory_space<semaphore_mem>> -> memref<!tpu.dma_semaphore, #tpu.memory_space<semaphore_mem>>
    tpu.enqueue_dma source(%268 : memref<1x128xf32, #tpu.memory_space<any>>) target(%270 : memref<1x128xf32, #tpu.memory_space<vmem>>) target_semaphore(%272 : memref<!tpu.dma_semaphore, #tpu.memory_space<semaphore_mem>>)
    %c5_i32_200 = arith.constant 5 : i32
    %273 = arith.muli %233, %c5_i32_200 : i32
    %c3_i32_201 = arith.constant 3 : i32
    %274 = arith.addi %273, %c3_i32_201 : i32
    %275 = arith.index_cast %274 : i32 to index
    %276 = memref.load %arg3[%275] : memref<40xi32, #tpu.memory_space<smem>>
    %c3_i32_202 = arith.constant 3 : i32
    %c2_i32_203 = arith.constant 2 : i32
    %c0_i32_204 = arith.constant 0 : i32
    %277 = tpu.memref_slice %arg5[%276, %c0_i32_204] : memref<64x128xf32, #tpu.memory_space<any>> -> memref<1x128xf32, #tpu.memory_space<any>>
    %c4_i32_205 = arith.constant 4 : i32
    %c0_i32_206 = arith.constant 0 : i32
    %278 = tpu.memref_slice %arg9[%c3_i32_202, %c4_i32_205, %c0_i32_206] : memref<5x8x128xf32, #tpu.memory_space<vmem>> -> memref<1x1x128xf32, #tpu.memory_space<vmem>>
    %279 = tpu.memref_squeeze %278 : memref<1x1x128xf32, #tpu.memory_space<vmem>> -> memref<1x128xf32, #tpu.memory_space<vmem>>
    %280 = tpu.memref_slice %arg10[%c2_i32_203] : memref<3x!tpu.dma_semaphore, #tpu.memory_space<semaphore_mem>> -> memref<1x!tpu.dma_semaphore, #tpu.memory_space<semaphore_mem>>
    %281 = tpu.memref_squeeze %280 : memref<1x!tpu.dma_semaphore, #tpu.memory_space<semaphore_mem>> -> memref<!tpu.dma_semaphore, #tpu.memory_space<semaphore_mem>>
    tpu.enqueue_dma source(%277 : memref<1x128xf32, #tpu.memory_space<any>>) target(%279 : memref<1x128xf32, #tpu.memory_space<vmem>>) target_semaphore(%281 : memref<!tpu.dma_semaphore, #tpu.memory_space<semaphore_mem>>)
    %c5_i32_207 = arith.constant 5 : i32
    %282 = arith.muli %233, %c5_i32_207 : i32
    %c4_i32_208 = arith.constant 4 : i32
    %283 = arith.addi %282, %c4_i32_208 : i32
    %284 = arith.index_cast %283 : i32 to index
    %285 = memref.load %arg3[%284] : memref<40xi32, #tpu.memory_space<smem>>
    %c4_i32_209 = arith.constant 4 : i32
    %c2_i32_210 = arith.constant 2 : i32
    %c0_i32_211 = arith.constant 0 : i32
    %286 = tpu.memref_slice %arg5[%285, %c0_i32_211] : memref<64x128xf32, #tpu.memory_space<any>> -> memref<1x128xf32, #tpu.memory_space<any>>
    %c4_i32_212 = arith.constant 4 : i32
    %c0_i32_213 = arith.constant 0 : i32
    %287 = tpu.memref_slice %arg9[%c4_i32_209, %c4_i32_212, %c0_i32_213] : memref<5x8x128xf32, #tpu.memory_space<vmem>> -> memref<1x1x128xf32, #tpu.memory_space<vmem>>
    %288 = tpu.memref_squeeze %287 : memref<1x1x128xf32, #tpu.memory_space<vmem>> -> memref<1x128xf32, #tpu.memory_space<vmem>>
    %289 = tpu.memref_slice %arg10[%c2_i32_210] : memref<3x!tpu.dma_semaphore, #tpu.memory_space<semaphore_mem>> -> memref<1x!tpu.dma_semaphore, #tpu.memory_space<semaphore_mem>>
    %290 = tpu.memref_squeeze %289 : memref<1x!tpu.dma_semaphore, #tpu.memory_space<semaphore_mem>> -> memref<!tpu.dma_semaphore, #tpu.memory_space<semaphore_mem>>
    tpu.enqueue_dma source(%286 : memref<1x128xf32, #tpu.memory_space<any>>) target(%288 : memref<1x128xf32, #tpu.memory_space<vmem>>) target_semaphore(%290 : memref<!tpu.dma_semaphore, #tpu.memory_space<semaphore_mem>>)
    %c5_i32_214 = arith.constant 5 : i32
    %291 = arith.addi %0, %c5_i32_214 : i32
    %292 = arith.index_cast %291 : i32 to index
    %293 = memref.load %arg1[%292] : memref<8xi32, #tpu.memory_space<smem>>
    %c0_i32_215 = arith.constant 0 : i32
    %c0_i32_216 = arith.constant 0 : i32
    %294 = tpu.memref_slice %arg4[%293, %c0_i32_216] : memref<64x128xf32, #tpu.memory_space<any>> -> memref<1x128xf32, #tpu.memory_space<any>>
    %c5_i32_217 = arith.constant 5 : i32
    %c0_i32_218 = arith.constant 0 : i32
    %295 = tpu.memref_slice %arg7[%c5_i32_217, %c0_i32_218] : memref<8x128xf32, #tpu.memory_space<vmem>> -> memref<1x128xf32, #tpu.memory_space<vmem>>
    %296 = tpu.memref_slice %arg10[%c0_i32_215] : memref<3x!tpu.dma_semaphore, #tpu.memory_space<semaphore_mem>> -> memref<1x!tpu.dma_semaphore, #tpu.memory_space<semaphore_mem>>
    %297 = tpu.memref_squeeze %296 : memref<1x!tpu.dma_semaphore, #tpu.memory_space<semaphore_mem>> -> memref<!tpu.dma_semaphore, #tpu.memory_space<semaphore_mem>>
    tpu.enqueue_dma source(%294 : memref<1x128xf32, #tpu.memory_space<any>>) target(%295 : memref<1x128xf32, #tpu.memory_space<vmem>>) target_semaphore(%297 : memref<!tpu.dma_semaphore, #tpu.memory_space<semaphore_mem>>)
    %298 = arith.index_cast %291 : i32 to index
    %299 = memref.load %arg2[%298] : memref<8xi32, #tpu.memory_space<smem>>
    %c1_i32_219 = arith.constant 1 : i32
    %c0_i32_220 = arith.constant 0 : i32
    %300 = tpu.memref_slice %arg5[%299, %c0_i32_220] : memref<64x128xf32, #tpu.memory_space<any>> -> memref<1x128xf32, #tpu.memory_space<any>>
    %c5_i32_221 = arith.constant 5 : i32
    %c0_i32_222 = arith.constant 0 : i32
    %301 = tpu.memref_slice %arg8[%c5_i32_221, %c0_i32_222] : memref<8x128xf32, #tpu.memory_space<vmem>> -> memref<1x128xf32, #tpu.memory_space<vmem>>
    %302 = tpu.memref_slice %arg10[%c1_i32_219] : memref<3x!tpu.dma_semaphore, #tpu.memory_space<semaphore_mem>> -> memref<1x!tpu.dma_semaphore, #tpu.memory_space<semaphore_mem>>
    %303 = tpu.memref_squeeze %302 : memref<1x!tpu.dma_semaphore, #tpu.memory_space<semaphore_mem>> -> memref<!tpu.dma_semaphore, #tpu.memory_space<semaphore_mem>>
    tpu.enqueue_dma source(%300 : memref<1x128xf32, #tpu.memory_space<any>>) target(%301 : memref<1x128xf32, #tpu.memory_space<vmem>>) target_semaphore(%303 : memref<!tpu.dma_semaphore, #tpu.memory_space<semaphore_mem>>)
    %c5_i32_223 = arith.constant 5 : i32
    %304 = arith.muli %291, %c5_i32_223 : i32
    %c0_i32_224 = arith.constant 0 : i32
    %305 = arith.addi %304, %c0_i32_224 : i32
    %306 = arith.index_cast %305 : i32 to index
    %307 = memref.load %arg3[%306] : memref<40xi32, #tpu.memory_space<smem>>
    %c0_i32_225 = arith.constant 0 : i32
    %c2_i32_226 = arith.constant 2 : i32
    %c0_i32_227 = arith.constant 0 : i32
    %308 = tpu.memref_slice %arg5[%307, %c0_i32_227] : memref<64x128xf32, #tpu.memory_space<any>> -> memref<1x128xf32, #tpu.memory_space<any>>
    %c5_i32_228 = arith.constant 5 : i32
    %c0_i32_229 = arith.constant 0 : i32
    %309 = tpu.memref_slice %arg9[%c0_i32_225, %c5_i32_228, %c0_i32_229] : memref<5x8x128xf32, #tpu.memory_space<vmem>> -> memref<1x1x128xf32, #tpu.memory_space<vmem>>
    %310 = tpu.memref_squeeze %309 : memref<1x1x128xf32, #tpu.memory_space<vmem>> -> memref<1x128xf32, #tpu.memory_space<vmem>>
    %311 = tpu.memref_slice %arg10[%c2_i32_226] : memref<3x!tpu.dma_semaphore, #tpu.memory_space<semaphore_mem>> -> memref<1x!tpu.dma_semaphore, #tpu.memory_space<semaphore_mem>>
    %312 = tpu.memref_squeeze %311 : memref<1x!tpu.dma_semaphore, #tpu.memory_space<semaphore_mem>> -> memref<!tpu.dma_semaphore, #tpu.memory_space<semaphore_mem>>
    tpu.enqueue_dma source(%308 : memref<1x128xf32, #tpu.memory_space<any>>) target(%310 : memref<1x128xf32, #tpu.memory_space<vmem>>) target_semaphore(%312 : memref<!tpu.dma_semaphore, #tpu.memory_space<semaphore_mem>>)
    %c5_i32_230 = arith.constant 5 : i32
    %313 = arith.muli %291, %c5_i32_230 : i32
    %c1_i32_231 = arith.constant 1 : i32
    %314 = arith.addi %313, %c1_i32_231 : i32
    %315 = arith.index_cast %314 : i32 to index
    %316 = memref.load %arg3[%315] : memref<40xi32, #tpu.memory_space<smem>>
    %c1_i32_232 = arith.constant 1 : i32
    %c2_i32_233 = arith.constant 2 : i32
    %c0_i32_234 = arith.constant 0 : i32
    %317 = tpu.memref_slice %arg5[%316, %c0_i32_234] : memref<64x128xf32, #tpu.memory_space<any>> -> memref<1x128xf32, #tpu.memory_space<any>>
    %c5_i32_235 = arith.constant 5 : i32
    %c0_i32_236 = arith.constant 0 : i32
    %318 = tpu.memref_slice %arg9[%c1_i32_232, %c5_i32_235, %c0_i32_236] : memref<5x8x128xf32, #tpu.memory_space<vmem>> -> memref<1x1x128xf32, #tpu.memory_space<vmem>>
    %319 = tpu.memref_squeeze %318 : memref<1x1x128xf32, #tpu.memory_space<vmem>> -> memref<1x128xf32, #tpu.memory_space<vmem>>
    %320 = tpu.memref_slice %arg10[%c2_i32_233] : memref<3x!tpu.dma_semaphore, #tpu.memory_space<semaphore_mem>> -> memref<1x!tpu.dma_semaphore, #tpu.memory_space<semaphore_mem>>
    %321 = tpu.memref_squeeze %320 : memref<1x!tpu.dma_semaphore, #tpu.memory_space<semaphore_mem>> -> memref<!tpu.dma_semaphore, #tpu.memory_space<semaphore_mem>>
    tpu.enqueue_dma source(%317 : memref<1x128xf32, #tpu.memory_space<any>>) target(%319 : memref<1x128xf32, #tpu.memory_space<vmem>>) target_semaphore(%321 : memref<!tpu.dma_semaphore, #tpu.memory_space<semaphore_mem>>)
    %c5_i32_237 = arith.constant 5 : i32
    %322 = arith.muli %291, %c5_i32_237 : i32
    %c2_i32_238 = arith.constant 2 : i32
    %323 = arith.addi %322, %c2_i32_238 : i32
    %324 = arith.index_cast %323 : i32 to index
    %325 = memref.load %arg3[%324] : memref<40xi32, #tpu.memory_space<smem>>
    %c2_i32_239 = arith.constant 2 : i32
    %c2_i32_240 = arith.constant 2 : i32
    %c0_i32_241 = arith.constant 0 : i32
    %326 = tpu.memref_slice %arg5[%325, %c0_i32_241] : memref<64x128xf32, #tpu.memory_space<any>> -> memref<1x128xf32, #tpu.memory_space<any>>
    %c5_i32_242 = arith.constant 5 : i32
    %c0_i32_243 = arith.constant 0 : i32
    %327 = tpu.memref_slice %arg9[%c2_i32_239, %c5_i32_242, %c0_i32_243] : memref<5x8x128xf32, #tpu.memory_space<vmem>> -> memref<1x1x128xf32, #tpu.memory_space<vmem>>
    %328 = tpu.memref_squeeze %327 : memref<1x1x128xf32, #tpu.memory_space<vmem>> -> memref<1x128xf32, #tpu.memory_space<vmem>>
    %329 = tpu.memref_slice %arg10[%c2_i32_240] : memref<3x!tpu.dma_semaphore, #tpu.memory_space<semaphore_mem>> -> memref<1x!tpu.dma_semaphore, #tpu.memory_space<semaphore_mem>>
    %330 = tpu.memref_squeeze %329 : memref<1x!tpu.dma_semaphore, #tpu.memory_space<semaphore_mem>> -> memref<!tpu.dma_semaphore, #tpu.memory_space<semaphore_mem>>
    tpu.enqueue_dma source(%326 : memref<1x128xf32, #tpu.memory_space<any>>) target(%328 : memref<1x128xf32, #tpu.memory_space<vmem>>) target_semaphore(%330 : memref<!tpu.dma_semaphore, #tpu.memory_space<semaphore_mem>>)
    %c5_i32_244 = arith.constant 5 : i32
    %331 = arith.muli %291, %c5_i32_244 : i32
    %c3_i32_245 = arith.constant 3 : i32
    %332 = arith.addi %331, %c3_i32_245 : i32
    %333 = arith.index_cast %332 : i32 to index
    %334 = memref.load %arg3[%333] : memref<40xi32, #tpu.memory_space<smem>>
    %c3_i32_246 = arith.constant 3 : i32
    %c2_i32_247 = arith.constant 2 : i32
    %c0_i32_248 = arith.constant 0 : i32
    %335 = tpu.memref_slice %arg5[%334, %c0_i32_248] : memref<64x128xf32, #tpu.memory_space<any>> -> memref<1x128xf32, #tpu.memory_space<any>>
    %c5_i32_249 = arith.constant 5 : i32
    %c0_i32_250 = arith.constant 0 : i32
    %336 = tpu.memref_slice %arg9[%c3_i32_246, %c5_i32_249, %c0_i32_250] : memref<5x8x128xf32, #tpu.memory_space<vmem>> -> memref<1x1x128xf32, #tpu.memory_space<vmem>>
    %337 = tpu.memref_squeeze %336 : memref<1x1x128xf32, #tpu.memory_space<vmem>> -> memref<1x128xf32, #tpu.memory_space<vmem>>
    %338 = tpu.memref_slice %arg10[%c2_i32_247] : memref<3x!tpu.dma_semaphore, #tpu.memory_space<semaphore_mem>> -> memref<1x!tpu.dma_semaphore, #tpu.memory_space<semaphore_mem>>
    %339 = tpu.memref_squeeze %338 : memref<1x!tpu.dma_semaphore, #tpu.memory_space<semaphore_mem>> -> memref<!tpu.dma_semaphore, #tpu.memory_space<semaphore_mem>>
    tpu.enqueue_dma source(%335 : memref<1x128xf32, #tpu.memory_space<any>>) target(%337 : memref<1x128xf32, #tpu.memory_space<vmem>>) target_semaphore(%339 : memref<!tpu.dma_semaphore, #tpu.memory_space<semaphore_mem>>)
    %c5_i32_251 = arith.constant 5 : i32
    %340 = arith.muli %291, %c5_i32_251 : i32
    %c4_i32_252 = arith.constant 4 : i32
    %341 = arith.addi %340, %c4_i32_252 : i32
    %342 = arith.index_cast %341 : i32 to index
    %343 = memref.load %arg3[%342] : memref<40xi32, #tpu.memory_space<smem>>
    %c4_i32_253 = arith.constant 4 : i32
    %c2_i32_254 = arith.constant 2 : i32
    %c0_i32_255 = arith.constant 0 : i32
    %344 = tpu.memref_slice %arg5[%343, %c0_i32_255] : memref<64x128xf32, #tpu.memory_space<any>> -> memref<1x128xf32, #tpu.memory_space<any>>
    %c5_i32_256 = arith.constant 5 : i32
    %c0_i32_257 = arith.constant 0 : i32
    %345 = tpu.memref_slice %arg9[%c4_i32_253, %c5_i32_256, %c0_i32_257] : memref<5x8x128xf32, #tpu.memory_space<vmem>> -> memref<1x1x128xf32, #tpu.memory_space<vmem>>
    %346 = tpu.memref_squeeze %345 : memref<1x1x128xf32, #tpu.memory_space<vmem>> -> memref<1x128xf32, #tpu.memory_space<vmem>>
    %347 = tpu.memref_slice %arg10[%c2_i32_254] : memref<3x!tpu.dma_semaphore, #tpu.memory_space<semaphore_mem>> -> memref<1x!tpu.dma_semaphore, #tpu.memory_space<semaphore_mem>>
    %348 = tpu.memref_squeeze %347 : memref<1x!tpu.dma_semaphore, #tpu.memory_space<semaphore_mem>> -> memref<!tpu.dma_semaphore, #tpu.memory_space<semaphore_mem>>
    tpu.enqueue_dma source(%344 : memref<1x128xf32, #tpu.memory_space<any>>) target(%346 : memref<1x128xf32, #tpu.memory_space<vmem>>) target_semaphore(%348 : memref<!tpu.dma_semaphore, #tpu.memory_space<semaphore_mem>>)
    %c6_i32 = arith.constant 6 : i32
    %349 = arith.addi %0, %c6_i32 : i32
    %350 = arith.index_cast %349 : i32 to index
    %351 = memref.load %arg1[%350] : memref<8xi32, #tpu.memory_space<smem>>
    %c0_i32_258 = arith.constant 0 : i32
    %c0_i32_259 = arith.constant 0 : i32
    %352 = tpu.memref_slice %arg4[%351, %c0_i32_259] : memref<64x128xf32, #tpu.memory_space<any>> -> memref<1x128xf32, #tpu.memory_space<any>>
    %c6_i32_260 = arith.constant 6 : i32
    %c0_i32_261 = arith.constant 0 : i32
    %353 = tpu.memref_slice %arg7[%c6_i32_260, %c0_i32_261] : memref<8x128xf32, #tpu.memory_space<vmem>> -> memref<1x128xf32, #tpu.memory_space<vmem>>
    %354 = tpu.memref_slice %arg10[%c0_i32_258] : memref<3x!tpu.dma_semaphore, #tpu.memory_space<semaphore_mem>> -> memref<1x!tpu.dma_semaphore, #tpu.memory_space<semaphore_mem>>
    %355 = tpu.memref_squeeze %354 : memref<1x!tpu.dma_semaphore, #tpu.memory_space<semaphore_mem>> -> memref<!tpu.dma_semaphore, #tpu.memory_space<semaphore_mem>>
    tpu.enqueue_dma source(%352 : memref<1x128xf32, #tpu.memory_space<any>>) target(%353 : memref<1x128xf32, #tpu.memory_space<vmem>>) target_semaphore(%355 : memref<!tpu.dma_semaphore, #tpu.memory_space<semaphore_mem>>)
    %356 = arith.index_cast %349 : i32 to index
    %357 = memref.load %arg2[%356] : memref<8xi32, #tpu.memory_space<smem>>
    %c1_i32_262 = arith.constant 1 : i32
    %c0_i32_263 = arith.constant 0 : i32
    %358 = tpu.memref_slice %arg5[%357, %c0_i32_263] : memref<64x128xf32, #tpu.memory_space<any>> -> memref<1x128xf32, #tpu.memory_space<any>>
    %c6_i32_264 = arith.constant 6 : i32
    %c0_i32_265 = arith.constant 0 : i32
    %359 = tpu.memref_slice %arg8[%c6_i32_264, %c0_i32_265] : memref<8x128xf32, #tpu.memory_space<vmem>> -> memref<1x128xf32, #tpu.memory_space<vmem>>
    %360 = tpu.memref_slice %arg10[%c1_i32_262] : memref<3x!tpu.dma_semaphore, #tpu.memory_space<semaphore_mem>> -> memref<1x!tpu.dma_semaphore, #tpu.memory_space<semaphore_mem>>
    %361 = tpu.memref_squeeze %360 : memref<1x!tpu.dma_semaphore, #tpu.memory_space<semaphore_mem>> -> memref<!tpu.dma_semaphore, #tpu.memory_space<semaphore_mem>>
    tpu.enqueue_dma source(%358 : memref<1x128xf32, #tpu.memory_space<any>>) target(%359 : memref<1x128xf32, #tpu.memory_space<vmem>>) target_semaphore(%361 : memref<!tpu.dma_semaphore, #tpu.memory_space<semaphore_mem>>)
    %c5_i32_266 = arith.constant 5 : i32
    %362 = arith.muli %349, %c5_i32_266 : i32
    %c0_i32_267 = arith.constant 0 : i32
    %363 = arith.addi %362, %c0_i32_267 : i32
    %364 = arith.index_cast %363 : i32 to index
    %365 = memref.load %arg3[%364] : memref<40xi32, #tpu.memory_space<smem>>
    %c0_i32_268 = arith.constant 0 : i32
    %c2_i32_269 = arith.constant 2 : i32
    %c0_i32_270 = arith.constant 0 : i32
    %366 = tpu.memref_slice %arg5[%365, %c0_i32_270] : memref<64x128xf32, #tpu.memory_space<any>> -> memref<1x128xf32, #tpu.memory_space<any>>
    %c6_i32_271 = arith.constant 6 : i32
    %c0_i32_272 = arith.constant 0 : i32
    %367 = tpu.memref_slice %arg9[%c0_i32_268, %c6_i32_271, %c0_i32_272] : memref<5x8x128xf32, #tpu.memory_space<vmem>> -> memref<1x1x128xf32, #tpu.memory_space<vmem>>
    %368 = tpu.memref_squeeze %367 : memref<1x1x128xf32, #tpu.memory_space<vmem>> -> memref<1x128xf32, #tpu.memory_space<vmem>>
    %369 = tpu.memref_slice %arg10[%c2_i32_269] : memref<3x!tpu.dma_semaphore, #tpu.memory_space<semaphore_mem>> -> memref<1x!tpu.dma_semaphore, #tpu.memory_space<semaphore_mem>>
    %370 = tpu.memref_squeeze %369 : memref<1x!tpu.dma_semaphore, #tpu.memory_space<semaphore_mem>> -> memref<!tpu.dma_semaphore, #tpu.memory_space<semaphore_mem>>
    tpu.enqueue_dma source(%366 : memref<1x128xf32, #tpu.memory_space<any>>) target(%368 : memref<1x128xf32, #tpu.memory_space<vmem>>) target_semaphore(%370 : memref<!tpu.dma_semaphore, #tpu.memory_space<semaphore_mem>>)
    %c5_i32_273 = arith.constant 5 : i32
    %371 = arith.muli %349, %c5_i32_273 : i32
    %c1_i32_274 = arith.constant 1 : i32
    %372 = arith.addi %371, %c1_i32_274 : i32
    %373 = arith.index_cast %372 : i32 to index
    %374 = memref.load %arg3[%373] : memref<40xi32, #tpu.memory_space<smem>>
    %c1_i32_275 = arith.constant 1 : i32
    %c2_i32_276 = arith.constant 2 : i32
    %c0_i32_277 = arith.constant 0 : i32
    %375 = tpu.memref_slice %arg5[%374, %c0_i32_277] : memref<64x128xf32, #tpu.memory_space<any>> -> memref<1x128xf32, #tpu.memory_space<any>>
    %c6_i32_278 = arith.constant 6 : i32
    %c0_i32_279 = arith.constant 0 : i32
    %376 = tpu.memref_slice %arg9[%c1_i32_275, %c6_i32_278, %c0_i32_279] : memref<5x8x128xf32, #tpu.memory_space<vmem>> -> memref<1x1x128xf32, #tpu.memory_space<vmem>>
    %377 = tpu.memref_squeeze %376 : memref<1x1x128xf32, #tpu.memory_space<vmem>> -> memref<1x128xf32, #tpu.memory_space<vmem>>
    %378 = tpu.memref_slice %arg10[%c2_i32_276] : memref<3x!tpu.dma_semaphore, #tpu.memory_space<semaphore_mem>> -> memref<1x!tpu.dma_semaphore, #tpu.memory_space<semaphore_mem>>
    %379 = tpu.memref_squeeze %378 : memref<1x!tpu.dma_semaphore, #tpu.memory_space<semaphore_mem>> -> memref<!tpu.dma_semaphore, #tpu.memory_space<semaphore_mem>>
    tpu.enqueue_dma source(%375 : memref<1x128xf32, #tpu.memory_space<any>>) target(%377 : memref<1x128xf32, #tpu.memory_space<vmem>>) target_semaphore(%379 : memref<!tpu.dma_semaphore, #tpu.memory_space<semaphore_mem>>)
    %c5_i32_280 = arith.constant 5 : i32
    %380 = arith.muli %349, %c5_i32_280 : i32
    %c2_i32_281 = arith.constant 2 : i32
    %381 = arith.addi %380, %c2_i32_281 : i32
    %382 = arith.index_cast %381 : i32 to index
    %383 = memref.load %arg3[%382] : memref<40xi32, #tpu.memory_space<smem>>
    %c2_i32_282 = arith.constant 2 : i32
    %c2_i32_283 = arith.constant 2 : i32
    %c0_i32_284 = arith.constant 0 : i32
    %384 = tpu.memref_slice %arg5[%383, %c0_i32_284] : memref<64x128xf32, #tpu.memory_space<any>> -> memref<1x128xf32, #tpu.memory_space<any>>
    %c6_i32_285 = arith.constant 6 : i32
    %c0_i32_286 = arith.constant 0 : i32
    %385 = tpu.memref_slice %arg9[%c2_i32_282, %c6_i32_285, %c0_i32_286] : memref<5x8x128xf32, #tpu.memory_space<vmem>> -> memref<1x1x128xf32, #tpu.memory_space<vmem>>
    %386 = tpu.memref_squeeze %385 : memref<1x1x128xf32, #tpu.memory_space<vmem>> -> memref<1x128xf32, #tpu.memory_space<vmem>>
    %387 = tpu.memref_slice %arg10[%c2_i32_283] : memref<3x!tpu.dma_semaphore, #tpu.memory_space<semaphore_mem>> -> memref<1x!tpu.dma_semaphore, #tpu.memory_space<semaphore_mem>>
    %388 = tpu.memref_squeeze %387 : memref<1x!tpu.dma_semaphore, #tpu.memory_space<semaphore_mem>> -> memref<!tpu.dma_semaphore, #tpu.memory_space<semaphore_mem>>
    tpu.enqueue_dma source(%384 : memref<1x128xf32, #tpu.memory_space<any>>) target(%386 : memref<1x128xf32, #tpu.memory_space<vmem>>) target_semaphore(%388 : memref<!tpu.dma_semaphore, #tpu.memory_space<semaphore_mem>>)
    %c5_i32_287 = arith.constant 5 : i32
    %389 = arith.muli %349, %c5_i32_287 : i32
    %c3_i32_288 = arith.constant 3 : i32
    %390 = arith.addi %389, %c3_i32_288 : i32
    %391 = arith.index_cast %390 : i32 to index
    %392 = memref.load %arg3[%391] : memref<40xi32, #tpu.memory_space<smem>>
    %c3_i32_289 = arith.constant 3 : i32
    %c2_i32_290 = arith.constant 2 : i32
    %c0_i32_291 = arith.constant 0 : i32
    %393 = tpu.memref_slice %arg5[%392, %c0_i32_291] : memref<64x128xf32, #tpu.memory_space<any>> -> memref<1x128xf32, #tpu.memory_space<any>>
    %c6_i32_292 = arith.constant 6 : i32
    %c0_i32_293 = arith.constant 0 : i32
    %394 = tpu.memref_slice %arg9[%c3_i32_289, %c6_i32_292, %c0_i32_293] : memref<5x8x128xf32, #tpu.memory_space<vmem>> -> memref<1x1x128xf32, #tpu.memory_space<vmem>>
    %395 = tpu.memref_squeeze %394 : memref<1x1x128xf32, #tpu.memory_space<vmem>> -> memref<1x128xf32, #tpu.memory_space<vmem>>
    %396 = tpu.memref_slice %arg10[%c2_i32_290] : memref<3x!tpu.dma_semaphore, #tpu.memory_space<semaphore_mem>> -> memref<1x!tpu.dma_semaphore, #tpu.memory_space<semaphore_mem>>
    %397 = tpu.memref_squeeze %396 : memref<1x!tpu.dma_semaphore, #tpu.memory_space<semaphore_mem>> -> memref<!tpu.dma_semaphore, #tpu.memory_space<semaphore_mem>>
    tpu.enqueue_dma source(%393 : memref<1x128xf32, #tpu.memory_space<any>>) target(%395 : memref<1x128xf32, #tpu.memory_space<vmem>>) target_semaphore(%397 : memref<!tpu.dma_semaphore, #tpu.memory_space<semaphore_mem>>)
    %c5_i32_294 = arith.constant 5 : i32
    %398 = arith.muli %349, %c5_i32_294 : i32
    %c4_i32_295 = arith.constant 4 : i32
    %399 = arith.addi %398, %c4_i32_295 : i32
    %400 = arith.index_cast %399 : i32 to index
    %401 = memref.load %arg3[%400] : memref<40xi32, #tpu.memory_space<smem>>
    %c4_i32_296 = arith.constant 4 : i32
    %c2_i32_297 = arith.constant 2 : i32
    %c0_i32_298 = arith.constant 0 : i32
    %402 = tpu.memref_slice %arg5[%401, %c0_i32_298] : memref<64x128xf32, #tpu.memory_space<any>> -> memref<1x128xf32, #tpu.memory_space<any>>
    %c6_i32_299 = arith.constant 6 : i32
    %c0_i32_300 = arith.constant 0 : i32
    %403 = tpu.memref_slice %arg9[%c4_i32_296, %c6_i32_299, %c0_i32_300] : memref<5x8x128xf32, #tpu.memory_space<vmem>> -> memref<1x1x128xf32, #tpu.memory_space<vmem>>
    %404 = tpu.memref_squeeze %403 : memref<1x1x128xf32, #tpu.memory_space<vmem>> -> memref<1x128xf32, #tpu.memory_space<vmem>>
    %405 = tpu.memref_slice %arg10[%c2_i32_297] : memref<3x!tpu.dma_semaphore, #tpu.memory_space<semaphore_mem>> -> memref<1x!tpu.dma_semaphore, #tpu.memory_space<semaphore_mem>>
    %406 = tpu.memref_squeeze %405 : memref<1x!tpu.dma_semaphore, #tpu.memory_space<semaphore_mem>> -> memref<!tpu.dma_semaphore, #tpu.memory_space<semaphore_mem>>
    tpu.enqueue_dma source(%402 : memref<1x128xf32, #tpu.memory_space<any>>) target(%404 : memref<1x128xf32, #tpu.memory_space<vmem>>) target_semaphore(%406 : memref<!tpu.dma_semaphore, #tpu.memory_space<semaphore_mem>>)
    %c7_i32 = arith.constant 7 : i32
    %407 = arith.addi %0, %c7_i32 : i32
    %408 = arith.index_cast %407 : i32 to index
    %409 = memref.load %arg1[%408] : memref<8xi32, #tpu.memory_space<smem>>
    %c0_i32_301 = arith.constant 0 : i32
    %c0_i32_302 = arith.constant 0 : i32
    %410 = tpu.memref_slice %arg4[%409, %c0_i32_302] : memref<64x128xf32, #tpu.memory_space<any>> -> memref<1x128xf32, #tpu.memory_space<any>>
    %c7_i32_303 = arith.constant 7 : i32
    %c0_i32_304 = arith.constant 0 : i32
    %411 = tpu.memref_slice %arg7[%c7_i32_303, %c0_i32_304] : memref<8x128xf32, #tpu.memory_space<vmem>> -> memref<1x128xf32, #tpu.memory_space<vmem>>
    %412 = tpu.memref_slice %arg10[%c0_i32_301] : memref<3x!tpu.dma_semaphore, #tpu.memory_space<semaphore_mem>> -> memref<1x!tpu.dma_semaphore, #tpu.memory_space<semaphore_mem>>
    %413 = tpu.memref_squeeze %412 : memref<1x!tpu.dma_semaphore, #tpu.memory_space<semaphore_mem>> -> memref<!tpu.dma_semaphore, #tpu.memory_space<semaphore_mem>>
    tpu.enqueue_dma source(%410 : memref<1x128xf32, #tpu.memory_space<any>>) target(%411 : memref<1x128xf32, #tpu.memory_space<vmem>>) target_semaphore(%413 : memref<!tpu.dma_semaphore, #tpu.memory_space<semaphore_mem>>)
    %414 = arith.index_cast %407 : i32 to index
    %415 = memref.load %arg2[%414] : memref<8xi32, #tpu.memory_space<smem>>
    %c1_i32_305 = arith.constant 1 : i32
    %c0_i32_306 = arith.constant 0 : i32
    %416 = tpu.memref_slice %arg5[%415, %c0_i32_306] : memref<64x128xf32, #tpu.memory_space<any>> -> memref<1x128xf32, #tpu.memory_space<any>>
    %c7_i32_307 = arith.constant 7 : i32
    %c0_i32_308 = arith.constant 0 : i32
    %417 = tpu.memref_slice %arg8[%c7_i32_307, %c0_i32_308] : memref<8x128xf32, #tpu.memory_space<vmem>> -> memref<1x128xf32, #tpu.memory_space<vmem>>
    %418 = tpu.memref_slice %arg10[%c1_i32_305] : memref<3x!tpu.dma_semaphore, #tpu.memory_space<semaphore_mem>> -> memref<1x!tpu.dma_semaphore, #tpu.memory_space<semaphore_mem>>
    %419 = tpu.memref_squeeze %418 : memref<1x!tpu.dma_semaphore, #tpu.memory_space<semaphore_mem>> -> memref<!tpu.dma_semaphore, #tpu.memory_space<semaphore_mem>>
    tpu.enqueue_dma source(%416 : memref<1x128xf32, #tpu.memory_space<any>>) target(%417 : memref<1x128xf32, #tpu.memory_space<vmem>>) target_semaphore(%419 : memref<!tpu.dma_semaphore, #tpu.memory_space<semaphore_mem>>)
    %c5_i32_309 = arith.constant 5 : i32
    %420 = arith.muli %407, %c5_i32_309 : i32
    %c0_i32_310 = arith.constant 0 : i32
    %421 = arith.addi %420, %c0_i32_310 : i32
    %422 = arith.index_cast %421 : i32 to index
    %423 = memref.load %arg3[%422] : memref<40xi32, #tpu.memory_space<smem>>
    %c0_i32_311 = arith.constant 0 : i32
    %c2_i32_312 = arith.constant 2 : i32
    %c0_i32_313 = arith.constant 0 : i32
    %424 = tpu.memref_slice %arg5[%423, %c0_i32_313] : memref<64x128xf32, #tpu.memory_space<any>> -> memref<1x128xf32, #tpu.memory_space<any>>
    %c7_i32_314 = arith.constant 7 : i32
    %c0_i32_315 = arith.constant 0 : i32
    %425 = tpu.memref_slice %arg9[%c0_i32_311, %c7_i32_314, %c0_i32_315] : memref<5x8x128xf32, #tpu.memory_space<vmem>> -> memref<1x1x128xf32, #tpu.memory_space<vmem>>
    %426 = tpu.memref_squeeze %425 : memref<1x1x128xf32, #tpu.memory_space<vmem>> -> memref<1x128xf32, #tpu.memory_space<vmem>>
    %427 = tpu.memref_slice %arg10[%c2_i32_312] : memref<3x!tpu.dma_semaphore, #tpu.memory_space<semaphore_mem>> -> memref<1x!tpu.dma_semaphore, #tpu.memory_space<semaphore_mem>>
    %428 = tpu.memref_squeeze %427 : memref<1x!tpu.dma_semaphore, #tpu.memory_space<semaphore_mem>> -> memref<!tpu.dma_semaphore, #tpu.memory_space<semaphore_mem>>
    tpu.enqueue_dma source(%424 : memref<1x128xf32, #tpu.memory_space<any>>) target(%426 : memref<1x128xf32, #tpu.memory_space<vmem>>) target_semaphore(%428 : memref<!tpu.dma_semaphore, #tpu.memory_space<semaphore_mem>>)
    %c5_i32_316 = arith.constant 5 : i32
    %429 = arith.muli %407, %c5_i32_316 : i32
    %c1_i32_317 = arith.constant 1 : i32
    %430 = arith.addi %429, %c1_i32_317 : i32
    %431 = arith.index_cast %430 : i32 to index
    %432 = memref.load %arg3[%431] : memref<40xi32, #tpu.memory_space<smem>>
    %c1_i32_318 = arith.constant 1 : i32
    %c2_i32_319 = arith.constant 2 : i32
    %c0_i32_320 = arith.constant 0 : i32
    %433 = tpu.memref_slice %arg5[%432, %c0_i32_320] : memref<64x128xf32, #tpu.memory_space<any>> -> memref<1x128xf32, #tpu.memory_space<any>>
    %c7_i32_321 = arith.constant 7 : i32
    %c0_i32_322 = arith.constant 0 : i32
    %434 = tpu.memref_slice %arg9[%c1_i32_318, %c7_i32_321, %c0_i32_322] : memref<5x8x128xf32, #tpu.memory_space<vmem>> -> memref<1x1x128xf32, #tpu.memory_space<vmem>>
    %435 = tpu.memref_squeeze %434 : memref<1x1x128xf32, #tpu.memory_space<vmem>> -> memref<1x128xf32, #tpu.memory_space<vmem>>
    %436 = tpu.memref_slice %arg10[%c2_i32_319] : memref<3x!tpu.dma_semaphore, #tpu.memory_space<semaphore_mem>> -> memref<1x!tpu.dma_semaphore, #tpu.memory_space<semaphore_mem>>
    %437 = tpu.memref_squeeze %436 : memref<1x!tpu.dma_semaphore, #tpu.memory_space<semaphore_mem>> -> memref<!tpu.dma_semaphore, #tpu.memory_space<semaphore_mem>>
    tpu.enqueue_dma source(%433 : memref<1x128xf32, #tpu.memory_space<any>>) target(%435 : memref<1x128xf32, #tpu.memory_space<vmem>>) target_semaphore(%437 : memref<!tpu.dma_semaphore, #tpu.memory_space<semaphore_mem>>)
    %c5_i32_323 = arith.constant 5 : i32
    %438 = arith.muli %407, %c5_i32_323 : i32
    %c2_i32_324 = arith.constant 2 : i32
    %439 = arith.addi %438, %c2_i32_324 : i32
    %440 = arith.index_cast %439 : i32 to index
    %441 = memref.load %arg3[%440] : memref<40xi32, #tpu.memory_space<smem>>
    %c2_i32_325 = arith.constant 2 : i32
    %c2_i32_326 = arith.constant 2 : i32
    %c0_i32_327 = arith.constant 0 : i32
    %442 = tpu.memref_slice %arg5[%441, %c0_i32_327] : memref<64x128xf32, #tpu.memory_space<any>> -> memref<1x128xf32, #tpu.memory_space<any>>
    %c7_i32_328 = arith.constant 7 : i32
    %c0_i32_329 = arith.constant 0 : i32
    %443 = tpu.memref_slice %arg9[%c2_i32_325, %c7_i32_328, %c0_i32_329] : memref<5x8x128xf32, #tpu.memory_space<vmem>> -> memref<1x1x128xf32, #tpu.memory_space<vmem>>
    %444 = tpu.memref_squeeze %443 : memref<1x1x128xf32, #tpu.memory_space<vmem>> -> memref<1x128xf32, #tpu.memory_space<vmem>>
    %445 = tpu.memref_slice %arg10[%c2_i32_326] : memref<3x!tpu.dma_semaphore, #tpu.memory_space<semaphore_mem>> -> memref<1x!tpu.dma_semaphore, #tpu.memory_space<semaphore_mem>>
    %446 = tpu.memref_squeeze %445 : memref<1x!tpu.dma_semaphore, #tpu.memory_space<semaphore_mem>> -> memref<!tpu.dma_semaphore, #tpu.memory_space<semaphore_mem>>
    tpu.enqueue_dma source(%442 : memref<1x128xf32, #tpu.memory_space<any>>) target(%444 : memref<1x128xf32, #tpu.memory_space<vmem>>) target_semaphore(%446 : memref<!tpu.dma_semaphore, #tpu.memory_space<semaphore_mem>>)
    %c5_i32_330 = arith.constant 5 : i32
    %447 = arith.muli %407, %c5_i32_330 : i32
    %c3_i32_331 = arith.constant 3 : i32
    %448 = arith.addi %447, %c3_i32_331 : i32
    %449 = arith.index_cast %448 : i32 to index
    %450 = memref.load %arg3[%449] : memref<40xi32, #tpu.memory_space<smem>>
    %c3_i32_332 = arith.constant 3 : i32
    %c2_i32_333 = arith.constant 2 : i32
    %c0_i32_334 = arith.constant 0 : i32
    %451 = tpu.memref_slice %arg5[%450, %c0_i32_334] : memref<64x128xf32, #tpu.memory_space<any>> -> memref<1x128xf32, #tpu.memory_space<any>>
    %c7_i32_335 = arith.constant 7 : i32
    %c0_i32_336 = arith.constant 0 : i32
    %452 = tpu.memref_slice %arg9[%c3_i32_332, %c7_i32_335, %c0_i32_336] : memref<5x8x128xf32, #tpu.memory_space<vmem>> -> memref<1x1x128xf32, #tpu.memory_space<vmem>>
    %453 = tpu.memref_squeeze %452 : memref<1x1x128xf32, #tpu.memory_space<vmem>> -> memref<1x128xf32, #tpu.memory_space<vmem>>
    %454 = tpu.memref_slice %arg10[%c2_i32_333] : memref<3x!tpu.dma_semaphore, #tpu.memory_space<semaphore_mem>> -> memref<1x!tpu.dma_semaphore, #tpu.memory_space<semaphore_mem>>
    %455 = tpu.memref_squeeze %454 : memref<1x!tpu.dma_semaphore, #tpu.memory_space<semaphore_mem>> -> memref<!tpu.dma_semaphore, #tpu.memory_space<semaphore_mem>>
    tpu.enqueue_dma source(%451 : memref<1x128xf32, #tpu.memory_space<any>>) target(%453 : memref<1x128xf32, #tpu.memory_space<vmem>>) target_semaphore(%455 : memref<!tpu.dma_semaphore, #tpu.memory_space<semaphore_mem>>)
    %c5_i32_337 = arith.constant 5 : i32
    %456 = arith.muli %407, %c5_i32_337 : i32
    %c4_i32_338 = arith.constant 4 : i32
    %457 = arith.addi %456, %c4_i32_338 : i32
    %458 = arith.index_cast %457 : i32 to index
    %459 = memref.load %arg3[%458] : memref<40xi32, #tpu.memory_space<smem>>
    %c4_i32_339 = arith.constant 4 : i32
    %c2_i32_340 = arith.constant 2 : i32
    %c0_i32_341 = arith.constant 0 : i32
    %460 = tpu.memref_slice %arg5[%459, %c0_i32_341] : memref<64x128xf32, #tpu.memory_space<any>> -> memref<1x128xf32, #tpu.memory_space<any>>
    %c7_i32_342 = arith.constant 7 : i32
    %c0_i32_343 = arith.constant 0 : i32
    %461 = tpu.memref_slice %arg9[%c4_i32_339, %c7_i32_342, %c0_i32_343] : memref<5x8x128xf32, #tpu.memory_space<vmem>> -> memref<1x1x128xf32, #tpu.memory_space<vmem>>
    %462 = tpu.memref_squeeze %461 : memref<1x1x128xf32, #tpu.memory_space<vmem>> -> memref<1x128xf32, #tpu.memory_space<vmem>>
    %463 = tpu.memref_slice %arg10[%c2_i32_340] : memref<3x!tpu.dma_semaphore, #tpu.memory_space<semaphore_mem>> -> memref<1x!tpu.dma_semaphore, #tpu.memory_space<semaphore_mem>>
    %464 = tpu.memref_squeeze %463 : memref<1x!tpu.dma_semaphore, #tpu.memory_space<semaphore_mem>> -> memref<!tpu.dma_semaphore, #tpu.memory_space<semaphore_mem>>
    tpu.enqueue_dma source(%460 : memref<1x128xf32, #tpu.memory_space<any>>) target(%462 : memref<1x128xf32, #tpu.memory_space<vmem>>) target_semaphore(%464 : memref<!tpu.dma_semaphore, #tpu.memory_space<semaphore_mem>>)
    %c0_i32_344 = arith.constant 0 : i32
    %c8_i32_345 = arith.constant 8 : i32
    %465 = arith.addi %c0_i32_344, %c8_i32_345 : i32
    %c1_i32_346 = arith.constant 1 : i32
    scf.for %arg11 = %c0_i32_344 to %465 step %c1_i32_346  : i32 {
      %c1_i32_376 = arith.constant 1 : i32
      %524 = arith.muli %arg11, %c1_i32_376 : i32
      %c0_i32_377 = arith.constant 0 : i32
      %525 = arith.addi %c0_i32_377, %524 : i32
      %c8_i32_378 = arith.constant 8 : i32
      %526 = arith.addi %525, %c8_i32_378 : i32
      %c8_i32_379 = arith.constant 8 : i32
      %527 = arith.cmpi slt, %526, %c8_i32_379 : i32
      %528 = arith.extui %527 : i1 to i32
      %c0_i32_380 = arith.constant 0 : i32
      %529 = arith.cmpi ne, %528, %c0_i32_380 : i32
      scf.if %529 {
        %c8_i32_414 = arith.constant 8 : i32
        %563 = arith.addi %525, %c8_i32_414 : i32
        %564 = arith.addi %0, %563 : i32
        %565 = arith.index_cast %564 : i32 to index
        %566 = memref.load %arg1[%565] : memref<8xi32, #tpu.memory_space<smem>>
        %c0_i32_415 = arith.constant 0 : i32
        %c0_i32_416 = arith.constant 0 : i32
        %567 = tpu.memref_slice %arg4[%566, %c0_i32_416] : memref<64x128xf32, #tpu.memory_space<any>> -> memref<1x128xf32, #tpu.memory_space<any>>
        %c0_i32_417 = arith.constant 0 : i32
        %568 = tpu.memref_slice %arg7[%563, %c0_i32_417] : memref<8x128xf32, #tpu.memory_space<vmem>> -> memref<1x128xf32, #tpu.memory_space<vmem>>
        %569 = tpu.memref_slice %arg10[%c0_i32_415] : memref<3x!tpu.dma_semaphore, #tpu.memory_space<semaphore_mem>> -> memref<1x!tpu.dma_semaphore, #tpu.memory_space<semaphore_mem>>
        %570 = tpu.memref_squeeze %569 : memref<1x!tpu.dma_semaphore, #tpu.memory_space<semaphore_mem>> -> memref<!tpu.dma_semaphore, #tpu.memory_space<semaphore_mem>>
        tpu.enqueue_dma source(%567 : memref<1x128xf32, #tpu.memory_space<any>>) target(%568 : memref<1x128xf32, #tpu.memory_space<vmem>>) target_semaphore(%570 : memref<!tpu.dma_semaphore, #tpu.memory_space<semaphore_mem>>)
        %571 = arith.index_cast %564 : i32 to index
        %572 = memref.load %arg2[%571] : memref<8xi32, #tpu.memory_space<smem>>
        %c1_i32_418 = arith.constant 1 : i32
        %c0_i32_419 = arith.constant 0 : i32
        %573 = tpu.memref_slice %arg5[%572, %c0_i32_419] : memref<64x128xf32, #tpu.memory_space<any>> -> memref<1x128xf32, #tpu.memory_space<any>>
        %c0_i32_420 = arith.constant 0 : i32
        %574 = tpu.memref_slice %arg8[%563, %c0_i32_420] : memref<8x128xf32, #tpu.memory_space<vmem>> -> memref<1x128xf32, #tpu.memory_space<vmem>>
        %575 = tpu.memref_slice %arg10[%c1_i32_418] : memref<3x!tpu.dma_semaphore, #tpu.memory_space<semaphore_mem>> -> memref<1x!tpu.dma_semaphore, #tpu.memory_space<semaphore_mem>>
        %576 = tpu.memref_squeeze %575 : memref<1x!tpu.dma_semaphore, #tpu.memory_space<semaphore_mem>> -> memref<!tpu.dma_semaphore, #tpu.memory_space<semaphore_mem>>
        tpu.enqueue_dma source(%573 : memref<1x128xf32, #tpu.memory_space<any>>) target(%574 : memref<1x128xf32, #tpu.memory_space<vmem>>) target_semaphore(%576 : memref<!tpu.dma_semaphore, #tpu.memory_space<semaphore_mem>>)
        %c5_i32_421 = arith.constant 5 : i32
        %577 = arith.muli %564, %c5_i32_421 : i32
        %c0_i32_422 = arith.constant 0 : i32
        %578 = arith.addi %577, %c0_i32_422 : i32
        %579 = arith.index_cast %578 : i32 to index
        %580 = memref.load %arg3[%579] : memref<40xi32, #tpu.memory_space<smem>>
        %c0_i32_423 = arith.constant 0 : i32
        %c2_i32_424 = arith.constant 2 : i32
        %c0_i32_425 = arith.constant 0 : i32
        %581 = tpu.memref_slice %arg5[%580, %c0_i32_425] : memref<64x128xf32, #tpu.memory_space<any>> -> memref<1x128xf32, #tpu.memory_space<any>>
        %c0_i32_426 = arith.constant 0 : i32
        %582 = tpu.memref_slice %arg9[%c0_i32_423, %563, %c0_i32_426] : memref<5x8x128xf32, #tpu.memory_space<vmem>> -> memref<1x1x128xf32, #tpu.memory_space<vmem>>
        %583 = tpu.memref_squeeze %582 : memref<1x1x128xf32, #tpu.memory_space<vmem>> -> memref<1x128xf32, #tpu.memory_space<vmem>>
        %584 = tpu.memref_slice %arg10[%c2_i32_424] : memref<3x!tpu.dma_semaphore, #tpu.memory_space<semaphore_mem>> -> memref<1x!tpu.dma_semaphore, #tpu.memory_space<semaphore_mem>>
        %585 = tpu.memref_squeeze %584 : memref<1x!tpu.dma_semaphore, #tpu.memory_space<semaphore_mem>> -> memref<!tpu.dma_semaphore, #tpu.memory_space<semaphore_mem>>
        tpu.enqueue_dma source(%581 : memref<1x128xf32, #tpu.memory_space<any>>) target(%583 : memref<1x128xf32, #tpu.memory_space<vmem>>) target_semaphore(%585 : memref<!tpu.dma_semaphore, #tpu.memory_space<semaphore_mem>>)
        %c5_i32_427 = arith.constant 5 : i32
        %586 = arith.muli %564, %c5_i32_427 : i32
        %c1_i32_428 = arith.constant 1 : i32
        %587 = arith.addi %586, %c1_i32_428 : i32
        %588 = arith.index_cast %587 : i32 to index
        %589 = memref.load %arg3[%588] : memref<40xi32, #tpu.memory_space<smem>>
        %c1_i32_429 = arith.constant 1 : i32
        %c2_i32_430 = arith.constant 2 : i32
        %c0_i32_431 = arith.constant 0 : i32
        %590 = tpu.memref_slice %arg5[%589, %c0_i32_431] : memref<64x128xf32, #tpu.memory_space<any>> -> memref<1x128xf32, #tpu.memory_space<any>>
        %c0_i32_432 = arith.constant 0 : i32
        %591 = tpu.memref_slice %arg9[%c1_i32_429, %563, %c0_i32_432] : memref<5x8x128xf32, #tpu.memory_space<vmem>> -> memref<1x1x128xf32, #tpu.memory_space<vmem>>
        %592 = tpu.memref_squeeze %591 : memref<1x1x128xf32, #tpu.memory_space<vmem>> -> memref<1x128xf32, #tpu.memory_space<vmem>>
        %593 = tpu.memref_slice %arg10[%c2_i32_430] : memref<3x!tpu.dma_semaphore, #tpu.memory_space<semaphore_mem>> -> memref<1x!tpu.dma_semaphore, #tpu.memory_space<semaphore_mem>>
        %594 = tpu.memref_squeeze %593 : memref<1x!tpu.dma_semaphore, #tpu.memory_space<semaphore_mem>> -> memref<!tpu.dma_semaphore, #tpu.memory_space<semaphore_mem>>
        tpu.enqueue_dma source(%590 : memref<1x128xf32, #tpu.memory_space<any>>) target(%592 : memref<1x128xf32, #tpu.memory_space<vmem>>) target_semaphore(%594 : memref<!tpu.dma_semaphore, #tpu.memory_space<semaphore_mem>>)
        %c5_i32_433 = arith.constant 5 : i32
        %595 = arith.muli %564, %c5_i32_433 : i32
        %c2_i32_434 = arith.constant 2 : i32
        %596 = arith.addi %595, %c2_i32_434 : i32
        %597 = arith.index_cast %596 : i32 to index
        %598 = memref.load %arg3[%597] : memref<40xi32, #tpu.memory_space<smem>>
        %c2_i32_435 = arith.constant 2 : i32
        %c2_i32_436 = arith.constant 2 : i32
        %c0_i32_437 = arith.constant 0 : i32
        %599 = tpu.memref_slice %arg5[%598, %c0_i32_437] : memref<64x128xf32, #tpu.memory_space<any>> -> memref<1x128xf32, #tpu.memory_space<any>>
        %c0_i32_438 = arith.constant 0 : i32
        %600 = tpu.memref_slice %arg9[%c2_i32_435, %563, %c0_i32_438] : memref<5x8x128xf32, #tpu.memory_space<vmem>> -> memref<1x1x128xf32, #tpu.memory_space<vmem>>
        %601 = tpu.memref_squeeze %600 : memref<1x1x128xf32, #tpu.memory_space<vmem>> -> memref<1x128xf32, #tpu.memory_space<vmem>>
        %602 = tpu.memref_slice %arg10[%c2_i32_436] : memref<3x!tpu.dma_semaphore, #tpu.memory_space<semaphore_mem>> -> memref<1x!tpu.dma_semaphore, #tpu.memory_space<semaphore_mem>>
        %603 = tpu.memref_squeeze %602 : memref<1x!tpu.dma_semaphore, #tpu.memory_space<semaphore_mem>> -> memref<!tpu.dma_semaphore, #tpu.memory_space<semaphore_mem>>
        tpu.enqueue_dma source(%599 : memref<1x128xf32, #tpu.memory_space<any>>) target(%601 : memref<1x128xf32, #tpu.memory_space<vmem>>) target_semaphore(%603 : memref<!tpu.dma_semaphore, #tpu.memory_space<semaphore_mem>>)
        %c5_i32_439 = arith.constant 5 : i32
        %604 = arith.muli %564, %c5_i32_439 : i32
        %c3_i32_440 = arith.constant 3 : i32
        %605 = arith.addi %604, %c3_i32_440 : i32
        %606 = arith.index_cast %605 : i32 to index
        %607 = memref.load %arg3[%606] : memref<40xi32, #tpu.memory_space<smem>>
        %c3_i32_441 = arith.constant 3 : i32
        %c2_i32_442 = arith.constant 2 : i32
        %c0_i32_443 = arith.constant 0 : i32
        %608 = tpu.memref_slice %arg5[%607, %c0_i32_443] : memref<64x128xf32, #tpu.memory_space<any>> -> memref<1x128xf32, #tpu.memory_space<any>>
        %c0_i32_444 = arith.constant 0 : i32
        %609 = tpu.memref_slice %arg9[%c3_i32_441, %563, %c0_i32_444] : memref<5x8x128xf32, #tpu.memory_space<vmem>> -> memref<1x1x128xf32, #tpu.memory_space<vmem>>
        %610 = tpu.memref_squeeze %609 : memref<1x1x128xf32, #tpu.memory_space<vmem>> -> memref<1x128xf32, #tpu.memory_space<vmem>>
        %611 = tpu.memref_slice %arg10[%c2_i32_442] : memref<3x!tpu.dma_semaphore, #tpu.memory_space<semaphore_mem>> -> memref<1x!tpu.dma_semaphore, #tpu.memory_space<semaphore_mem>>
        %612 = tpu.memref_squeeze %611 : memref<1x!tpu.dma_semaphore, #tpu.memory_space<semaphore_mem>> -> memref<!tpu.dma_semaphore, #tpu.memory_space<semaphore_mem>>
        tpu.enqueue_dma source(%608 : memref<1x128xf32, #tpu.memory_space<any>>) target(%610 : memref<1x128xf32, #tpu.memory_space<vmem>>) target_semaphore(%612 : memref<!tpu.dma_semaphore, #tpu.memory_space<semaphore_mem>>)
        %c5_i32_445 = arith.constant 5 : i32
        %613 = arith.muli %564, %c5_i32_445 : i32
        %c4_i32_446 = arith.constant 4 : i32
        %614 = arith.addi %613, %c4_i32_446 : i32
        %615 = arith.index_cast %614 : i32 to index
        %616 = memref.load %arg3[%615] : memref<40xi32, #tpu.memory_space<smem>>
        %c4_i32_447 = arith.constant 4 : i32
        %c2_i32_448 = arith.constant 2 : i32
        %c0_i32_449 = arith.constant 0 : i32
        %617 = tpu.memref_slice %arg5[%616, %c0_i32_449] : memref<64x128xf32, #tpu.memory_space<any>> -> memref<1x128xf32, #tpu.memory_space<any>>
        %c0_i32_450 = arith.constant 0 : i32
        %618 = tpu.memref_slice %arg9[%c4_i32_447, %563, %c0_i32_450] : memref<5x8x128xf32, #tpu.memory_space<vmem>> -> memref<1x1x128xf32, #tpu.memory_space<vmem>>
        %619 = tpu.memref_squeeze %618 : memref<1x1x128xf32, #tpu.memory_space<vmem>> -> memref<1x128xf32, #tpu.memory_space<vmem>>
        %620 = tpu.memref_slice %arg10[%c2_i32_448] : memref<3x!tpu.dma_semaphore, #tpu.memory_space<semaphore_mem>> -> memref<1x!tpu.dma_semaphore, #tpu.memory_space<semaphore_mem>>
        %621 = tpu.memref_squeeze %620 : memref<1x!tpu.dma_semaphore, #tpu.memory_space<semaphore_mem>> -> memref<!tpu.dma_semaphore, #tpu.memory_space<semaphore_mem>>
        tpu.enqueue_dma source(%617 : memref<1x128xf32, #tpu.memory_space<any>>) target(%619 : memref<1x128xf32, #tpu.memory_space<vmem>>) target_semaphore(%621 : memref<!tpu.dma_semaphore, #tpu.memory_space<semaphore_mem>>)
      } else {
      }
      %c0_i32_381 = arith.constant 0 : i32
      %c0_i32_382 = arith.constant 0 : i32
      %c0_i32_383 = arith.constant 0 : i32
      %530 = tpu.memref_slice %arg4[%c0_i32_382, %c0_i32_383] : memref<64x128xf32, #tpu.memory_space<any>> -> memref<1x128xf32, #tpu.memory_space<any>>
      %c0_i32_384 = arith.constant 0 : i32
      %531 = tpu.memref_slice %arg7[%525, %c0_i32_384] : memref<8x128xf32, #tpu.memory_space<vmem>> -> memref<1x128xf32, #tpu.memory_space<vmem>>
      %532 = tpu.memref_slice %arg10[%c0_i32_381] : memref<3x!tpu.dma_semaphore, #tpu.memory_space<semaphore_mem>> -> memref<1x!tpu.dma_semaphore, #tpu.memory_space<semaphore_mem>>
      %533 = tpu.memref_squeeze %532 : memref<1x!tpu.dma_semaphore, #tpu.memory_space<semaphore_mem>> -> memref<!tpu.dma_semaphore, #tpu.memory_space<semaphore_mem>>
      tpu.wait_dma2 semaphore(%533 : memref<!tpu.dma_semaphore, #tpu.memory_space<semaphore_mem>>) src(%530 : memref<1x128xf32, #tpu.memory_space<any>>) dst(%531 : memref<1x128xf32, #tpu.memory_space<vmem>>)
      %c1_i32_385 = arith.constant 1 : i32
      %c0_i32_386 = arith.constant 0 : i32
      %c0_i32_387 = arith.constant 0 : i32
      %534 = tpu.memref_slice %arg5[%c0_i32_386, %c0_i32_387] : memref<64x128xf32, #tpu.memory_space<any>> -> memref<1x128xf32, #tpu.memory_space<any>>
      %c0_i32_388 = arith.constant 0 : i32
      %535 = tpu.memref_slice %arg8[%525, %c0_i32_388] : memref<8x128xf32, #tpu.memory_space<vmem>> -> memref<1x128xf32, #tpu.memory_space<vmem>>
      %536 = tpu.memref_slice %arg10[%c1_i32_385] : memref<3x!tpu.dma_semaphore, #tpu.memory_space<semaphore_mem>> -> memref<1x!tpu.dma_semaphore, #tpu.memory_space<semaphore_mem>>
      %537 = tpu.memref_squeeze %536 : memref<1x!tpu.dma_semaphore, #tpu.memory_space<semaphore_mem>> -> memref<!tpu.dma_semaphore, #tpu.memory_space<semaphore_mem>>
      tpu.wait_dma2 semaphore(%537 : memref<!tpu.dma_semaphore, #tpu.memory_space<semaphore_mem>>) src(%534 : memref<1x128xf32, #tpu.memory_space<any>>) dst(%535 : memref<1x128xf32, #tpu.memory_space<vmem>>)
      %c0_i32_389 = arith.constant 0 : i32
      %c2_i32_390 = arith.constant 2 : i32
      %c0_i32_391 = arith.constant 0 : i32
      %c0_i32_392 = arith.constant 0 : i32
      %538 = tpu.memref_slice %arg5[%c0_i32_391, %c0_i32_392] : memref<64x128xf32, #tpu.memory_space<any>> -> memref<1x128xf32, #tpu.memory_space<any>>
      %c0_i32_393 = arith.constant 0 : i32
      %539 = tpu.memref_slice %arg9[%c0_i32_389, %525, %c0_i32_393] : memref<5x8x128xf32, #tpu.memory_space<vmem>> -> memref<1x1x128xf32, #tpu.memory_space<vmem>>
      %540 = tpu.memref_squeeze %539 : memref<1x1x128xf32, #tpu.memory_space<vmem>> -> memref<1x128xf32, #tpu.memory_space<vmem>>
      %541 = tpu.memref_slice %arg10[%c2_i32_390] : memref<3x!tpu.dma_semaphore, #tpu.memory_space<semaphore_mem>> -> memref<1x!tpu.dma_semaphore, #tpu.memory_space<semaphore_mem>>
      %542 = tpu.memref_squeeze %541 : memref<1x!tpu.dma_semaphore, #tpu.memory_space<semaphore_mem>> -> memref<!tpu.dma_semaphore, #tpu.memory_space<semaphore_mem>>
      tpu.wait_dma2 semaphore(%542 : memref<!tpu.dma_semaphore, #tpu.memory_space<semaphore_mem>>) src(%538 : memref<1x128xf32, #tpu.memory_space<any>>) dst(%540 : memref<1x128xf32, #tpu.memory_space<vmem>>)
      %c1_i32_394 = arith.constant 1 : i32
      %c2_i32_395 = arith.constant 2 : i32
      %c0_i32_396 = arith.constant 0 : i32
      %c0_i32_397 = arith.constant 0 : i32
      %543 = tpu.memref_slice %arg5[%c0_i32_396, %c0_i32_397] : memref<64x128xf32, #tpu.memory_space<any>> -> memref<1x128xf32, #tpu.memory_space<any>>
      %c0_i32_398 = arith.constant 0 : i32
      %544 = tpu.memref_slice %arg9[%c1_i32_394, %525, %c0_i32_398] : memref<5x8x128xf32, #tpu.memory_space<vmem>> -> memref<1x1x128xf32, #tpu.memory_space<vmem>>
      %545 = tpu.memref_squeeze %544 : memref<1x1x128xf32, #tpu.memory_space<vmem>> -> memref<1x128xf32, #tpu.memory_space<vmem>>
      %546 = tpu.memref_slice %arg10[%c2_i32_395] : memref<3x!tpu.dma_semaphore, #tpu.memory_space<semaphore_mem>> -> memref<1x!tpu.dma_semaphore, #tpu.memory_space<semaphore_mem>>
      %547 = tpu.memref_squeeze %546 : memref<1x!tpu.dma_semaphore, #tpu.memory_space<semaphore_mem>> -> memref<!tpu.dma_semaphore, #tpu.memory_space<semaphore_mem>>
      tpu.wait_dma2 semaphore(%547 : memref<!tpu.dma_semaphore, #tpu.memory_space<semaphore_mem>>) src(%543 : memref<1x128xf32, #tpu.memory_space<any>>) dst(%545 : memref<1x128xf32, #tpu.memory_space<vmem>>)
      %c2_i32_399 = arith.constant 2 : i32
      %c2_i32_400 = arith.constant 2 : i32
      %c0_i32_401 = arith.constant 0 : i32
      %c0_i32_402 = arith.constant 0 : i32
      %548 = tpu.memref_slice %arg5[%c0_i32_401, %c0_i32_402] : memref<64x128xf32, #tpu.memory_space<any>> -> memref<1x128xf32, #tpu.memory_space<any>>
      %c0_i32_403 = arith.constant 0 : i32
      %549 = tpu.memref_slice %arg9[%c2_i32_399, %525, %c0_i32_403] : memref<5x8x128xf32, #tpu.memory_space<vmem>> -> memref<1x1x128xf32, #tpu.memory_space<vmem>>
      %550 = tpu.memref_squeeze %549 : memref<1x1x128xf32, #tpu.memory_space<vmem>> -> memref<1x128xf32, #tpu.memory_space<vmem>>
      %551 = tpu.memref_slice %arg10[%c2_i32_400] : memref<3x!tpu.dma_semaphore, #tpu.memory_space<semaphore_mem>> -> memref<1x!tpu.dma_semaphore, #tpu.memory_space<semaphore_mem>>
      %552 = tpu.memref_squeeze %551 : memref<1x!tpu.dma_semaphore, #tpu.memory_space<semaphore_mem>> -> memref<!tpu.dma_semaphore, #tpu.memory_space<semaphore_mem>>
      tpu.wait_dma2 semaphore(%552 : memref<!tpu.dma_semaphore, #tpu.memory_space<semaphore_mem>>) src(%548 : memref<1x128xf32, #tpu.memory_space<any>>) dst(%550 : memref<1x128xf32, #tpu.memory_space<vmem>>)
      %c3_i32_404 = arith.constant 3 : i32
      %c2_i32_405 = arith.constant 2 : i32
      %c0_i32_406 = arith.constant 0 : i32
      %c0_i32_407 = arith.constant 0 : i32
      %553 = tpu.memref_slice %arg5[%c0_i32_406, %c0_i32_407] : memref<64x128xf32, #tpu.memory_space<any>> -> memref<1x128xf32, #tpu.memory_space<any>>
      %c0_i32_408 = arith.constant 0 : i32
      %554 = tpu.memref_slice %arg9[%c3_i32_404, %525, %c0_i32_408] : memref<5x8x128xf32, #tpu.memory_space<vmem>> -> memref<1x1x128xf32, #tpu.memory_space<vmem>>
      %555 = tpu.memref_squeeze %554 : memref<1x1x128xf32, #tpu.memory_space<vmem>> -> memref<1x128xf32, #tpu.memory_space<vmem>>
      %556 = tpu.memref_slice %arg10[%c2_i32_405] : memref<3x!tpu.dma_semaphore, #tpu.memory_space<semaphore_mem>> -> memref<1x!tpu.dma_semaphore, #tpu.memory_space<semaphore_mem>>
      %557 = tpu.memref_squeeze %556 : memref<1x!tpu.dma_semaphore, #tpu.memory_space<semaphore_mem>> -> memref<!tpu.dma_semaphore, #tpu.memory_space<semaphore_mem>>
      tpu.wait_dma2 semaphore(%557 : memref<!tpu.dma_semaphore, #tpu.memory_space<semaphore_mem>>) src(%553 : memref<1x128xf32, #tpu.memory_space<any>>) dst(%555 : memref<1x128xf32, #tpu.memory_space<vmem>>)
      %c4_i32_409 = arith.constant 4 : i32
      %c2_i32_410 = arith.constant 2 : i32
      %c0_i32_411 = arith.constant 0 : i32
      %c0_i32_412 = arith.constant 0 : i32
      %558 = tpu.memref_slice %arg5[%c0_i32_411, %c0_i32_412] : memref<64x128xf32, #tpu.memory_space<any>> -> memref<1x128xf32, #tpu.memory_space<any>>
      %c0_i32_413 = arith.constant 0 : i32
      %559 = tpu.memref_slice %arg9[%c4_i32_409, %525, %c0_i32_413] : memref<5x8x128xf32, #tpu.memory_space<vmem>> -> memref<1x1x128xf32, #tpu.memory_space<vmem>>
      %560 = tpu.memref_squeeze %559 : memref<1x1x128xf32, #tpu.memory_space<vmem>> -> memref<1x128xf32, #tpu.memory_space<vmem>>
      %561 = tpu.memref_slice %arg10[%c2_i32_410] : memref<3x!tpu.dma_semaphore, #tpu.memory_space<semaphore_mem>> -> memref<1x!tpu.dma_semaphore, #tpu.memory_space<semaphore_mem>>
      %562 = tpu.memref_squeeze %561 : memref<1x!tpu.dma_semaphore, #tpu.memory_space<semaphore_mem>> -> memref<!tpu.dma_semaphore, #tpu.memory_space<semaphore_mem>>
      tpu.wait_dma2 semaphore(%562 : memref<!tpu.dma_semaphore, #tpu.memory_space<semaphore_mem>>) src(%558 : memref<1x128xf32, #tpu.memory_space<any>>) dst(%560 : memref<1x128xf32, #tpu.memory_space<vmem>>)
    }
    %c8_i32_347 = arith.constant 8 : i32
    %c0 = arith.constant 0 : index
    %c0_348 = arith.constant 0 : index
    %466 = vector.load %arg7[%c0, %c0_348] : memref<8x128xf32, #tpu.memory_space<vmem>>, vector<8x128xf32>
    %c0_349 = arith.constant 0 : index
    %c0_350 = arith.constant 0 : index
    %467 = vector.load %arg8[%c0_349, %c0_350] : memref<8x128xf32, #tpu.memory_space<vmem>>, vector<8x128xf32>
    %468 = arith.mulf %467, %466 : vector<8x128xf32>
    %cst = arith.constant dense<0.000000e+00> : vector<8xf32>
    %469 = vector.multi_reduction <add>, %468, %cst [1] : vector<8x128xf32> to vector<8xf32>
    %470 = vector.shape_cast %469 : vector<8xf32> to vector<8x1xf32>
    %c0_351 = arith.constant 0 : index
    %c0_352 = arith.constant 0 : index
    %c0_353 = arith.constant 0 : index
    %471 = vector.load %arg9[%c0_351, %c0_352, %c0_353] : memref<5x8x128xf32, #tpu.memory_space<vmem>>, vector<1x8x128xf32>
    %472 = vector.shape_cast %471 : vector<1x8x128xf32> to vector<8x128xf32>
    %c1 = arith.constant 1 : index
    %c0_354 = arith.constant 0 : index
    %c0_355 = arith.constant 0 : index
    %473 = vector.load %arg9[%c1, %c0_354, %c0_355] : memref<5x8x128xf32, #tpu.memory_space<vmem>>, vector<1x8x128xf32>
    %474 = vector.shape_cast %473 : vector<1x8x128xf32> to vector<8x128xf32>
    %475 = arith.addf %472, %474 : vector<8x128xf32>
    %c2 = arith.constant 2 : index
    %c0_356 = arith.constant 0 : index
    %c0_357 = arith.constant 0 : index
    %476 = vector.load %arg9[%c2, %c0_356, %c0_357] : memref<5x8x128xf32, #tpu.memory_space<vmem>>, vector<1x8x128xf32>
    %477 = vector.shape_cast %476 : vector<1x8x128xf32> to vector<8x128xf32>
    %478 = arith.addf %475, %477 : vector<8x128xf32>
    %c3 = arith.constant 3 : index
    %c0_358 = arith.constant 0 : index
    %c0_359 = arith.constant 0 : index
    %479 = vector.load %arg9[%c3, %c0_358, %c0_359] : memref<5x8x128xf32, #tpu.memory_space<vmem>>, vector<1x8x128xf32>
    %480 = vector.shape_cast %479 : vector<1x8x128xf32> to vector<8x128xf32>
    %481 = arith.addf %478, %480 : vector<8x128xf32>
    %c4 = arith.constant 4 : index
    %c0_360 = arith.constant 0 : index
    %c0_361 = arith.constant 0 : index
    %482 = vector.load %arg9[%c4, %c0_360, %c0_361] : memref<5x8x128xf32, #tpu.memory_space<vmem>>, vector<1x8x128xf32>
    %483 = vector.shape_cast %482 : vector<1x8x128xf32> to vector<8x128xf32>
    %484 = arith.addf %481, %483 : vector<8x128xf32>
    %485 = arith.mulf %484, %466 : vector<8x128xf32>
    %cst_362 = arith.constant dense<0.000000e+00> : vector<8xf32>
    %486 = vector.multi_reduction <add>, %485, %cst_362 [1] : vector<8x128xf32> to vector<8xf32>
    %487 = vector.shape_cast %486 : vector<8xf32> to vector<8x1xf32>
    %cst_363 = arith.constant 0.000000e+00 : f32
    %488 = vector.broadcast %cst_363 : f32 to vector<8x1xf32>
    %489 = arith.subf %488, %487 : vector<8x1xf32>
    %cst_364 = arith.constant 0.000000e+00 : f32
    %490 = vector.broadcast %cst_364 : f32 to vector<8x1xf32>
    %491 = arith.minimumf %470, %490 : vector<8x1xf32>
    %492 = math.absf %470 : vector<8x1xf32>
    %cst_365 = arith.constant 0.000000e+00 : f32
    %493 = vector.broadcast %cst_365 : f32 to vector<8x1xf32>
    %494 = arith.subf %493, %492 : vector<8x1xf32>
    %495 = math.exp %494 : vector<8x1xf32>
    %cst_366 = arith.constant 1.000000e+00 : f32
    %496 = vector.broadcast %cst_366 : f32 to vector<8x1xf32>
    %497 = arith.addf %496, %495 : vector<8x1xf32>
    %498 = math.log %497 : vector<8x1xf32>
    %499 = arith.subf %491, %498 : vector<8x1xf32>
    %cst_367 = arith.constant 0.000000e+00 : f32
    %500 = vector.broadcast %cst_367 : f32 to vector<8x1xf32>
    %501 = arith.minimumf %489, %500 : vector<8x1xf32>
    %502 = math.absf %489 : vector<8x1xf32>
    %cst_368 = arith.constant 0.000000e+00 : f32
    %503 = vector.broadcast %cst_368 : f32 to vector<8x1xf32>
    %504 = arith.subf %503, %502 : vector<8x1xf32>
    %505 = math.exp %504 : vector<8x1xf32>
    %cst_369 = arith.constant 1.000000e+00 : f32
    %506 = vector.broadcast %cst_369 : f32 to vector<8x1xf32>
    %507 = arith.addf %506, %505 : vector<8x1xf32>
    %508 = math.log %507 : vector<8x1xf32>
    %509 = arith.subf %501, %508 : vector<8x1xf32>
    %510 = arith.addf %499, %509 : vector<8x1xf32>
    %511 = tpu.iota {dimensions = array<i32: 0>} : vector<8x1xi32>
    %512 = vector.broadcast %0 : i32 to vector<8x1xi32>
    %513 = arith.addi %512, %511 : vector<8x1xi32>
    %c8_i32_370 = arith.constant 8 : i32
    %514 = vector.broadcast %c8_i32_370 : i32 to vector<8x1xi32>
    %515 = arith.cmpi slt, %513, %514 : vector<8x1xi32>
    %cst_371 = arith.constant 0.000000e+00 : f32
    %516 = vector.broadcast %cst_371 : f32 to vector<8x1xf32>
    %517 = arith.select %515, %510, %516 : vector<8x1xi1>, vector<8x1xf32>
    %cst_372 = arith.constant dense<0.000000e+00> : vector<1xf32>
    %518 = vector.multi_reduction <add>, %517, %cst_372 [0] : vector<8x1xf32> to vector<1xf32>
    %519 = vector.shape_cast %518 : vector<1xf32> to vector<1x1xf32>
    %520 = vector.shape_cast %519 : vector<1x1xf32> to vector<1x1x1xf32>
    %521 = vector.shape_cast %520 : vector<1x1x1xf32> to vector<1x1x1xf32>
    %522 = vector.broadcast %521 : vector<1x1x1xf32> to vector<1x8x128xf32>
    %c0_373 = arith.constant 0 : index
    %c0_374 = arith.constant 0 : index
    %c0_375 = arith.constant 0 : index
    %523 = vector.load %arg6[%c0_373, %c0_374, %c0_375] : memref<1x8x128xf32, #tpu.memory_space<vmem>>, vector<1x8x128xf32>
    tpu.vector_store %arg6[%c0_373, %c0_374, %c0_375], %522 {strides = array<i32>} : memref<1x8x128xf32, #tpu.memory_space<vmem>>, vector<1x8x128xf32>,
    return
  }
  func.func @transform_2(%arg0: i32, %arg1: memref<8xi32, #tpu.memory_space<smem>>, %arg2: memref<8xi32, #tpu.memory_space<smem>>, %arg3: memref<40xi32, #tpu.memory_space<smem>>) -> (i32, i32, i32) {
    %c0_i32 = arith.constant 0 : i32
    %c0_i32_0 = arith.constant 0 : i32
    %c0_i32_1 = arith.constant 0 : i32
    return %arg0, %c0_i32, %c0_i32_0 : i32, i32, i32
  }
}

</mosaic_0001>

<llo_original>
// kernel: tpu_custom_call.1
$region0: #{tpu_custom_call.1}
  #allocation0 [shape = 'u32[]', space=smem, size = 0x4, offset = 0x4, fixed_abs, tag = 'smem constant byte address 0x4 - core index']
  #allocation1 [shape = 'u32[144,128]{1,0:T(1,128)}', space=vmem, size = 0x12000, scoped, tag = 'internal scratch']
  #allocation2 [shape = 'f32[8,128]{1,0:T(8,128)}', space=vmem, size = 0x1000, scoped, tag = 'scratch operand']
  #allocation3 [shape = 'f32[8,128]{1,0:T(8,128)}', space=vmem, size = 0x1000, scoped, tag = 'scratch operand']
  #allocation4 [shape = 'f32[5,8,128]{2,1,0:T(8,128)}', space=vmem, size = 0x5000, scoped, tag = 'scratch operand']
  #allocation5 [shape = 's32[3]{0}', space=sflag, size = 0xc, scoped, tag = 'scratch operand']
  #allocation6 [shape = 's32[1]{0}', space=sflag, size = 0x4, scoped, tag = 'scoped memory for tpu_custom_call.1']
  #allocation7 [shape = 'u8[512]{0}', space=smem, size = 0x200, scoped, tag = 'prefetched SMEM operand 0']
  #allocation8 [shape = 'u8[512]{0}', space=smem, size = 0x200, scoped, tag = 'prefetched SMEM operand 1']
  #allocation9 [shape = 'u8[512]{0}', space=smem, size = 0x200, scoped, tag = 'prefetched SMEM operand 2']
  #allocation12 [shape = 's32[]', space=sflag, size = 0x4, offset = 0, fixed_abs, tag = 'sflag constant byte address 0x0 - dummy sync flag']
  #allocation13 [shape = 's32[]', space=sflag, size = 0x4, offset = 0, fixed_abs, tag = 'sflag constant byte address 0x0 - dummy sync flag']
  #allocation14 [shape = 'u32[]', space=smem, size = 0x4, offset = 0x44, fixed_abs, tag = 'smem constant byte address 0x44 - assertion arg 0']
  #allocation15 [shape = 'u32[]', space=smem, size = 0x4, offset = 0x48, fixed_abs, tag = 'smem constant byte address 0x48 - assertion arg 1']
  #allocation16 [shape = 's32[]', space=sflag, size = 0x4, offset = 0, fixed_abs, tag = 'sflag constant byte address 0x0 - dummy sync flag']
  #allocation17 [shape = 's32[]', space=sflag, size = 0x4, offset = 0, fixed_abs, tag = 'sflag constant byte address 0x0 - dummy sync flag']
  #allocation18 [shape = 's32[]', space=sflag, size = 0x4, offset = 0, fixed_abs, tag = 'sflag constant byte address 0x0 - dummy sync flag']
  #allocation19 [shape = 's32[]', space=sflag, size = 0x4, offset = 0, fixed_abs, tag = 'sflag constant byte address 0x0 - dummy sync flag']
  #allocation20 [shape = 's32[]', space=sflag, size = 0x4, offset = 0, fixed_abs, tag = 'sflag constant byte address 0x0 - dummy sync flag']
  #allocation21 [shape = 's32[]', space=sflag, size = 0x4, offset = 0, fixed_abs, tag = 'sflag constant byte address 0x0 - dummy sync flag']
  #allocation22 [shape = 's32[]', space=sflag, size = 0x4, offset = 0, fixed_abs, tag = 'sflag constant byte address 0x0 - dummy sync flag']
  #allocation23 [shape = 's32[]', space=sflag, size = 0x4, offset = 0, fixed_abs, tag = 'sflag constant byte address 0x0 - dummy sync flag']
  #allocation24 [shape = 's32[]', space=sflag, size = 0x4, offset = 0, fixed_abs, tag = 'sflag constant byte address 0x0 - dummy sync flag']
  #allocation25 [shape = 's32[]', space=sflag, size = 0x4, offset = 0, fixed_abs, tag = 'sflag constant byte address 0x0 - dummy sync flag']
  #allocation26 [shape = 's32[]', space=sflag, size = 0x4, offset = 0, fixed_abs, tag = 'sflag constant byte address 0x0 - dummy sync flag']
  #allocation27 [shape = 's32[]', space=sflag, size = 0x4, offset = 0, fixed_abs, tag = 'sflag constant byte address 0x0 - dummy sync flag']
  #allocation28 [shape = 's32[]', space=sflag, size = 0x4, offset = 0, fixed_abs, tag = 'sflag constant byte address 0x0 - dummy sync flag']
  #allocation29 [shape = 's32[]', space=sflag, size = 0x4, offset = 0, fixed_abs, tag = 'sflag constant byte address 0x0 - dummy sync flag']
  #allocation30 [shape = 's32[]', space=sflag, size = 0x4, offset = 0, fixed_abs, tag = 'sflag constant byte address 0x0 - dummy sync flag']
  #allocation31 [shape = 's32[]', space=sflag, size = 0x4, offset = 0, fixed_abs, tag = 'sflag constant byte address 0x0 - dummy sync flag']
  #allocation32 [shape = 's32[]', space=sflag, size = 0x4, offset = 0, fixed_abs, tag = 'sflag constant byte address 0x0 - dummy sync flag']
  #allocation33 [shape = 's32[]', space=sflag, size = 0x4, offset = 0, fixed_abs, tag = 'sflag constant byte address 0x0 - dummy sync flag']
  #allocation34 [shape = 's32[]', space=sflag, size = 0x4, offset = 0, fixed_abs, tag = 'sflag constant byte address 0x0 - dummy sync flag']
  #allocation35 [shape = 's32[]', space=sflag, size = 0x4, offset = 0, fixed_abs, tag = 'sflag constant byte address 0x0 - dummy sync flag']
  #allocation36 [shape = 's32[]', space=sflag, size = 0x4, offset = 0, fixed_abs, tag = 'sflag constant byte address 0x0 - dummy sync flag']
  #allocation37 [shape = 's32[]', space=sflag, size = 0x4, offset = 0, fixed_abs, tag = 'sflag constant byte address 0x0 - dummy sync flag']
  #allocation38 [shape = 's32[]', space=sflag, size = 0x4, offset = 0, fixed_abs, tag = 'sflag constant byte address 0x0 - dummy sync flag']
  #allocation39 [shape = 's32[]', space=sflag, size = 0x4, offset = 0, fixed_abs, tag = 'sflag constant byte address 0x0 - dummy sync flag']
  #allocation40 [shape = 's32[]', space=sflag, size = 0x4, offset = 0, fixed_abs, tag = 'sflag constant byte address 0x0 - dummy sync flag']
  #allocation41 [shape = 's32[]', space=sflag, size = 0x4, offset = 0, fixed_abs, tag = 'sflag constant byte address 0x0 - dummy sync flag']
  #allocation42 [shape = 's32[]', space=sflag, size = 0x4, offset = 0, fixed_abs, tag = 'sflag constant byte address 0x0 - dummy sync flag']
  #allocation43 [shape = 's32[]', space=sflag, size = 0x4, offset = 0, fixed_abs, tag = 'sflag constant byte address 0x0 - dummy sync flag']
  #allocation44 [shape = 's32[]', space=sflag, size = 0x4, offset = 0, fixed_abs, tag = 'sflag constant byte address 0x0 - dummy sync flag']
  #allocation45 [shape = 's32[]', space=sflag, size = 0x4, offset = 0, fixed_abs, tag = 'sflag constant byte address 0x0 - dummy sync flag']
  #allocation46 [shape = 's32[]', space=sflag, size = 0x4, offset = 0, fixed_abs, tag = 'sflag constant byte address 0x0 - dummy sync flag']
  #allocation47 [shape = 's32[]', space=sflag, size = 0x4, offset = 0, fixed_abs, tag = 'sflag constant byte address 0x0 - dummy sync flag']
  #allocation48 [shape = 's32[]', space=sflag, size = 0x4, offset = 0, fixed_abs, tag = 'sflag constant byte address 0x0 - dummy sync flag']
  #allocation49 [shape = 's32[]', space=sflag, size = 0x4, offset = 0, fixed_abs, tag = 'sflag constant byte address 0x0 - dummy sync flag']
  #allocation50 [shape = 's32[]', space=sflag, size = 0x4, offset = 0, fixed_abs, tag = 'sflag constant byte address 0x0 - dummy sync flag']
  #allocation51 [shape = 's32[]', space=sflag, size = 0x4, offset = 0, fixed_abs, tag = 'sflag constant byte address 0x0 - dummy sync flag']
  #allocation52 [shape = 's32[]', space=sflag, size = 0x4, offset = 0, fixed_abs, tag = 'sflag constant byte address 0x0 - dummy sync flag']
  #allocation53 [shape = 's32[]', space=sflag, size = 0x4, offset = 0, fixed_abs, tag = 'sflag constant byte address 0x0 - dummy sync flag']
  #allocation54 [shape = 's32[]', space=sflag, size = 0x4, offset = 0, fixed_abs, tag = 'sflag constant byte address 0x0 - dummy sync flag']
  #allocation55 [shape = 's32[]', space=sflag, size = 0x4, offset = 0, fixed_abs, tag = 'sflag constant byte address 0x0 - dummy sync flag']
  #allocation56 [shape = 's32[]', space=sflag, size = 0x4, offset = 0, fixed_abs, tag = 'sflag constant byte address 0x0 - dummy sync flag']
  #allocation57 [shape = 's32[]', space=sflag, size = 0x4, offset = 0, fixed_abs, tag = 'sflag constant byte address 0x0 - dummy sync flag']
  #allocation58 [shape = 's32[]', space=sflag, size = 0x4, offset = 0, fixed_abs, tag = 'sflag constant byte address 0x0 - dummy sync flag']
  #allocation59 [shape = 's32[]', space=sflag, size = 0x4, offset = 0, fixed_abs, tag = 'sflag constant byte address 0x0 - dummy sync flag']
  #allocation60 [shape = 's32[]', space=sflag, size = 0x4, offset = 0, fixed_abs, tag = 'sflag constant byte address 0x0 - dummy sync flag']
  #allocation61 [shape = 's32[]', space=sflag, size = 0x4, offset = 0, fixed_abs, tag = 'sflag constant byte address 0x0 - dummy sync flag']
  #allocation62 [shape = 's32[]', space=sflag, size = 0x4, offset = 0, fixed_abs, tag = 'sflag constant byte address 0x0 - dummy sync flag']
  #allocation63 [shape = 's32[]', space=sflag, size = 0x4, offset = 0, fixed_abs, tag = 'sflag constant byte address 0x0 - dummy sync flag']
  #allocation64 [shape = 's32[]', space=sflag, size = 0x4, offset = 0, fixed_abs, tag = 'sflag constant byte address 0x0 - dummy sync flag']
  #allocation65 [shape = 's32[]', space=sflag, size = 0x4, offset = 0, fixed_abs, tag = 'sflag constant byte address 0x0 - dummy sync flag']
  #allocation66 [shape = 's32[]', space=sflag, size = 0x4, offset = 0, fixed_abs, tag = 'sflag constant byte address 0x0 - dummy sync flag']
  #allocation67 [shape = 's32[]', space=sflag, size = 0x4, offset = 0, fixed_abs, tag = 'sflag constant byte address 0x0 - dummy sync flag']
  #allocation68 [shape = 's32[]', space=sflag, size = 0x4, offset = 0, fixed_abs, tag = 'sflag constant byte address 0x0 - dummy sync flag']
  #allocation69 [shape = 's32[]', space=sflag, size = 0x4, offset = 0, fixed_abs, tag = 'sflag constant byte address 0x0 - dummy sync flag']
  #allocation70 [shape = 's32[]', space=sflag, size = 0x4, offset = 0, fixed_abs, tag = 'sflag constant byte address 0x0 - dummy sync flag']
  #allocation71 [shape = 's32[]', space=sflag, size = 0x4, offset = 0, fixed_abs, tag = 'sflag constant byte address 0x0 - dummy sync flag']
  #allocation72 [shape = 's32[]', space=sflag, size = 0x4, offset = 0, fixed_abs, tag = 'sflag constant byte address 0x0 - dummy sync flag']
  #allocation73 [shape = 's32[]', space=sflag, size = 0x4, offset = 0, fixed_abs, tag = 'sflag constant byte address 0x0 - dummy sync flag']
  #allocation74 [shape = 's32[]', space=sflag, size = 0x4, offset = 0, fixed_abs, tag = 'sflag constant byte address 0x0 - dummy sync flag']
  #allocation75 [shape = 's32[]', space=sflag, size = 0x4, offset = 0, fixed_abs, tag = 'sflag constant byte address 0x0 - dummy sync flag']
  #allocation76 [shape = 's32[]', space=sflag, size = 0x4, offset = 0, fixed_abs, tag = 'sflag constant byte address 0x0 - dummy sync flag']
  #allocation77 [shape = 's32[]', space=sflag, size = 0x4, offset = 0, fixed_abs, tag = 'sflag constant byte address 0x0 - dummy sync flag']
  #allocation78 [shape = 's32[]', space=sflag, size = 0x4, offset = 0, fixed_abs, tag = 'sflag constant byte address 0x0 - dummy sync flag']
  #allocation79 [shape = 's32[]', space=sflag, size = 0x4, offset = 0, fixed_abs, tag = 'sflag constant byte address 0x0 - dummy sync flag']
  #allocation80 [shape = 's32[]', space=sflag, size = 0x4, offset = 0, fixed_abs, tag = 'sflag constant byte address 0x0 - dummy sync flag']
  #allocation81 [shape = 's32[]', space=sflag, size = 0x4, offset = 0, fixed_abs, tag = 'sflag constant byte address 0x0 - dummy sync flag']
  #allocation82 [shape = 's32[]', space=sflag, size = 0x4, offset = 0, fixed_abs, tag = 'sflag constant byte address 0x0 - dummy sync flag']
  #allocation83 [shape = 's32[]', space=sflag, size = 0x4, offset = 0, fixed_abs, tag = 'sflag constant byte address 0x0 - dummy sync flag']
  #allocation84 [shape = 's32[]', space=sflag, size = 0x4, offset = 0, fixed_abs, tag = 'sflag constant byte address 0x0 - dummy sync flag']
  #allocation85 [shape = 's32[]', space=sflag, size = 0x4, offset = 0, fixed_abs, tag = 'sflag constant byte address 0x0 - dummy sync flag']
  #allocation86 [shape = 's32[]', space=sflag, size = 0x4, offset = 0, fixed_abs, tag = 'sflag constant byte address 0x0 - dummy sync flag']
  #allocation87 [shape = 's32[]', space=sflag, size = 0x4, offset = 0, fixed_abs, tag = 'sflag constant byte address 0x0 - dummy sync flag']
  #allocation88 [shape = 's32[]', space=sflag, size = 0x4, offset = 0, fixed_abs, tag = 'sflag constant byte address 0x0 - dummy sync flag']
  #allocation89 [shape = 's32[]', space=sflag, size = 0x4, offset = 0, fixed_abs, tag = 'sflag constant byte address 0x0 - dummy sync flag']
  #allocation90 [shape = 's32[]', space=sflag, size = 0x4, offset = 0, fixed_abs, tag = 'sflag constant byte address 0x0 - dummy sync flag']
  #allocation91 [shape = 's32[]', space=sflag, size = 0x4, offset = 0, fixed_abs, tag = 'sflag constant byte address 0x0 - dummy sync flag']
  #allocation92 [shape = 's32[]', space=sflag, size = 0x4, offset = 0, fixed_abs, tag = 'sflag constant byte address 0x0 - dummy sync flag']
  #allocation93 [shape = 's32[]', space=sflag, size = 0x4, offset = 0, fixed_abs, tag = 'sflag constant byte address 0x0 - dummy sync flag']
  #allocation94 [shape = 's32[]', space=sflag, size = 0x4, offset = 0, fixed_abs, tag = 'sflag constant byte address 0x0 - dummy sync flag']
  #allocation95 [shape = 's32[]', space=sflag, size = 0x4, offset = 0, fixed_abs, tag = 'sflag constant byte address 0x0 - dummy sync flag']
  #allocation96 [shape = 's32[]', space=sflag, size = 0x4, offset = 0, fixed_abs, tag = 'sflag constant byte address 0x0 - dummy sync flag']
  #allocation97 [shape = 's32[]', space=sflag, size = 0x4, offset = 0, fixed_abs, tag = 'sflag constant byte address 0x0 - dummy sync flag']
  #allocation98 [shape = 's32[]', space=sflag, size = 0x4, offset = 0, fixed_abs, tag = 'sflag constant byte address 0x0 - dummy sync flag']
  #allocation99 [shape = 's32[]', space=sflag, size = 0x4, offset = 0, fixed_abs, tag = 'sflag constant byte address 0x0 - dummy sync flag']
  #allocation100 [shape = 's32[]', space=sflag, size = 0x4, offset = 0, fixed_abs, tag = 'sflag constant byte address 0x0 - dummy sync flag']
  #allocation101 [shape = 's32[]', space=sflag, size = 0x4, offset = 0, fixed_abs, tag = 'sflag constant byte address 0x0 - dummy sync flag']
  #allocation102 [shape = 's32[]', space=sflag, size = 0x4, offset = 0, fixed_abs, tag = 'sflag constant byte address 0x0 - dummy sync flag']
  #allocation103 [shape = 's32[]', space=sflag, size = 0x4, offset = 0, fixed_abs, tag = 'sflag constant byte address 0x0 - dummy sync flag']
  #allocation104 [shape = 's32[]', space=sflag, size = 0x4, offset = 0, fixed_abs, tag = 'sflag constant byte address 0x0 - dummy sync flag']
  #allocation105 [shape = 's32[]', space=sflag, size = 0x4, offset = 0, fixed_abs, tag = 'sflag constant byte address 0x0 - dummy sync flag']
  #allocation106 [shape = 's32[]', space=sflag, size = 0x4, offset = 0, fixed_abs, tag = 'sflag constant byte address 0x0 - dummy sync flag']
  #allocation107 [shape = 's32[]', space=sflag, size = 0x4, offset = 0, fixed_abs, tag = 'sflag constant byte address 0x0 - dummy sync flag']
  #allocation108 [shape = 's32[]', space=sflag, size = 0x4, offset = 0, fixed_abs, tag = 'sflag constant byte address 0x0 - dummy sync flag']
  #allocation109 [shape = 's32[]', space=sflag, size = 0x4, offset = 0, fixed_abs, tag = 'sflag constant byte address 0x0 - dummy sync flag']
  #allocation110 [shape = 's32[]', space=sflag, size = 0x4, offset = 0, fixed_abs, tag = 'sflag constant byte address 0x0 - dummy sync flag']
  #allocation111 [shape = 's32[]', space=sflag, size = 0x4, offset = 0, fixed_abs, tag = 'sflag constant byte address 0x0 - dummy sync flag']
  #allocation112 [shape = 's32[]', space=sflag, size = 0x4, offset = 0, fixed_abs, tag = 'sflag constant byte address 0x0 - dummy sync flag']
  #allocation113 [shape = 's32[]', space=sflag, size = 0x4, offset = 0, fixed_abs, tag = 'sflag constant byte address 0x0 - dummy sync flag']
  #allocation114 [shape = 's32[]', space=sflag, size = 0x4, offset = 0, fixed_abs, tag = 'sflag constant byte address 0x0 - dummy sync flag']
  #allocation115 [shape = 's32[]', space=sflag, size = 0x4, offset = 0, fixed_abs, tag = 'sflag constant byte address 0x0 - dummy sync flag']
  #allocation116 [shape = 's32[]', space=sflag, size = 0x4, offset = 0, fixed_abs, tag = 'sflag constant byte address 0x0 - dummy sync flag']
  #allocation117 [shape = 's32[]', space=sflag, size = 0x4, offset = 0, fixed_abs, tag = 'sflag constant byte address 0x0 - dummy sync flag']
  #allocation118 [shape = 's32[]', space=sflag, size = 0x4, offset = 0, fixed_abs, tag = 'sflag constant byte address 0x0 - dummy sync flag']
  #allocation119 [shape = 's32[]', space=sflag, size = 0x4, offset = 0, fixed_abs, tag = 'sflag constant byte address 0x0 - dummy sync flag']
  #allocation120 [shape = 's32[]', space=sflag, size = 0x4, offset = 0, fixed_abs, tag = 'sflag constant byte address 0x0 - dummy sync flag']
  #allocation121 [shape = 's32[]', space=sflag, size = 0x4, offset = 0, fixed_abs, tag = 'sflag constant byte address 0x0 - dummy sync flag']
  #allocation122 [shape = 's32[]', space=sflag, size = 0x4, offset = 0, fixed_abs, tag = 'sflag constant byte address 0x0 - dummy sync flag']
  #allocation123 [shape = 's32[]', space=sflag, size = 0x4, offset = 0, fixed_abs, tag = 'sflag constant byte address 0x0 - dummy sync flag']
  #allocation124 [shape = 's32[]', space=sflag, size = 0x4, offset = 0, fixed_abs, tag = 'sflag constant byte address 0x0 - dummy sync flag']
  #allocation125 [shape = 's32[]', space=sflag, size = 0x4, offset = 0, fixed_abs, tag = 'sflag constant byte address 0x0 - dummy sync flag']
  #allocation126 [shape = 's32[]', space=sflag, size = 0x4, offset = 0, fixed_abs, tag = 'sflag constant byte address 0x0 - dummy sync flag']
  #allocation127 [shape = 's32[]', space=sflag, size = 0x4, offset = 0, fixed_abs, tag = 'sflag constant byte address 0x0 - dummy sync flag']
  #allocation128 [shape = 's32[]', space=sflag, size = 0x4, offset = 0, fixed_abs, tag = 'sflag constant byte address 0x0 - dummy sync flag']
  #allocation129 [shape = 's32[]', space=sflag, size = 0x4, offset = 0, fixed_abs, tag = 'sflag constant byte address 0x0 - dummy sync flag']
  #allocation130 [shape = 's32[]', space=sflag, size = 0x4, offset = 0, fixed_abs, tag = 'sflag constant byte address 0x0 - dummy sync flag']
  #allocation131 [shape = 's32[]', space=sflag, size = 0x4, offset = 0, fixed_abs, tag = 'sflag constant byte address 0x0 - dummy sync flag']
  #allocation132 [shape = 's32[]', space=sflag, size = 0x4, offset = 0, fixed_abs, tag = 'sflag constant byte address 0x0 - dummy sync flag']
  #allocation133 [shape = 's32[]', space=sflag, size = 0x4, offset = 0, fixed_abs, tag = 'sflag constant byte address 0x0 - dummy sync flag']
  #allocation134 [shape = 's32[]', space=sflag, size = 0x4, offset = 0, fixed_abs, tag = 'sflag constant byte address 0x0 - dummy sync flag']
  #allocation135 [shape = 's32[]', space=sflag, size = 0x4, offset = 0, fixed_abs, tag = 'sflag constant byte address 0x0 - dummy sync flag']
  #allocation136 [shape = 's32[]', space=sflag, size = 0x4, offset = 0, fixed_abs, tag = 'sflag constant byte address 0x0 - dummy sync flag']
  #allocation137 [shape = 's32[]', space=sflag, size = 0x4, offset = 0, fixed_abs, tag = 'sflag constant byte address 0x0 - dummy sync flag']
  #allocation138 [shape = 's32[]', space=sflag, size = 0x4, offset = 0, fixed_abs, tag = 'sflag constant byte address 0x0 - dummy sync flag']
  #allocation139 [shape = 's32[]', space=sflag, size = 0x4, offset = 0, fixed_abs, tag = 'sflag constant byte address 0x0 - dummy sync flag']
  %s0 = inlined_call_operand.hbm [shape: s32[8], index: 0, kind: input, shape index: {}]
  %s1 = inlined_call_operand.vmem [shape: s32[8], index: 1, kind: input, shape index: {}]
  %s2 = inlined_call_operand.vmem [shape: s32[40], index: 2, kind: input, shape index: {}]
  %s3 = inlined_call_operand.hbm [shape: f32[64,128], index: 3, kind: input, shape index: {}]
  %s4 = inlined_call_operand.hbm [shape: f32[64,128], index: 4, kind: input, shape index: {}]
  %s5 = inlined_call_operand.hbm [shape: f32[1,8,128], index: 5, kind: output, shape index: {}]
  %s6 = sld [smem:[#allocation0]]
  $region273: #{tpu_custom_call.1} parent=0
    _
  %s8 = ssub.s32 1, %s6
  %s9 = scalar_select 0, %s8, %s6
  %11 = dma.hbm_to_smem %s0, 16, [#allocation7], [#allocation6]
  %s12 = sshll.u32 %s1, 4
  %s13 = int_to_ptr.vmem [resolvable:$true] %s12
  %15 = dma.vmem_to_smem %s13, 16, [#allocation8], [#allocation6]
  %s16 = sshll.u32 %s2, 4
  %s17 = int_to_ptr.vmem [resolvable:$true] %s16
  %19 = dma.vmem_to_smem %s17, 16, [#allocation9], [#allocation6]
  %20 = dma.done [#allocation6], 48
  %21 = sfence
  $region1: #{tpu_custom_call.1} parent=0
    #allocation10 [shape = 'u8[4096]{0}', space=vmem, size = 0x1000, scoped, tag = 'output window, operand 0, single buffered']
    #allocation11 [shape = 's32[1]{0}', space=sflag, size = 0x4, scoped, tag = 'scoped memory for tpu_custom_call.1']
    %22 = vsyncpa [#allocation11], 0
    %s23 = smul.u32 0, 8
    %s24 = sld [smem:[#allocation7 + %s23]]
    %s25 = smul.addr %s24, 16
    %s26 = scalar_lea.hbm %s3, %s25
    // Predicated region
    $region2: #{tpu_custom_call.1} parent=1 // pred_check
      _
    $region3: #{tpu_custom_call.1} parent=1 // pred_check_branch
      %28 = sbr.rel target = $region5
    $region4: #{tpu_custom_call.1} parent=1 // pred_region
      %29 = sst [smem:[#allocation14]] [#allocation13]
      %30 = sst [smem:[#allocation15]] [#allocation12]
    $region5: #{tpu_custom_call.1} parent=1 // pred_fallthru
      _
    %32 = shalt.err (0)
    %s34 = sshll.u32 [#allocation2], 4
    %s35 = int_to_ptr.vmem [resolvable:$true] %s34
    %37 = dma.hbm_to_vmem [thread:$0]  %s26, 16, %s35, [#allocation5]
    %s38 = sld [smem:[#allocation8 + %s23]]
    %s39 = smul.addr %s38, 16
    %s40 = scalar_lea.hbm %s4, %s39
    %s41 = scalar_lea.sflag [#allocation5], 1
    // Predicated region
    $region6: #{tpu_custom_call.1} parent=1 // pred_check
      _
    $region7: #{tpu_custom_call.1} parent=1 // pred_check_branch
      %43 = sbr.rel target = $region9
    $region8: #{tpu_custom_call.1} parent=1 // pred_region
      %44 = sst [smem:[#allocation14]] [#allocation17]
      %45 = sst [smem:[#allocation15]] [#allocation16]
    $region9: #{tpu_custom_call.1} parent=1 // pred_fallthru
      _
    %47 = shalt.err (0)
    %s49 = sshll.u32 [#allocation3], 4
    %s50 = int_to_ptr.vmem [resolvable:$true] %s49
    %52 = dma.hbm_to_vmem [thread:$0]  %s40, 16, %s50, %s41
    %s53 = smul.u32 0, 40
    %s54 = sld [smem:[#allocation9 + %s53]]
    %s55 = smul.addr %s54, 16
    %s56 = scalar_lea.hbm %s4, %s55
    %s57 = scalar_lea.sflag [#allocation5], 2
    // Predicated region
    $region10: #{tpu_custom_call.1} parent=1 // pred_check
      _
    $region11: #{tpu_custom_call.1} parent=1 // pred_check_branch
      %59 = sbr.rel target = $region13
    $region12: #{tpu_custom_call.1} parent=1 // pred_region
      %60 = sst [smem:[#allocation14]] [#allocation19]
      %61 = sst [smem:[#allocation15]] [#allocation18]
    $region13: #{tpu_custom_call.1} parent=1 // pred_fallthru
      _
    %63 = shalt.err (0)
    %s65 = sshll.u32 [#allocation4], 4
    %s66 = int_to_ptr.vmem [resolvable:$true] %s65
    %68 = dma.hbm_to_vmem [thread:$0]  %s56, 16, %s66, %s57
    %s69 = sadd.s32 %s53, 1
    %s70 = sld [smem:[#allocation9 + %s69]]
    %s71 = smul.addr %s70, 16
    %s72 = scalar_lea.hbm %s4, %s71
    %s73 = scalar_lea.vmem [#allocation4], 8
    // Predicated region
    $region14: #{tpu_custom_call.1} parent=1 // pred_check
      _
    $region15: #{tpu_custom_call.1} parent=1 // pred_check_branch
      %75 = sbr.rel target = $region17
    $region16: #{tpu_custom_call.1} parent=1 // pred_region
      %76 = sst [smem:[#allocation14]] [#allocation21]
      %77 = sst [smem:[#allocation15]] [#allocation20]
    $region17: #{tpu_custom_call.1} parent=1 // pred_fallthru
      _
    %79 = shalt.err (0)
    %s81 = sshll.u32 %s73, 4
    %s82 = int_to_ptr.vmem [resolvable:$true] %s81
    %84 = dma.hbm_to_vmem [thread:$0]  %s72, 16, %s82, %s57
    %s85 = sadd.s32 %s53, 2
    %s86 = sld [smem:[#allocation9 + %s85]]
    %s87 = smul.addr %s86, 16
    %s88 = scalar_lea.hbm %s4, %s87
    %s89 = scalar_lea.vmem [#allocation4], 16
    // Predicated region
    $region18: #{tpu_custom_call.1} parent=1 // pred_check
      _
    $region19: #{tpu_custom_call.1} parent=1 // pred_check_branch
      %91 = sbr.rel target = $region21
    $region20: #{tpu_custom_call.1} parent=1 // pred_region
      %92 = sst [smem:[#allocation14]] [#allocation23]
      %93 = sst [smem:[#allocation15]] [#allocation22]
    $region21: #{tpu_custom_call.1} parent=1 // pred_fallthru
      _
    %95 = shalt.err (0)
    %s97 = sshll.u32 %s89, 4
    %s98 = int_to_ptr.vmem [resolvable:$true] %s97
    %100 = dma.hbm_to_vmem [thread:$0]  %s88, 16, %s98, %s57
    %s101 = sadd.s32 %s53, 3
    %s102 = sld [smem:[#allocation9 + %s101]]
    %s103 = smul.addr %s102, 16
    %s104 = scalar_lea.hbm %s4, %s103
    %s105 = scalar_lea.vmem [#allocation4], 24
    // Predicated region
    $region22: #{tpu_custom_call.1} parent=1 // pred_check
      _
    $region23: #{tpu_custom_call.1} parent=1 // pred_check_branch
      %107 = sbr.rel target = $region25
    $region24: #{tpu_custom_call.1} parent=1 // pred_region
      %108 = sst [smem:[#allocation14]] [#allocation25]
      %109 = sst [smem:[#allocation15]] [#allocation24]
    $region25: #{tpu_custom_call.1} parent=1 // pred_fallthru
      _
    %111 = shalt.err (0)
    %s113 = sshll.u32 %s105, 4
    %s114 = int_to_ptr.vmem [resolvable:$true] %s113
    %116 = dma.hbm_to_vmem [thread:$0]  %s104, 16, %s114, %s57
    %s117 = sadd.s32 %s53, 4
    %s118 = sld [smem:[#allocation9 + %s117]]
    %s119 = smul.addr %s118, 16
    %s120 = scalar_lea.hbm %s4, %s119
    %s121 = scalar_lea.vmem [#allocation4], 32
    // Predicated region
    $region26: #{tpu_custom_call.1} parent=1 // pred_check
      _
    $region27: #{tpu_custom_call.1} parent=1 // pred_check_branch
      %123 = sbr.rel target = $region29
    $region28: #{tpu_custom_call.1} parent=1 // pred_region
      %124 = sst [smem:[#allocation14]] [#allocation27]
      %125 = sst [smem:[#allocation15]] [#allocation26]
    $region29: #{tpu_custom_call.1} parent=1 // pred_fallthru
      _
    %127 = shalt.err (0)
    %s129 = sshll.u32 %s121, 4
    %s130 = int_to_ptr.vmem [resolvable:$true] %s129
    %132 = dma.hbm_to_vmem [thread:$0]  %s120, 16, %s130, %s57
    %s133 = sadd.s32 %s23, 1
    %s134 = sld [smem:[#allocation7 + %s133]]
    %s135 = smul.addr %s134, 16
    %s136 = scalar_lea.hbm %s3, %s135
    %s137 = scalar_lea.vmem [#allocation2], 1
    // Predicated region
    $region30: #{tpu_custom_call.1} parent=1 // pred_check
      _
    $region31: #{tpu_custom_call.1} parent=1 // pred_check_branch
      %139 = sbr.rel target = $region33
    $region32: #{tpu_custom_call.1} parent=1 // pred_region
      %140 = sst [smem:[#allocation14]] [#allocation29]
      %141 = sst [smem:[#allocation15]] [#allocation28]
    $region33: #{tpu_custom_call.1} parent=1 // pred_fallthru
      _
    %143 = shalt.err (0)
    %s145 = sshll.u32 %s137, 4
    %s146 = int_to_ptr.vmem [resolvable:$true] %s145
    %148 = dma.hbm_to_vmem [thread:$0]  %s136, 16, %s146, [#allocation5]
    %s149 = sld [smem:[#allocation8 + %s133]]
    %s150 = smul.addr %s149, 16
    %s151 = scalar_lea.hbm %s4, %s150
    %s152 = scalar_lea.vmem [#allocation3], 1
    // Predicated region
    $region34: #{tpu_custom_call.1} parent=1 // pred_check
      _
    $region35: #{tpu_custom_call.1} parent=1 // pred_check_branch
      %154 = sbr.rel target = $region37
    $region36: #{tpu_custom_call.1} parent=1 // pred_region
      %155 = sst [smem:[#allocation14]] [#allocation31]
      %156 = sst [smem:[#allocation15]] [#allocation30]
    $region37: #{tpu_custom_call.1} parent=1 // pred_fallthru
      _
    %158 = shalt.err (0)
    %s160 = sshll.u32 %s152, 4
    %s161 = int_to_ptr.vmem [resolvable:$true] %s160
    %163 = dma.hbm_to_vmem [thread:$0]  %s151, 16, %s161, %s41
    %s164 = smul.u32 %s133, 5
    %s165 = sld [smem:[#allocation9 + %s164]]
    %s166 = smul.addr %s165, 16
    %s167 = scalar_lea.hbm %s4, %s166
    %s168 = scalar_lea.vmem [#allocation4], 1
    // Predicated region
    $region38: #{tpu_custom_call.1} parent=1 // pred_check
      _
    $region39: #{tpu_custom_call.1} parent=1 // pred_check_branch
      %170 = sbr.rel target = $region41
    $region40: #{tpu_custom_call.1} parent=1 // pred_region
      %171 = sst [smem:[#allocation14]] [#allocation33]
      %172 = sst [smem:[#allocation15]] [#allocation32]
    $region41: #{tpu_custom_call.1} parent=1 // pred_fallthru
      _
    %174 = shalt.err (0)
    %s176 = sshll.u32 %s168, 4
    %s177 = int_to_ptr.vmem [resolvable:$true] %s176
    %179 = dma.hbm_to_vmem [thread:$0]  %s167, 16, %s177, %s57
    %s180 = sadd.s32 %s164, 1
    %s181 = sld [smem:[#allocation9 + %s180]]
    %s182 = smul.addr %s181, 16
    %s183 = scalar_lea.hbm %s4, %s182
    %s184 = scalar_lea.vmem [#allocation4], 9
    // Predicated region
    $region42: #{tpu_custom_call.1} parent=1 // pred_check
      _
    $region43: #{tpu_custom_call.1} parent=1 // pred_check_branch
      %186 = sbr.rel target = $region45
    $region44: #{tpu_custom_call.1} parent=1 // pred_region
      %187 = sst [smem:[#allocation14]] [#allocation35]
      %188 = sst [smem:[#allocation15]] [#allocation34]
    $region45: #{tpu_custom_call.1} parent=1 // pred_fallthru
      _
    %190 = shalt.err (0)
    %s192 = sshll.u32 %s184, 4
    %s193 = int_to_ptr.vmem [resolvable:$true] %s192
    %195 = dma.hbm_to_vmem [thread:$0]  %s183, 16, %s193, %s57
    %s196 = sadd.s32 %s164, 2
    %s197 = sld [smem:[#allocation9 + %s196]]
    %s198 = smul.addr %s197, 16
    %s199 = scalar_lea.hbm %s4, %s198
    %s200 = scalar_lea.vmem [#allocation4], 17
    // Predicated region
    $region46: #{tpu_custom_call.1} parent=1 // pred_check
      _
    $region47: #{tpu_custom_call.1} parent=1 // pred_check_branch
      %202 = sbr.rel target = $region49
    $region48: #{tpu_custom_call.1} parent=1 // pred_region
      %203 = sst [smem:[#allocation14]] [#allocation37]
      %204 = sst [smem:[#allocation15]] [#allocation36]
    $region49: #{tpu_custom_call.1} parent=1 // pred_fallthru
      _
    %206 = shalt.err (0)
    %s208 = sshll.u32 %s200, 4
    %s209 = int_to_ptr.vmem [resolvable:$true] %s208
    %211 = dma.hbm_to_vmem [thread:$0]  %s199, 16, %s209, %s57
    %s212 = sadd.s32 %s164, 3
    %s213 = sld [smem:[#allocation9 + %s212]]
    %s214 = smul.addr %s213, 16
    %s215 = scalar_lea.hbm %s4, %s214
    %s216 = scalar_lea.vmem [#allocation4], 25
    // Predicated region
    $region50: #{tpu_custom_call.1} parent=1 // pred_check
      _
    $region51: #{tpu_custom_call.1} parent=1 // pred_check_branch
      %218 = sbr.rel target = $region53
    $region52: #{tpu_custom_call.1} parent=1 // pred_region
      %219 = sst [smem:[#allocation14]] [#allocation39]
      %220 = sst [smem:[#allocation15]] [#allocation38]
    $region53: #{tpu_custom_call.1} parent=1 // pred_fallthru
      _
    %222 = shalt.err (0)
    %s224 = sshll.u32 %s216, 4
    %s225 = int_to_ptr.vmem [resolvable:$true] %s224
    %227 = dma.hbm_to_vmem [thread:$0]  %s215, 16, %s225, %s57
    %s228 = sadd.s32 %s164, 4
    %s229 = sld [smem:[#allocation9 + %s228]]
    %s230 = smul.addr %s229, 16
    %s231 = scalar_lea.hbm %s4, %s230
    %s232 = scalar_lea.vmem [#allocation4], 33
    // Predicated region
    $region54: #{tpu_custom_call.1} parent=1 // pred_check
      _
    $region55: #{tpu_custom_call.1} parent=1 // pred_check_branch
      %234 = sbr.rel target = $region57
    $region56: #{tpu_custom_call.1} parent=1 // pred_region
      %235 = sst [smem:[#allocation14]] [#allocation41]
      %236 = sst [smem:[#allocation15]] [#allocation40]
    $region57: #{tpu_custom_call.1} parent=1 // pred_fallthru
      _
    %238 = shalt.err (0)
    %s240 = sshll.u32 %s232, 4
    %s241 = int_to_ptr.vmem [resolvable:$true] %s240
    %243 = dma.hbm_to_vmem [thread:$0]  %s231, 16, %s241, %s57
    %s244 = sadd.s32 %s23, 2
    %s245 = sld [smem:[#allocation7 + %s244]]
    %s246 = smul.addr %s245, 16
    %s247 = scalar_lea.hbm %s3, %s246
    %s248 = scalar_lea.vmem [#allocation2], 2
    // Predicated region
    $region58: #{tpu_custom_call.1} parent=1 // pred_check
      _
    $region59: #{tpu_custom_call.1} parent=1 // pred_check_branch
      %250 = sbr.rel target = $region61
    $region60: #{tpu_custom_call.1} parent=1 // pred_region
      %251 = sst [smem:[#allocation14]] [#allocation43]
      %252 = sst [smem:[#allocation15]] [#allocation42]
    $region61: #{tpu_custom_call.1} parent=1 // pred_fallthru
      _
    %254 = shalt.err (0)
    %s256 = sshll.u32 %s248, 4
    %s257 = int_to_ptr.vmem [resolvable:$true] %s256
    %259 = dma.hbm_to_vmem [thread:$0]  %s247, 16, %s257, [#allocation5]
    %s260 = sld [smem:[#allocation8 + %s244]]
    %s261 = smul.addr %s260, 16
    %s262 = scalar_lea.hbm %s4, %s261
    %s263 = scalar_lea.vmem [#allocation3], 2
    // Predicated region
    $region62: #{tpu_custom_call.1} parent=1 // pred_check
      _
    $region63: #{tpu_custom_call.1} parent=1 // pred_check_branch
      %265 = sbr.rel target = $region65
    $region64: #{tpu_custom_call.1} parent=1 // pred_region
      %266 = sst [smem:[#allocation14]] [#allocation45]
      %267 = sst [smem:[#allocation15]] [#allocation44]
    $region65: #{tpu_custom_call.1} parent=1 // pred_fallthru
      _
    %269 = shalt.err (0)
    %s271 = sshll.u32 %s263, 4
    %s272 = int_to_ptr.vmem [resolvable:$true] %s271
    %274 = dma.hbm_to_vmem [thread:$0]  %s262, 16, %s272, %s41
    %s275 = smul.u32 %s244, 5
    %s276 = sld [smem:[#allocation9 + %s275]]
    %s277 = smul.addr %s276, 16
    %s278 = scalar_lea.hbm %s4, %s277
    %s279 = scalar_lea.vmem [#allocation4], 2
    // Predicated region
    $region66: #{tpu_custom_call.1} parent=1 // pred_check
      _
    $region67: #{tpu_custom_call.1} parent=1 // pred_check_branch
      %281 = sbr.rel target = $region69
    $region68: #{tpu_custom_call.1} parent=1 // pred_region
      %282 = sst [smem:[#allocation14]] [#allocation47]
      %283 = sst [smem:[#allocation15]] [#allocation46]
    $region69: #{tpu_custom_call.1} parent=1 // pred_fallthru
      _
    %285 = shalt.err (0)
    %s287 = sshll.u32 %s279, 4
    %s288 = int_to_ptr.vmem [resolvable:$true] %s287
    %290 = dma.hbm_to_vmem [thread:$0]  %s278, 16, %s288, %s57
    %s291 = sadd.s32 %s275, 1
    %s292 = sld [smem:[#allocation9 + %s291]]
    %s293 = smul.addr %s292, 16
    %s294 = scalar_lea.hbm %s4, %s293
    %s295 = scalar_lea.vmem [#allocation4], 10
    // Predicated region
    $region70: #{tpu_custom_call.1} parent=1 // pred_check
      _
    $region71: #{tpu_custom_call.1} parent=1 // pred_check_branch
      %297 = sbr.rel target = $region73
    $region72: #{tpu_custom_call.1} parent=1 // pred_region
      %298 = sst [smem:[#allocation14]] [#allocation49]
      %299 = sst [smem:[#allocation15]] [#allocation48]
    $region73: #{tpu_custom_call.1} parent=1 // pred_fallthru
      _
    %301 = shalt.err (0)
    %s303 = sshll.u32 %s295, 4
    %s304 = int_to_ptr.vmem [resolvable:$true] %s303
    %306 = dma.hbm_to_vmem [thread:$0]  %s294, 16, %s304, %s57
    %s307 = sadd.s32 %s275, 2
    %s308 = sld [smem:[#allocation9 + %s307]]
    %s309 = smul.addr %s308, 16
    %s310 = scalar_lea.hbm %s4, %s309
    %s311 = scalar_lea.vmem [#allocation4], 18
    // Predicated region
    $region74: #{tpu_custom_call.1} parent=1 // pred_check
      _
    $region75: #{tpu_custom_call.1} parent=1 // pred_check_branch
      %313 = sbr.rel target = $region77
    $region76: #{tpu_custom_call.1} parent=1 // pred_region
      %314 = sst [smem:[#allocation14]] [#allocation51]
      %315 = sst [smem:[#allocation15]] [#allocation50]
    $region77: #{tpu_custom_call.1} parent=1 // pred_fallthru
      _
    %317 = shalt.err (0)
    %s319 = sshll.u32 %s311, 4
    %s320 = int_to_ptr.vmem [resolvable:$true] %s319
    %322 = dma.hbm_to_vmem [thread:$0]  %s310, 16, %s320, %s57
    %s323 = sadd.s32 %s275, 3
    %s324 = sld [smem:[#allocation9 + %s323]]
    %s325 = smul.addr %s324, 16
    %s326 = scalar_lea.hbm %s4, %s325
    %s327 = scalar_lea.vmem [#allocation4], 26
    // Predicated region
    $region78: #{tpu_custom_call.1} parent=1 // pred_check
      _
    $region79: #{tpu_custom_call.1} parent=1 // pred_check_branch
      %329 = sbr.rel target = $region81
    $region80: #{tpu_custom_call.1} parent=1 // pred_region
      %330 = sst [smem:[#allocation14]] [#allocation53]
      %331 = sst [smem:[#allocation15]] [#allocation52]
    $region81: #{tpu_custom_call.1} parent=1 // pred_fallthru
      _
    %333 = shalt.err (0)
    %s335 = sshll.u32 %s327, 4
    %s336 = int_to_ptr.vmem [resolvable:$true] %s335
    %338 = dma.hbm_to_vmem [thread:$0]  %s326, 16, %s336, %s57
    %s339 = sadd.s32 %s275, 4
    %s340 = sld [smem:[#allocation9 + %s339]]
    %s341 = smul.addr %s340, 16
    %s342 = scalar_lea.hbm %s4, %s341
    %s343 = scalar_lea.vmem [#allocation4], 34
    // Predicated region
    $region82: #{tpu_custom_call.1} parent=1 // pred_check
      _
    $region83: #{tpu_custom_call.1} parent=1 // pred_check_branch
      %345 = sbr.rel target = $region85
    $region84: #{tpu_custom_call.1} parent=1 // pred_region
      %346 = sst [smem:[#allocation14]] [#allocation55]
      %347 = sst [smem:[#allocation15]] [#allocation54]
    $region85: #{tpu_custom_call.1} parent=1 // pred_fallthru
      _
    %349 = shalt.err (0)
    %s351 = sshll.u32 %s343, 4
    %s352 = int_to_ptr.vmem [resolvable:$true] %s351
    %354 = dma.hbm_to_vmem [thread:$0]  %s342, 16, %s352, %s57
    %s355 = sadd.s32 %s23, 3
    %s356 = sld [smem:[#allocation7 + %s355]]
    %s357 = smul.addr %s356, 16
    %s358 = scalar_lea.hbm %s3, %s357
    %s359 = scalar_lea.vmem [#allocation2], 3
    // Predicated region
    $region86: #{tpu_custom_call.1} parent=1 // pred_check
      _
    $region87: #{tpu_custom_call.1} parent=1 // pred_check_branch
      %361 = sbr.rel target = $region89
    $region88: #{tpu_custom_call.1} parent=1 // pred_region
      %362 = sst [smem:[#allocation14]] [#allocation57]
      %363 = sst [smem:[#allocation15]] [#allocation56]
    $region89: #{tpu_custom_call.1} parent=1 // pred_fallthru
      _
    %365 = shalt.err (0)
    %s367 = sshll.u32 %s359, 4
    %s368 = int_to_ptr.vmem [resolvable:$true] %s367
    %370 = dma.hbm_to_vmem [thread:$0]  %s358, 16, %s368, [#allocation5]
    %s371 = sld [smem:[#allocation8 + %s355]]
    %s372 = smul.addr %s371, 16
    %s373 = scalar_lea.hbm %s4, %s372
    %s374 = scalar_lea.vmem [#allocation3], 3
    // Predicated region
    $region90: #{tpu_custom_call.1} parent=1 // pred_check
      _
    $region91: #{tpu_custom_call.1} parent=1 // pred_check_branch
      %376 = sbr.rel target = $region93
    $region92: #{tpu_custom_call.1} parent=1 // pred_region
      %377 = sst [smem:[#allocation14]] [#allocation59]
      %378 = sst [smem:[#allocation15]] [#allocation58]
    $region93: #{tpu_custom_call.1} parent=1 // pred_fallthru
      _
    %380 = shalt.err (0)
    %s382 = sshll.u32 %s374, 4
    %s383 = int_to_ptr.vmem [resolvable:$true] %s382
    %385 = dma.hbm_to_vmem [thread:$0]  %s373, 16, %s383, %s41
    %s386 = smul.u32 %s355, 5
    %s387 = sld [smem:[#allocation9 + %s386]]
    %s388 = smul.addr %s387, 16
    %s389 = scalar_lea.hbm %s4, %s388
    %s390 = scalar_lea.vmem [#allocation4], 3
    // Predicated region
    $region94: #{tpu_custom_call.1} parent=1 // pred_check
      _
    $region95: #{tpu_custom_call.1} parent=1 // pred_check_branch
      %392 = sbr.rel target = $region97
    $region96: #{tpu_custom_call.1} parent=1 // pred_region
      %393 = sst [smem:[#allocation14]] [#allocation61]
      %394 = sst [smem:[#allocation15]] [#allocation60]
    $region97: #{tpu_custom_call.1} parent=1 // pred_fallthru
      _
    %396 = shalt.err (0)
    %s398 = sshll.u32 %s390, 4
    %s399 = int_to_ptr.vmem [resolvable:$true] %s398
    %401 = dma.hbm_to_vmem [thread:$0]  %s389, 16, %s399, %s57
    %s402 = sadd.s32 %s386, 1
    %s403 = sld [smem:[#allocation9 + %s402]]
    %s404 = smul.addr %s403, 16
    %s405 = scalar_lea.hbm %s4, %s404
    %s406 = scalar_lea.vmem [#allocation4], 11
    // Predicated region
    $region98: #{tpu_custom_call.1} parent=1 // pred_check
      _
    $region99: #{tpu_custom_call.1} parent=1 // pred_check_branch
      %408 = sbr.rel target = $region101
    $region100: #{tpu_custom_call.1} parent=1 // pred_region
      %409 = sst [smem:[#allocation14]] [#allocation63]
      %410 = sst [smem:[#allocation15]] [#allocation62]
    $region101: #{tpu_custom_call.1} parent=1 // pred_fallthru
      _
    %412 = shalt.err (0)
    %s414 = sshll.u32 %s406, 4
    %s415 = int_to_ptr.vmem [resolvable:$true] %s414
    %417 = dma.hbm_to_vmem [thread:$0]  %s405, 16, %s415, %s57
    %s418 = sadd.s32 %s386, 2
    %s419 = sld [smem:[#allocation9 + %s418]]
    %s420 = smul.addr %s419, 16
    %s421 = scalar_lea.hbm %s4, %s420
    %s422 = scalar_lea.vmem [#allocation4], 19
    // Predicated region
    $region102: #{tpu_custom_call.1} parent=1 // pred_check
      _
    $region103: #{tpu_custom_call.1} parent=1 // pred_check_branch
      %424 = sbr.rel target = $region105
    $region104: #{tpu_custom_call.1} parent=1 // pred_region
      %425 = sst [smem:[#allocation14]] [#allocation65]
      %426 = sst [smem:[#allocation15]] [#allocation64]
    $region105: #{tpu_custom_call.1} parent=1 // pred_fallthru
      _
    %428 = shalt.err (0)
    %s430 = sshll.u32 %s422, 4
    %s431 = int_to_ptr.vmem [resolvable:$true] %s430
    %433 = dma.hbm_to_vmem [thread:$0]  %s421, 16, %s431, %s57
    %s434 = sadd.s32 %s386, 3
    %s435 = sld [smem:[#allocation9 + %s434]]
    %s436 = smul.addr %s435, 16
    %s437 = scalar_lea.hbm %s4, %s436
    %s438 = scalar_lea.vmem [#allocation4], 27
    // Predicated region
    $region106: #{tpu_custom_call.1} parent=1 // pred_check
      _
    $region107: #{tpu_custom_call.1} parent=1 // pred_check_branch
      %440 = sbr.rel target = $region109
    $region108: #{tpu_custom_call.1} parent=1 // pred_region
      %441 = sst [smem:[#allocation14]] [#allocation67]
      %442 = sst [smem:[#allocation15]] [#allocation66]
    $region109: #{tpu_custom_call.1} parent=1 // pred_fallthru
      _
    %444 = shalt.err (0)
    %s446 = sshll.u32 %s438, 4
    %s447 = int_to_ptr.vmem [resolvable:$true] %s446
    %449 = dma.hbm_to_vmem [thread:$0]  %s437, 16, %s447, %s57
    %s450 = sadd.s32 %s386, 4
    %s451 = sld [smem:[#allocation9 + %s450]]
    %s452 = smul.addr %s451, 16
    %s453 = scalar_lea.hbm %s4, %s452
    %s454 = scalar_lea.vmem [#allocation4], 35
    // Predicated region
    $region110: #{tpu_custom_call.1} parent=1 // pred_check
      _
    $region111: #{tpu_custom_call.1} parent=1 // pred_check_branch
      %456 = sbr.rel target = $region113
    $region112: #{tpu_custom_call.1} parent=1 // pred_region
      %457 = sst [smem:[#allocation14]] [#allocation69]
      %458 = sst [smem:[#allocation15]] [#allocation68]
    $region113: #{tpu_custom_call.1} parent=1 // pred_fallthru
      _
    %460 = shalt.err (0)
    %s462 = sshll.u32 %s454, 4
    %s463 = int_to_ptr.vmem [resolvable:$true] %s462
    %465 = dma.hbm_to_vmem [thread:$0]  %s453, 16, %s463, %s57
    %s466 = sadd.s32 %s23, 4
    %s467 = sld [smem:[#allocation7 + %s466]]
    %s468 = smul.addr %s467, 16
    %s469 = scalar_lea.hbm %s3, %s468
    %s470 = scalar_lea.vmem [#allocation2], 4
    // Predicated region
    $region114: #{tpu_custom_call.1} parent=1 // pred_check
      _
    $region115: #{tpu_custom_call.1} parent=1 // pred_check_branch
      %472 = sbr.rel target = $region117
    $region116: #{tpu_custom_call.1} parent=1 // pred_region
      %473 = sst [smem:[#allocation14]] [#allocation71]
      %474 = sst [smem:[#allocation15]] [#allocation70]
    $region117: #{tpu_custom_call.1} parent=1 // pred_fallthru
      _
    %476 = shalt.err (0)
    %s478 = sshll.u32 %s470, 4
    %s479 = int_to_ptr.vmem [resolvable:$true] %s478
    %481 = dma.hbm_to_vmem [thread:$0]  %s469, 16, %s479, [#allocation5]
    %s482 = sld [smem:[#allocation8 + %s466]]
    %s483 = smul.addr %s482, 16
    %s484 = scalar_lea.hbm %s4, %s483
    %s485 = scalar_lea.vmem [#allocation3], 4
    // Predicated region
    $region118: #{tpu_custom_call.1} parent=1 // pred_check
      _
    $region119: #{tpu_custom_call.1} parent=1 // pred_check_branch
      %487 = sbr.rel target = $region121
    $region120: #{tpu_custom_call.1} parent=1 // pred_region
      %488 = sst [smem:[#allocation14]] [#allocation73]
      %489 = sst [smem:[#allocation15]] [#allocation72]
    $region121: #{tpu_custom_call.1} parent=1 // pred_fallthru
      _
    %491 = shalt.err (0)
    %s493 = sshll.u32 %s485, 4
    %s494 = int_to_ptr.vmem [resolvable:$true] %s493
    %496 = dma.hbm_to_vmem [thread:$0]  %s484, 16, %s494, %s41
    %s497 = smul.u32 %s466, 5
    %s498 = sld [smem:[#allocation9 + %s497]]
    %s499 = smul.addr %s498, 16
    %s500 = scalar_lea.hbm %s4, %s499
    %s501 = scalar_lea.vmem [#allocation4], 4
    // Predicated region
    $region122: #{tpu_custom_call.1} parent=1 // pred_check
      _
    $region123: #{tpu_custom_call.1} parent=1 // pred_check_branch
      %503 = sbr.rel target = $region125
    $region124: #{tpu_custom_call.1} parent=1 // pred_region
      %504 = sst [smem:[#allocation14]] [#allocation75]
      %505 = sst [smem:[#allocation15]] [#allocation74]
    $region125: #{tpu_custom_call.1} parent=1 // pred_fallthru
      _
    %507 = shalt.err (0)
    %s509 = sshll.u32 %s501, 4
    %s510 = int_to_ptr.vmem [resolvable:$true] %s509
    %512 = dma.hbm_to_vmem [thread:$0]  %s500, 16, %s510, %s57
    %s513 = sadd.s32 %s497, 1
    %s514 = sld [smem:[#allocation9 + %s513]]
    %s515 = smul.addr %s514, 16
    %s516 = scalar_lea.hbm %s4, %s515
    %s517 = scalar_lea.vmem [#allocation4], 12
    // Predicated region
    $region126: #{tpu_custom_call.1} parent=1 // pred_check
      _
    $region127: #{tpu_custom_call.1} parent=1 // pred_check_branch
      %519 = sbr.rel target = $region129
    $region128: #{tpu_custom_call.1} parent=1 // pred_region
      %520 = sst [smem:[#allocation14]] [#allocation77]
      %521 = sst [smem:[#allocation15]] [#allocation76]
    $region129: #{tpu_custom_call.1} parent=1 // pred_fallthru
      _
    %523 = shalt.err (0)
    %s525 = sshll.u32 %s517, 4
    %s526 = int_to_ptr.vmem [resolvable:$true] %s525
    %528 = dma.hbm_to_vmem [thread:$0]  %s516, 16, %s526, %s57
    %s529 = sadd.s32 %s497, 2
    %s530 = sld [smem:[#allocation9 + %s529]]
    %s531 = smul.addr %s530, 16
    %s532 = scalar_lea.hbm %s4, %s531
    %s533 = scalar_lea.vmem [#allocation4], 20
    // Predicated region
    $region130: #{tpu_custom_call.1} parent=1 // pred_check
      _
    $region131: #{tpu_custom_call.1} parent=1 // pred_check_branch
      %535 = sbr.rel target = $region133
    $region132: #{tpu_custom_call.1} parent=1 // pred_region
      %536 = sst [smem:[#allocation14]] [#allocation79]
      %537 = sst [smem:[#allocation15]] [#allocation78]
    $region133: #{tpu_custom_call.1} parent=1 // pred_fallthru
      _
    %539 = shalt.err (0)
    %s541 = sshll.u32 %s533, 4
    %s542 = int_to_ptr.vmem [resolvable:$true] %s541
    %544 = dma.hbm_to_vmem [thread:$0]  %s532, 16, %s542, %s57
    %s545 = sadd.s32 %s497, 3
    %s546 = sld [smem:[#allocation9 + %s545]]
    %s547 = smul.addr %s546, 16
    %s548 = scalar_lea.hbm %s4, %s547
    %s549 = scalar_lea.vmem [#allocation4], 28
    // Predicated region
    $region134: #{tpu_custom_call.1} parent=1 // pred_check
      _
    $region135: #{tpu_custom_call.1} parent=1 // pred_check_branch
      %551 = sbr.rel target = $region137
    $region136: #{tpu_custom_call.1} parent=1 // pred_region
      %552 = sst [smem:[#allocation14]] [#allocation81]
      %553 = sst [smem:[#allocation15]] [#allocation80]
    $region137: #{tpu_custom_call.1} parent=1 // pred_fallthru
      _
    %555 = shalt.err (0)
    %s557 = sshll.u32 %s549, 4
    %s558 = int_to_ptr.vmem [resolvable:$true] %s557
    %560 = dma.hbm_to_vmem [thread:$0]  %s548, 16, %s558, %s57
    %s561 = sadd.s32 %s497, 4
    %s562 = sld [smem:[#allocation9 + %s561]]
    %s563 = smul.addr %s562, 16
    %s564 = scalar_lea.hbm %s4, %s563
    %s565 = scalar_lea.vmem [#allocation4], 36
    // Predicated region
    $region138: #{tpu_custom_call.1} parent=1 // pred_check
      _
    $region139: #{tpu_custom_call.1} parent=1 // pred_check_branch
      %567 = sbr.rel target = $region141
    $region140: #{tpu_custom_call.1} parent=1 // pred_region
      %568 = sst [smem:[#allocation14]] [#allocation83]
      %569 = sst [smem:[#allocation15]] [#allocation82]
    $region141: #{tpu_custom_call.1} parent=1 // pred_fallthru
      _
    %571 = shalt.err (0)
    %s573 = sshll.u32 %s565, 4
    %s574 = int_to_ptr.vmem [resolvable:$true] %s573
    %576 = dma.hbm_to_vmem [thread:$0]  %s564, 16, %s574, %s57
    %s577 = sadd.s32 %s23, 5
    %s578 = sld [smem:[#allocation7 + %s577]]
    %s579 = smul.addr %s578, 16
    %s580 = scalar_lea.hbm %s3, %s579
    %s581 = scalar_lea.vmem [#allocation2], 5
    // Predicated region
    $region142: #{tpu_custom_call.1} parent=1 // pred_check
      _
    $region143: #{tpu_custom_call.1} parent=1 // pred_check_branch
      %583 = sbr.rel target = $region145
    $region144: #{tpu_custom_call.1} parent=1 // pred_region
      %584 = sst [smem:[#allocation14]] [#allocation85]
      %585 = sst [smem:[#allocation15]] [#allocation84]
    $region145: #{tpu_custom_call.1} parent=1 // pred_fallthru
      _
    %587 = shalt.err (0)
    %s589 = sshll.u32 %s581, 4
    %s590 = int_to_ptr.vmem [resolvable:$true] %s589
    %592 = dma.hbm_to_vmem [thread:$0]  %s580, 16, %s590, [#allocation5]
    %s593 = sld [smem:[#allocation8 + %s577]]
    %s594 = smul.addr %s593, 16
    %s595 = scalar_lea.hbm %s4, %s594
    %s596 = scalar_lea.vmem [#allocation3], 5
    // Predicated region
    $region146: #{tpu_custom_call.1} parent=1 // pred_check
      _
    $region147: #{tpu_custom_call.1} parent=1 // pred_check_branch
      %598 = sbr.rel target = $region149
    $region148: #{tpu_custom_call.1} parent=1 // pred_region
      %599 = sst [smem:[#allocation14]] [#allocation87]
      %600 = sst [smem:[#allocation15]] [#allocation86]
    $region149: #{tpu_custom_call.1} parent=1 // pred_fallthru
      _
    %602 = shalt.err (0)
    %s604 = sshll.u32 %s596, 4
    %s605 = int_to_ptr.vmem [resolvable:$true] %s604
    %607 = dma.hbm_to_vmem [thread:$0]  %s595, 16, %s605, %s41
    %s608 = smul.u32 %s577, 5
    %s609 = sld [smem:[#allocation9 + %s608]]
    %s610 = smul.addr %s609, 16
    %s611 = scalar_lea.hbm %s4, %s610
    %s612 = scalar_lea.vmem [#allocation4], 5
    // Predicated region
    $region150: #{tpu_custom_call.1} parent=1 // pred_check
      _
    $region151: #{tpu_custom_call.1} parent=1 // pred_check_branch
      %614 = sbr.rel target = $region153
    $region152: #{tpu_custom_call.1} parent=1 // pred_region
      %615 = sst [smem:[#allocation14]] [#allocation89]
      %616 = sst [smem:[#allocation15]] [#allocation88]
    $region153: #{tpu_custom_call.1} parent=1 // pred_fallthru
      _
    %618 = shalt.err (0)
    %s620 = sshll.u32 %s612, 4
    %s621 = int_to_ptr.vmem [resolvable:$true] %s620
    %623 = dma.hbm_to_vmem [thread:$0]  %s611, 16, %s621, %s57
    %s624 = sadd.s32 %s608, 1
    %s625 = sld [smem:[#allocation9 + %s624]]
    %s626 = smul.addr %s625, 16
    %s627 = scalar_lea.hbm %s4, %s626
    %s628 = scalar_lea.vmem [#allocation4], 13
    // Predicated region
    $region154: #{tpu_custom_call.1} parent=1 // pred_check
      _
    $region155: #{tpu_custom_call.1} parent=1 // pred_check_branch
      %630 = sbr.rel target = $region157
    $region156: #{tpu_custom_call.1} parent=1 // pred_region
      %631 = sst [smem:[#allocation14]] [#allocation91]
      %632 = sst [smem:[#allocation15]] [#allocation90]
    $region157: #{tpu_custom_call.1} parent=1 // pred_fallthru
      _
    %634 = shalt.err (0)
    %s636 = sshll.u32 %s628, 4
    %s637 = int_to_ptr.vmem [resolvable:$true] %s636
    %639 = dma.hbm_to_vmem [thread:$0]  %s627, 16, %s637, %s57
    %s640 = sadd.s32 %s608, 2
    %s641 = sld [smem:[#allocation9 + %s640]]
    %s642 = smul.addr %s641, 16
    %s643 = scalar_lea.hbm %s4, %s642
    %s644 = scalar_lea.vmem [#allocation4], 21
    // Predicated region
    $region158: #{tpu_custom_call.1} parent=1 // pred_check
      _
    $region159: #{tpu_custom_call.1} parent=1 // pred_check_branch
      %646 = sbr.rel target = $region161
    $region160: #{tpu_custom_call.1} parent=1 // pred_region
      %647 = sst [smem:[#allocation14]] [#allocation93]
      %648 = sst [smem:[#allocation15]] [#allocation92]
    $region161: #{tpu_custom_call.1} parent=1 // pred_fallthru
      _
    %650 = shalt.err (0)
    %s652 = sshll.u32 %s644, 4
    %s653 = int_to_ptr.vmem [resolvable:$true] %s652
    %655 = dma.hbm_to_vmem [thread:$0]  %s643, 16, %s653, %s57
    %s656 = sadd.s32 %s608, 3
    %s657 = sld [smem:[#allocation9 + %s656]]
    %s658 = smul.addr %s657, 16
    %s659 = scalar_lea.hbm %s4, %s658
    %s660 = scalar_lea.vmem [#allocation4], 29
    // Predicated region
    $region162: #{tpu_custom_call.1} parent=1 // pred_check
      _
    $region163: #{tpu_custom_call.1} parent=1 // pred_check_branch
      %662 = sbr.rel target = $region165
    $region164: #{tpu_custom_call.1} parent=1 // pred_region
      %663 = sst [smem:[#allocation14]] [#allocation95]
      %664 = sst [smem:[#allocation15]] [#allocation94]
    $region165: #{tpu_custom_call.1} parent=1 // pred_fallthru
      _
    %666 = shalt.err (0)
    %s668 = sshll.u32 %s660, 4
    %s669 = int_to_ptr.vmem [resolvable:$true] %s668
    %671 = dma.hbm_to_vmem [thread:$0]  %s659, 16, %s669, %s57
    %s672 = sadd.s32 %s608, 4
    %s673 = sld [smem:[#allocation9 + %s672]]
    %s674 = smul.addr %s673, 16
    %s675 = scalar_lea.hbm %s4, %s674
    %s676 = scalar_lea.vmem [#allocation4], 37
    // Predicated region
    $region166: #{tpu_custom_call.1} parent=1 // pred_check
      _
    $region167: #{tpu_custom_call.1} parent=1 // pred_check_branch
      %678 = sbr.rel target = $region169
    $region168: #{tpu_custom_call.1} parent=1 // pred_region
      %679 = sst [smem:[#allocation14]] [#allocation97]
      %680 = sst [smem:[#allocation15]] [#allocation96]
    $region169: #{tpu_custom_call.1} parent=1 // pred_fallthru
      _
    %682 = shalt.err (0)
    %s684 = sshll.u32 %s676, 4
    %s685 = int_to_ptr.vmem [resolvable:$true] %s684
    %687 = dma.hbm_to_vmem [thread:$0]  %s675, 16, %s685, %s57
    %s688 = sadd.s32 %s23, 6
    %s689 = sld [smem:[#allocation7 + %s688]]
    %s690 = smul.addr %s689, 16
    %s691 = scalar_lea.hbm %s3, %s690
    %s692 = scalar_lea.vmem [#allocation2], 6
    // Predicated region
    $region170: #{tpu_custom_call.1} parent=1 // pred_check
      _
    $region171: #{tpu_custom_call.1} parent=1 // pred_check_branch
      %694 = sbr.rel target = $region173
    $region172: #{tpu_custom_call.1} parent=1 // pred_region
      %695 = sst [smem:[#allocation14]] [#allocation99]
      %696 = sst [smem:[#allocation15]] [#allocation98]
    $region173: #{tpu_custom_call.1} parent=1 // pred_fallthru
      _
    %698 = shalt.err (0)
    %s700 = sshll.u32 %s692, 4
    %s701 = int_to_ptr.vmem [resolvable:$true] %s700
    %703 = dma.hbm_to_vmem [thread:$0]  %s691, 16, %s701, [#allocation5]
    %s704 = sld [smem:[#allocation8 + %s688]]
    %s705 = smul.addr %s704, 16
    %s706 = scalar_lea.hbm %s4, %s705
    %s707 = scalar_lea.vmem [#allocation3], 6
    // Predicated region
    $region174: #{tpu_custom_call.1} parent=1 // pred_check
      _
    $region175: #{tpu_custom_call.1} parent=1 // pred_check_branch
      %709 = sbr.rel target = $region177
    $region176: #{tpu_custom_call.1} parent=1 // pred_region
      %710 = sst [smem:[#allocation14]] [#allocation101]
      %711 = sst [smem:[#allocation15]] [#allocation100]
    $region177: #{tpu_custom_call.1} parent=1 // pred_fallthru
      _
    %713 = shalt.err (0)
    %s715 = sshll.u32 %s707, 4
    %s716 = int_to_ptr.vmem [resolvable:$true] %s715
    %718 = dma.hbm_to_vmem [thread:$0]  %s706, 16, %s716, %s41
    %s719 = smul.u32 %s688, 5
    %s720 = sld [smem:[#allocation9 + %s719]]
    %s721 = smul.addr %s720, 16
    %s722 = scalar_lea.hbm %s4, %s721
    %s723 = scalar_lea.vmem [#allocation4], 6
    // Predicated region
    $region178: #{tpu_custom_call.1} parent=1 // pred_check
      _
    $region179: #{tpu_custom_call.1} parent=1 // pred_check_branch
      %725 = sbr.rel target = $region181
    $region180: #{tpu_custom_call.1} parent=1 // pred_region
      %726 = sst [smem:[#allocation14]] [#allocation103]
      %727 = sst [smem:[#allocation15]] [#allocation102]
    $region181: #{tpu_custom_call.1} parent=1 // pred_fallthru
      _
    %729 = shalt.err (0)
    %s731 = sshll.u32 %s723, 4
    %s732 = int_to_ptr.vmem [resolvable:$true] %s731
    %734 = dma.hbm_to_vmem [thread:$0]  %s722, 16, %s732, %s57
    %s735 = sadd.s32 %s719, 1
    %s736 = sld [smem:[#allocation9 + %s735]]
    %s737 = smul.addr %s736, 16
    %s738 = scalar_lea.hbm %s4, %s737
    %s739 = scalar_lea.vmem [#allocation4], 14
    // Predicated region
    $region182: #{tpu_custom_call.1} parent=1 // pred_check
      _
    $region183: #{tpu_custom_call.1} parent=1 // pred_check_branch
      %741 = sbr.rel target = $region185
    $region184: #{tpu_custom_call.1} parent=1 // pred_region
      %742 = sst [smem:[#allocation14]] [#allocation105]
      %743 = sst [smem:[#allocation15]] [#allocation104]
    $region185: #{tpu_custom_call.1} parent=1 // pred_fallthru
      _
    %745 = shalt.err (0)
    %s747 = sshll.u32 %s739, 4
    %s748 = int_to_ptr.vmem [resolvable:$true] %s747
    %750 = dma.hbm_to_vmem [thread:$0]  %s738, 16, %s748, %s57
    %s751 = sadd.s32 %s719, 2
    %s752 = sld [smem:[#allocation9 + %s751]]
    %s753 = smul.addr %s752, 16
    %s754 = scalar_lea.hbm %s4, %s753
    %s755 = scalar_lea.vmem [#allocation4], 22
    // Predicated region
    $region186: #{tpu_custom_call.1} parent=1 // pred_check
      _
    $region187: #{tpu_custom_call.1} parent=1 // pred_check_branch
      %757 = sbr.rel target = $region189
    $region188: #{tpu_custom_call.1} parent=1 // pred_region
      %758 = sst [smem:[#allocation14]] [#allocation107]
      %759 = sst [smem:[#allocation15]] [#allocation106]
    $region189: #{tpu_custom_call.1} parent=1 // pred_fallthru
      _
    %761 = shalt.err (0)
    %s763 = sshll.u32 %s755, 4
    %s764 = int_to_ptr.vmem [resolvable:$true] %s763
    %766 = dma.hbm_to_vmem [thread:$0]  %s754, 16, %s764, %s57
    %s767 = sadd.s32 %s719, 3
    %s768 = sld [smem:[#allocation9 + %s767]]
    %s769 = smul.addr %s768, 16
    %s770 = scalar_lea.hbm %s4, %s769
    %s771 = scalar_lea.vmem [#allocation4], 30
    // Predicated region
    $region190: #{tpu_custom_call.1} parent=1 // pred_check
      _
    $region191: #{tpu_custom_call.1} parent=1 // pred_check_branch
      %773 = sbr.rel target = $region193
    $region192: #{tpu_custom_call.1} parent=1 // pred_region
      %774 = sst [smem:[#allocation14]] [#allocation109]
      %775 = sst [smem:[#allocation15]] [#allocation108]
    $region193: #{tpu_custom_call.1} parent=1 // pred_fallthru
      _
    %777 = shalt.err (0)
    %s779 = sshll.u32 %s771, 4
    %s780 = int_to_ptr.vmem [resolvable:$true] %s779
    %782 = dma.hbm_to_vmem [thread:$0]  %s770, 16, %s780, %s57
    %s783 = sadd.s32 %s719, 4
    %s784 = sld [smem:[#allocation9 + %s783]]
    %s785 = smul.addr %s784, 16
    %s786 = scalar_lea.hbm %s4, %s785
    %s787 = scalar_lea.vmem [#allocation4], 38
    // Predicated region
    $region194: #{tpu_custom_call.1} parent=1 // pred_check
      _
    $region195: #{tpu_custom_call.1} parent=1 // pred_check_branch
      %789 = sbr.rel target = $region197
    $region196: #{tpu_custom_call.1} parent=1 // pred_region
      %790 = sst [smem:[#allocation14]] [#allocation111]
      %791 = sst [smem:[#allocation15]] [#allocation110]
    $region197: #{tpu_custom_call.1} parent=1 // pred_fallthru
      _
    %793 = shalt.err (0)
    %s795 = sshll.u32 %s787, 4
    %s796 = int_to_ptr.vmem [resolvable:$true] %s795
    %798 = dma.hbm_to_vmem [thread:$0]  %s786, 16, %s796, %s57
    %s799 = sadd.s32 %s23, 7
    %s800 = sld [smem:[#allocation7 + %s799]]
    %s801 = smul.addr %s800, 16
    %s802 = scalar_lea.hbm %s3, %s801
    %s803 = scalar_lea.vmem [#allocation2], 7
    // Predicated region
    $region198: #{tpu_custom_call.1} parent=1 // pred_check
      _
    $region199: #{tpu_custom_call.1} parent=1 // pred_check_branch
      %805 = sbr.rel target = $region201
    $region200: #{tpu_custom_call.1} parent=1 // pred_region
      %806 = sst [smem:[#allocation14]] [#allocation113]
      %807 = sst [smem:[#allocation15]] [#allocation112]
    $region201: #{tpu_custom_call.1} parent=1 // pred_fallthru
      _
    %809 = shalt.err (0)
    %s811 = sshll.u32 %s803, 4
    %s812 = int_to_ptr.vmem [resolvable:$true] %s811
    %814 = dma.hbm_to_vmem [thread:$0]  %s802, 16, %s812, [#allocation5]
    %s815 = sld [smem:[#allocation8 + %s799]]
    %s816 = smul.addr %s815, 16
    %s817 = scalar_lea.hbm %s4, %s816
    %s818 = scalar_lea.vmem [#allocation3], 7
    // Predicated region
    $region202: #{tpu_custom_call.1} parent=1 // pred_check
      _
    $region203: #{tpu_custom_call.1} parent=1 // pred_check_branch
      %820 = sbr.rel target = $region205
    $region204: #{tpu_custom_call.1} parent=1 // pred_region
      %821 = sst [smem:[#allocation14]] [#allocation115]
      %822 = sst [smem:[#allocation15]] [#allocation114]
    $region205: #{tpu_custom_call.1} parent=1 // pred_fallthru
      _
    %824 = shalt.err (0)
    %s826 = sshll.u32 %s818, 4
    %s827 = int_to_ptr.vmem [resolvable:$true] %s826
    %829 = dma.hbm_to_vmem [thread:$0]  %s817, 16, %s827, %s41
    %s830 = smul.u32 %s799, 5
    %s831 = sld [smem:[#allocation9 + %s830]]
    %s832 = smul.addr %s831, 16
    %s833 = scalar_lea.hbm %s4, %s832
    %s834 = scalar_lea.vmem [#allocation4], 7
    // Predicated region
    $region206: #{tpu_custom_call.1} parent=1 // pred_check
      _
    $region207: #{tpu_custom_call.1} parent=1 // pred_check_branch
      %836 = sbr.rel target = $region209
    $region208: #{tpu_custom_call.1} parent=1 // pred_region
      %837 = sst [smem:[#allocation14]] [#allocation117]
      %838 = sst [smem:[#allocation15]] [#allocation116]
    $region209: #{tpu_custom_call.1} parent=1 // pred_fallthru
      _
    %840 = shalt.err (0)
    %s842 = sshll.u32 %s834, 4
    %s843 = int_to_ptr.vmem [resolvable:$true] %s842
    %845 = dma.hbm_to_vmem [thread:$0]  %s833, 16, %s843, %s57
    %s846 = sadd.s32 %s830, 1
    %s847 = sld [smem:[#allocation9 + %s846]]
    %s848 = smul.addr %s847, 16
    %s849 = scalar_lea.hbm %s4, %s848
    %s850 = scalar_lea.vmem [#allocation4], 15
    // Predicated region
    $region210: #{tpu_custom_call.1} parent=1 // pred_check
      _
    $region211: #{tpu_custom_call.1} parent=1 // pred_check_branch
      %852 = sbr.rel target = $region213
    $region212: #{tpu_custom_call.1} parent=1 // pred_region
      %853 = sst [smem:[#allocation14]] [#allocation119]
      %854 = sst [smem:[#allocation15]] [#allocation118]
    $region213: #{tpu_custom_call.1} parent=1 // pred_fallthru
      _
    %856 = shalt.err (0)
    %s858 = sshll.u32 %s850, 4
    %s859 = int_to_ptr.vmem [resolvable:$true] %s858
    %861 = dma.hbm_to_vmem [thread:$0]  %s849, 16, %s859, %s57
    %s862 = sadd.s32 %s830, 2
    %s863 = sld [smem:[#allocation9 + %s862]]
    %s864 = smul.addr %s863, 16
    %s865 = scalar_lea.hbm %s4, %s864
    %s866 = scalar_lea.vmem [#allocation4], 23
    // Predicated region
    $region214: #{tpu_custom_call.1} parent=1 // pred_check
      _
    $region215: #{tpu_custom_call.1} parent=1 // pred_check_branch
      %868 = sbr.rel target = $region217
    $region216: #{tpu_custom_call.1} parent=1 // pred_region
      %869 = sst [smem:[#allocation14]] [#allocation121]
      %870 = sst [smem:[#allocation15]] [#allocation120]
    $region217: #{tpu_custom_call.1} parent=1 // pred_fallthru
      _
    %872 = shalt.err (0)
    %s874 = sshll.u32 %s866, 4
    %s875 = int_to_ptr.vmem [resolvable:$true] %s874
    %877 = dma.hbm_to_vmem [thread:$0]  %s865, 16, %s875, %s57
    %s878 = sadd.s32 %s830, 3
    %s879 = sld [smem:[#allocation9 + %s878]]
    %s880 = smul.addr %s879, 16
    %s881 = scalar_lea.hbm %s4, %s880
    %s882 = scalar_lea.vmem [#allocation4], 31
    // Predicated region
    $region218: #{tpu_custom_call.1} parent=1 // pred_check
      _
    $region219: #{tpu_custom_call.1} parent=1 // pred_check_branch
      %884 = sbr.rel target = $region221
    $region220: #{tpu_custom_call.1} parent=1 // pred_region
      %885 = sst [smem:[#allocation14]] [#allocation123]
      %886 = sst [smem:[#allocation15]] [#allocation122]
    $region221: #{tpu_custom_call.1} parent=1 // pred_fallthru
      _
    %888 = shalt.err (0)
    %s890 = sshll.u32 %s882, 4
    %s891 = int_to_ptr.vmem [resolvable:$true] %s890
    %893 = dma.hbm_to_vmem [thread:$0]  %s881, 16, %s891, %s57
    %s894 = sadd.s32 %s830, 4
    %s895 = sld [smem:[#allocation9 + %s894]]
    %s896 = smul.addr %s895, 16
    %s897 = scalar_lea.hbm %s4, %s896
    %s898 = scalar_lea.vmem [#allocation4], 39
    // Predicated region
    $region222: #{tpu_custom_call.1} parent=1 // pred_check
      _
    $region223: #{tpu_custom_call.1} parent=1 // pred_check_branch
      %900 = sbr.rel target = $region225
    $region224: #{tpu_custom_call.1} parent=1 // pred_region
      %901 = sst [smem:[#allocation14]] [#allocation125]
      %902 = sst [smem:[#allocation15]] [#allocation124]
    $region225: #{tpu_custom_call.1} parent=1 // pred_fallthru
      _
    %904 = shalt.err (0)
    %s906 = sshll.u32 %s898, 4
    %s907 = int_to_ptr.vmem [resolvable:$true] %s906
    %909 = dma.hbm_to_vmem [thread:$0]  %s897, 16, %s907, %s57
    loop: start=0, step=1, limit=8
    $region226: #{tpu_custom_call.1} parent=1 // loop_pre_header
      _
    $region227: #{tpu_custom_call.1} parent=1 // loop_header
      %s911 = sphi 0, %s915
      %p912 = scmp.ge.s32.totalorder %s911, 8
    $region228: #{tpu_custom_call.1} parent=1 // loop_header_branch
      %914 = sbr.rel (%p912) target = $region232
    $region229: #{tpu_custom_call.1} parent=1 // loop_body
      %s916 = sadd.s32 %s911, 8
      %p917 = scmp.lt.s32.totalorder %s916, 8
      // Predicated region
      $region233: #{tpu_custom_call.1} parent=229 // pred_check
        %p918 = pneg %p917
      $region234: #{tpu_custom_call.1} parent=229 // pred_check_branch
        %920 = sbr.rel (%p918) target = $region236
      $region235: #{tpu_custom_call.1} parent=229 // pred_region
        %s921 = sadd.s32 %s23, %s916
        %s922 = sld [smem:[#allocation7 + %s921]]
        %s923 = smul.addr %s922, 16
        %s924 = scalar_lea.hbm %s3, %s923
        %s925 = scalar_lea.vmem [#allocation2], %s916
        // Predicated region
        $region237: #{tpu_custom_call.1} parent=235 // pred_check
          _
        $region238: #{tpu_custom_call.1} parent=235 // pred_check_branch
          %927 = sbr.rel target = $region240
        $region239: #{tpu_custom_call.1} parent=235 // pred_region
          %928 = sst [smem:[#allocation14]] [#allocation127]
          %929 = sst [smem:[#allocation15]] [#allocation126]
        $region240: #{tpu_custom_call.1} parent=235 // pred_fallthru
          _
        %931 = shalt.err (0)
        %s933 = sshll.u32 %s925, 4
        %s934 = int_to_ptr.vmem [resolvable:$true] %s933
        %936 = dma.hbm_to_vmem [thread:$0]  %s924, 16, %s934, [#allocation5]
        %s937 = sld [smem:[#allocation8 + %s921]]
        %s938 = smul.addr %s937, 16
        %s939 = scalar_lea.hbm %s4, %s938
        %s940 = scalar_lea.vmem [#allocation3], %s916
        // Predicated region
        $region241: #{tpu_custom_call.1} parent=235 // pred_check
          _
        $region242: #{tpu_custom_call.1} parent=235 // pred_check_branch
          %942 = sbr.rel target = $region244
        $region243: #{tpu_custom_call.1} parent=235 // pred_region
          %943 = sst [smem:[#allocation14]] [#allocation129]
          %944 = sst [smem:[#allocation15]] [#allocation128]
        $region244: #{tpu_custom_call.1} parent=235 // pred_fallthru
          _
        %946 = shalt.err (0)
        %s948 = sshll.u32 %s940, 4
        %s949 = int_to_ptr.vmem [resolvable:$true] %s948
        %951 = dma.hbm_to_vmem [thread:$0]  %s939, 16, %s949, %s41
        %s952 = smul.u32 %s921, 5
        %s953 = sld [smem:[#allocation9 + %s952]]
        %s954 = smul.addr %s953, 16
        %s955 = scalar_lea.hbm %s4, %s954
        %s956 = scalar_lea.vmem [#allocation4], %s916
        // Predicated region
        $region245: #{tpu_custom_call.1} parent=235 // pred_check
          _
        $region246: #{tpu_custom_call.1} parent=235 // pred_check_branch
          %958 = sbr.rel target = $region248
        $region247: #{tpu_custom_call.1} parent=235 // pred_region
          %959 = sst [smem:[#allocation14]] [#allocation131]
          %960 = sst [smem:[#allocation15]] [#allocation130]
        $region248: #{tpu_custom_call.1} parent=235 // pred_fallthru
          _
        %962 = shalt.err (0)
        %s964 = sshll.u32 %s956, 4
        %s965 = int_to_ptr.vmem [resolvable:$true] %s964
        %967 = dma.hbm_to_vmem [thread:$0]  %s955, 16, %s965, %s57
        %s968 = sadd.s32 %s952, 1
        %s969 = sld [smem:[#allocation9 + %s968]]
        %s970 = smul.addr %s969, 16
        %s971 = scalar_lea.hbm %s4, %s970
        %s972 = sadd.s32 %s916, 8
        %s973 = scalar_lea.vmem [#allocation4], %s972
        // Predicated region
        $region249: #{tpu_custom_call.1} parent=235 // pred_check
          _
        $region250: #{tpu_custom_call.1} parent=235 // pred_check_branch
          %975 = sbr.rel target = $region252
        $region251: #{tpu_custom_call.1} parent=235 // pred_region
          %976 = sst [smem:[#allocation14]] [#allocation133]
          %977 = sst [smem:[#allocation15]] [#allocation132]
        $region252: #{tpu_custom_call.1} parent=235 // pred_fallthru
          _
        %979 = shalt.err (0)
        %s981 = sshll.u32 %s973, 4
        %s982 = int_to_ptr.vmem [resolvable:$true] %s981
        %984 = dma.hbm_to_vmem [thread:$0]  %s971, 16, %s982, %s57
        %s985 = sadd.s32 %s952, 2
        %s986 = sld [smem:[#allocation9 + %s985]]
        %s987 = smul.addr %s986, 16
        %s988 = scalar_lea.hbm %s4, %s987
        %s989 = sadd.s32 %s916, 16
        %s990 = scalar_lea.vmem [#allocation4], %s989
        // Predicated region
        $region253: #{tpu_custom_call.1} parent=235 // pred_check
          _
        $region254: #{tpu_custom_call.1} parent=235 // pred_check_branch
          %992 = sbr.rel target = $region256
        $region255: #{tpu_custom_call.1} parent=235 // pred_region
          %993 = sst [smem:[#allocation14]] [#allocation135]
          %994 = sst [smem:[#allocation15]] [#allocation134]
        $region256: #{tpu_custom_call.1} parent=235 // pred_fallthru
          _
        %996 = shalt.err (0)
        %s998 = sshll.u32 %s990, 4
        %s999 = int_to_ptr.vmem [resolvable:$true] %s998
        %1001 = dma.hbm_to_vmem [thread:$0]  %s988, 16, %s999, %s57
        %s1002 = sadd.s32 %s952, 3
        %s1003 = sld [smem:[#allocation9 + %s1002]]
        %s1004 = smul.addr %s1003, 16
        %s1005 = scalar_lea.hbm %s4, %s1004
        %s1006 = sadd.s32 %s916, 24
        %s1007 = scalar_lea.vmem [#allocation4], %s1006
        // Predicated region
        $region257: #{tpu_custom_call.1} parent=235 // pred_check
          _
        $region258: #{tpu_custom_call.1} parent=235 // pred_check_branch
          %1009 = sbr.rel target = $region260
        $region259: #{tpu_custom_call.1} parent=235 // pred_region
          %1010 = sst [smem:[#allocation14]] [#allocation137]
          %1011 = sst [smem:[#allocation15]] [#allocation136]
        $region260: #{tpu_custom_call.1} parent=235 // pred_fallthru
          _
        %1013 = shalt.err (0)
        %s1015 = sshll.u32 %s1007, 4
        %s1016 = int_to_ptr.vmem [resolvable:$true] %s1015
        %1018 = dma.hbm_to_vmem [thread:$0]  %s1005, 16, %s1016, %s57
        %s1019 = sadd.s32 %s952, 4
        %s1020 = sld [smem:[#allocation9 + %s1019]]
        %s1021 = smul.addr %s1020, 16
        %s1022 = scalar_lea.hbm %s4, %s1021
        %s1023 = sadd.s32 %s916, 32
        %s1024 = scalar_lea.vmem [#allocation4], %s1023
        // Predicated region
        $region261: #{tpu_custom_call.1} parent=235 // pred_check
          _
        $region262: #{tpu_custom_call.1} parent=235 // pred_check_branch
          %1026 = sbr.rel target = $region264
        $region263: #{tpu_custom_call.1} parent=235 // pred_region
          %1027 = sst [smem:[#allocation14]] [#allocation139]
          %1028 = sst [smem:[#allocation15]] [#allocation138]
        $region264: #{tpu_custom_call.1} parent=235 // pred_fallthru
          _
        %1030 = shalt.err (0)
        %s1032 = sshll.u32 %s1024, 4
        %s1033 = int_to_ptr.vmem [resolvable:$true] %s1032
        %1035 = dma.hbm_to_vmem [thread:$0]  %s1022, 16, %s1033, %s57
      $region236: #{tpu_custom_call.1} parent=229 // pred_fallthru
        _
      %s1036 = smul.u32 1, 1
      %s1037 = sshll.u32 %s1036, 4
      %1038 = dma.done [#allocation5], %s1037
      %s1039 = sshll.u32 %s1036, 4
      %1040 = dma.done %s41, %s1039
      %s1041 = sshll.u32 %s1036, 4
      %1042 = dma.done %s57, %s1041
      %s1043 = sshll.u32 %s1036, 4
      %1044 = dma.done %s57, %s1043
      %s1045 = sshll.u32 %s1036, 4
      %1046 = dma.done %s57, %s1045
      %s1047 = sshll.u32 %s1036, 4
      %1048 = dma.done %s57, %s1047
      %s1049 = sshll.u32 %s1036, 4
      %1050 = dma.done %s57, %s1049
    $region230: #{tpu_custom_call.1} parent=1 // loop_footer
      %s915 = sadd.s32 1, %s911
    $region231: #{tpu_custom_call.1} parent=1 // loop_footer_branch
      %910 = sbr.rel target = $region227
    $region232: #{tpu_custom_call.1} parent=1 // loop_exit
      _
    %v1051 = vld [vmem:[#allocation2] sm:$0xff]
    %v1052 = vld [vmem:[#allocation3] sm:$0xff]
    %v1053 = vmul.f32 %v1052, %v1051
    %1054 = vadd.xlane.f32.xlu0 %v1053
    %v1055 = vpop.xlane.xlu0 %1054
    %v1056 = vld [vmem:[#allocation4] sm:$0xff]
    %v1057 = vld [vmem:[%s73] sm:$0xff]
    %v1058 = vadd.f32 %v1056, %v1057
    %v1059 = vld [vmem:[%s89] sm:$0xff]
    %v1060 = vadd.f32 %v1058, %v1059
    %v1061 = vld [vmem:[%s105] sm:$0xff]
    %v1062 = vadd.f32 %v1060, %v1061
    %v1063 = vld [vmem:[%s121] sm:$0xff]
    %v1064 = vadd.f32 %v1062, %v1063
    %v1065 = vmul.f32 %v1064, %v1051
    %1066 = vadd.xlane.f32.xlu0 %v1065
    %v1067 = vpop.xlane.xlu0 %1066
    %v1068 = vsub.f32 0.0, %v1067
    %v1069 = vmin.f32 %v1055, 0.0
    %v1070 = vand.u32 2147483647, %v1055
    %v1071 = vsub.f32 0.0, %v1070
    %v1072 = vmul.f32 %v1071, 1.442695
    %v1073 = vpow.pop %v1072
    %v1074 = vadd.f32 %v1073, 1.0
    %v1075 = vlog2.pop %v1074
    %v1076 = vmul.f32 %v1075, 0.6931472
    %v1077 = vsub.f32 %v1069, %v1076
    %v1078 = vmin.f32 %v1068, 0.0
    %v1079 = vand.u32 2147483647, %v1068
    %v1080 = vsub.f32 0.0, %v1079
    %v1081 = vmul.f32 %v1080, 1.442695
    %v1082 = vpow.pop %v1081
    %v1083 = vadd.f32 %v1082, 1.0
    %v1084 = vlog2.pop %v1083
    %v1085 = vmul.f32 %v1084, 0.6931472
    %v1086 = vsub.f32 %v1078, %v1085
    %v1087 = vadd.f32 %v1077, %v1086
    %v1088 = vlaneseq
    %v1089 = vshrl.u32 %v1088, 7
    %v1090 = vstv %s23
    %v1091 = vadd.s32 %v1090, %v1089
    %vm1092 = vcmp.lt.s32.totalorder %v1091, 8
    %v1093 = vsel %vm1092, %v1087, 0.0
    %v1094 = vrot.slane %v1093, 4
    %v1095 = vadd.f32 %v1093, %v1094
    %v1096 = vrot.slane %v1095, 2
    %v1097 = vadd.f32 %v1095, %v1096
    %v1098 = vrot.slane %v1097, 1
    %v1099 = vadd.f32 %v1097, %v1098
    %1100 = vst [vmem:[#allocation10] sm:$0xff] %v1099
    // Predicated region
    $region265: #{tpu_custom_call.1} parent=1 // pred_check
      _
    $region266: #{tpu_custom_call.1} parent=1 // pred_check_branch
      %1102 = sbr.rel (0) target = $region268
    $region267: #{tpu_custom_call.1} parent=1 // pred_region
      %s1104 = ssub.s32 128, 128
      %1105 = vsyncadd [#allocation11], %s1104
      %s1107 = sshll.u32 [#allocation10], 4
      %s1108 = int_to_ptr.vmem [resolvable:$true] %s1107
      %1110 = dma.vmem_to_hbm [thread:$0]  %s1108, 128, %s5, [#allocation11]
    $region268: #{tpu_custom_call.1} parent=1 // pred_fallthru
      _
    // Predicated region
    $region269: #{tpu_custom_call.1} parent=1 // pred_check
      _
    $region270: #{tpu_custom_call.1} parent=1 // pred_check_branch
      %1112 = sbr.rel (0) target = $region272
    $region271: #{tpu_custom_call.1} parent=1 // pred_region
      %1113 = dma.done [#allocation11], 128
    $region272: #{tpu_custom_call.1} parent=1 // pred_fallthru
      _
    %1114 = vsyncpa [#allocation11], 1
  %1115 = vsyncmov [#allocation5]
  %s1116 = vpop.sfrf %1115
  %p1117 = scmp.eq.s32.totalorder %s1116, 0
  %p1118 = pneg %p1117
  %1120 = shalt.err (%p1118)
  %s1121 = scalar_lea.sflag [#allocation5], 1
  %1122 = vsyncmov %s1121
  %s1123 = vpop.sfrf %1122
  %p1124 = scmp.eq.s32.totalorder %s1123, 0
  %p1125 = pneg %p1124
  %1127 = shalt.err (%p1125)
  %s1128 = scalar_lea.sflag [#allocation5], 2
  %1129 = vsyncmov %s1128
  %s1130 = vpop.sfrf %1129
  %p1131 = scmp.eq.s32.totalorder %s1130, 0
  %p1132 = pneg %p1131
  %1134 = shalt.err (%p1132)

</llo_original>
